<compile_context>
chip_gen: v5e
topology: v5e:2x2
jax: 0.10.0
libtpu: 0.0.40
codegen_flags: <defaults>
</compile_context>

<pallas_src>
import jax
import jax.numpy as jnp
from jax import lax
from jax.experimental import pallas as pl
from jax.experimental.pallas import tpu as pltpu

PATCH = 288                 # catcher.patch_num (hard-coded in the torch module)
SCALE = 2048 ** (-0.5)      # hard-coded scale in both catcher and deltaor (NOT C**-0.5)
LN_EPS = 1e-5               # nn.LayerNorm default eps
NORM_EPS = 1e-12            # F.normalize default eps
NUM_INSTANCE = 4
MXU_DTYPE = jnp.bfloat16    # MXU operand dtype; accumulation stays float32


# ----------------- in-kernel helpers -----------------
def _softmax_last(s):                       # numerically-safe softmax (scores unbounded)
    m = jnp.max(s, axis=-1, keepdims=True)
    e = jnp.exp(s - m)
    return e * pl.reciprocal(jnp.sum(e, axis=-1, keepdims=True), approx=True)


def _l2_normalize(x):                       # F.normalize(x, dim=-1)
    n = jnp.sqrt(jnp.sum(x * x, axis=-1, keepdims=True))
    return x / jnp.maximum(n, NORM_EPS)


def _layernorm(x):                          # nn.LayerNorm(elementwise_affine=False)
    m = jnp.mean(x, axis=-1, keepdims=True)
    xc = x - m
    v = jnp.mean(xc * xc, axis=-1, keepdims=True)
    return xc * lax.rsqrt(v + LN_EPS)


def _mm(a, b):                              # a @ b   (bf16 operands, f32 accumulate)
    return jnp.dot(a.astype(MXU_DTYPE), b.astype(MXU_DTYPE),
                   preferred_element_type=jnp.float32)


def _mm_t(a, b):                            # a @ b.T without materializing b.T
    return lax.dot_general(a.astype(MXU_DTYPE), b.astype(MXU_DTYPE),
                           (((a.ndim - 1,), (b.ndim - 1,)), ((), ())),
                           preferred_element_type=jnp.float32)


# ----------------- fused main kernel: group stage + f_rel + deltaor + f_rec (+gnew export) -----------------
def _make_main_kernel(training):
    def kernel(q_ref, g_ref, cam_ref, pcT_ref, varp_ref, catA_ref, delA_ref,
               frel_ref, fpro_ref, *rest):
        C = q_ref.shape[-1]
        g = g_ref[0]                          # (PATCH, C)  one 288-token group
        cam = cam_ref[0]                      # (1, C)
        catA = catA_ref[...]                  # (C, C) bf16, already * SCALE

        # --- group self-relation: computed ONCE, reused by f_rel, f_rec AND f_cor ---
        rel = _l2_normalize(g).astype(MXU_DTYPE)
        gram = lax.dot_general(rel, rel, (((1,), (1,)), ((), ())),
                               preferred_element_type=jnp.float32)    # (P, P) cosines in [-1, 1]
        e = jnp.exp(gram)                                             # no max-sub needed: |gram| <= 1
        inv_row = pl.reciprocal(jnp.sum(e, axis=-1, keepdims=True), approx=True)
        # normalize AFTER the PV matmul (exact reassociation, one fewer (P,P) VPU pass)
        gnew = lax.dot_general(e.astype(MXU_DTYPE), g.astype(MXU_DTYPE),
                               (((1,), (0,)), ((), ())),
                               preferred_element_type=jnp.float32) * inv_row   # (P, C)
        gnew_b = gnew.astype(MXU_DTYPE)

        # NOTE: the pos_embed branch of catcher is never taken here because
        # cam_embed is always provided by circle_fine_grained_extractor.forward.
        def cross_attn(x):
            """catcher cross-attention with folded+scaled projections and the
               rank-1 cam correction (relgin = gnew + cam is never materialized)."""
            xA = _mm(x, catA)                                         # (M, C), already * SCALE
            s = _mm_t(xA, gnew_b)                                     # (M, P) = xA @ gnew^T
            s = s + jnp.sum(xA * cam, axis=-1, keepdims=True)         # + xA @ cam^T
            p = _softmax_last(s).astype(MXU_DTYPE)
            return jnp.dot(p, gnew_b, preferred_element_type=jnp.float32)

        # --- Q2R cross attention -> f_rel ---
        f_rel = cross_attn(q_ref[0])
        frel_ref[0] = f_rel

        # --- deltaor (R2P) -> f_pro, with hoisted prototype-LayerNorm algebra ---
        # LN(proto - mu) per prototype row n:  (pc_n - mu_c) * rsqrt(var_n + eps)
        #   pc_n  = proto_n - mean_c(proto_n)      (precomputed, lane-dense transposed)
        #   mu_c  = mu - mean_c(mu),  mu = mean over f_rel tokens
        #   var_n = var_p_n - (2/C) * <pc_n, mu_c> + mean_c(mu_c^2)
        # gn is never materialized: its scalings fold into the score / PV matmuls.
        pcT = pcT_ref[...]                                            # (C, PROTO) f32
        var_p = varp_ref[...]                                         # (1, PROTO)
        M = f_rel.shape[0]
        mu = jnp.mean(f_rel, axis=0, keepdims=True)                   # (1, C)
        mu_c = mu - jnp.mean(mu, axis=-1, keepdims=True)              # (1, C)
        cross = jnp.dot(jnp.broadcast_to(mu_c, (M, C)), pcT,
                        preferred_element_type=jnp.float32)           # (M, PROTO), rows identical
        var = var_p - (2.0 / C) * cross + jnp.mean(mu_c * mu_c, axis=-1, keepdims=True)
        inv_std = lax.rsqrt(var + LN_EPS)                             # (M, PROTO)

        pcT_b = pcT.astype(MXU_DTYPE)
        qd = _mm(_layernorm(f_rel), delA_ref[...])                    # folded q/g linears, * SCALE
        s = (jnp.dot(qd.astype(MXU_DTYPE), pcT_b, preferred_element_type=jnp.float32)
             - jnp.sum(qd * mu_c, axis=-1, keepdims=True)) * inv_std  # (M, PROTO) = qd @ gn^T
        p = _softmax_last(s)
        pw = p * inv_std                                              # (M, PROTO)
        pv = lax.dot_general(pw.astype(MXU_DTYPE), pcT_b, (((1,), (1,)), ((), ())),
                             preferred_element_type=jnp.float32)      # (M, C) = (p*inv_std) @ pc
        f_pro = f_rel + pv - jnp.sum(pw, axis=-1, keepdims=True) * mu_c
        fpro_ref[0] = f_pro

        # --- training only: P2R cross attention -> f_rec, plus gnew export for f_cor ---
        if training:
            rest[0][0] = cross_attn(f_pro)
            rest[1][0] = gnew_b
    return kernel


def main_forward(query_v, xt, cam_embed, pcT, var_p, cat_A, del_A, training):
    """query_v: (1,M,C), xt: (B,PATCH,C), cam_embed: (B,1,C), pcT: (C,PROTO), var_p: (1,PROTO)."""
    B, P, C = xt.shape
    M = query_v.shape[1]
    PR = pcT.shape[1]
    mc = jax.ShapeDtypeStruct((B, M, C), jnp.float32)
    mc_spec = pl.BlockSpec((1, M, C), lambda b: (b, 0, 0))
    out_shape = [mc, mc]
    out_specs = [mc_spec, mc_spec]
    if training:
        out_shape += [mc, jax.ShapeDtypeStruct((B, P, C), MXU_DTYPE)]      # f_rec, gnew
        out_specs += [mc_spec, pl.BlockSpec((1, P, C), lambda b: (b, 0, 0))]
    return pl.pallas_call(
        _make_main_kernel(training),
        out_shape=tuple(out_shape),
        grid=(B,),
        in_specs=[
            pl.BlockSpec((1, M, C), lambda b: (0, 0, 0)),    # shared learned query
            pl.BlockSpec((1, P, C), lambda b: (b, 0, 0)),    # xt (one group per batch row)
            pl.BlockSpec((1, 1, C), lambda b: (b, 0, 0)),    # cam_embed
            pl.BlockSpec((C, PR), lambda b: (0, 0)),         # centered prototype^T (lane-dense)
            pl.BlockSpec((1, PR), lambda b: (0, 0)),         # per-prototype variance
            pl.BlockSpec((C, C), lambda b: (0, 0)),          # folded, scaled catcher matrix (bf16)
            pl.BlockSpec((C, C), lambda b: (0, 0)),          # folded, scaled deltaor matrix (bf16)
        ],
        out_specs=tuple(out_specs),
        compiler_params=pltpu.CompilerParams(dimension_semantics=("parallel",)),
    )(query_v, xt, cam_embed, pcT, var_p, cat_A, del_A)


# ----------------- f_cor kernel: reuses precomputed gnew, scalar-prefetched chunk index -----------------
def _fcor_kernel(chunk_ref, q_ref, gnew_ref, cam_ref, catA_ref, out_ref):
    del chunk_ref                            # only consumed by the index_maps
    g3 = gnew_ref[0]                         # (NI, PATCH, C) bf16 — precomputed group self-relation
    cam = cam_ref[0]                         # (NI, C) f32
    ni, p_, c = g3.shape
    relgin = (g3 + cam[:, None, :].astype(MXU_DTYPE)).reshape(ni * p_, c)
    gflat = g3.reshape(ni * p_, c)
    xA = _mm(q_ref[0], catA_ref[...])                                  # (M, C), already * SCALE
    s = _mm_t(xA, relgin)                                              # (M, NI*PATCH)
    prob = _softmax_last(s).astype(MXU_DTYPE)
    out_ref[0] = jnp.dot(prob, gflat, preferred_element_type=jnp.float32)


def fcor_forward(chunk_ids, f_pro, gnew4, cam4, cat_A):
    """chunk_ids: (B,) int32; f_pro: (B,M,C); gnew4: (B//NI,NI,PATCH,C) bf16; cam4: (B//NI,NI,C)."""
    B, M, C = f_pro.shape
    _, NI, P, _ = gnew4.shape
    grid_spec = pltpu.PrefetchScalarGridSpec(
        num_scalar_prefetch=1,
        grid=(B,),
        in_specs=[
            pl.BlockSpec((1, M, C), lambda j, chunk: (j, 0, 0)),
            pl.BlockSpec((1, NI, P, C), lambda j, chunk: (chunk[j], 0, 0, 0)),
            pl.BlockSpec((1, NI, C), lambda j, chunk: (chunk[j], 0, 0)),
            pl.BlockSpec((C, C), lambda j, chunk: (0, 0)),
        ],
        out_specs=pl.BlockSpec((1, M, C), lambda j, chunk: (j, 0, 0)),
    )
    return pl.pallas_call(
        _fcor_kernel,
        out_shape=jax.ShapeDtypeStruct((B, M, C), jnp.float32),
        grid_spec=grid_spec,
        compiler_params=pltpu.CompilerParams(dimension_semantics=("parallel",)),
    )(chunk_ids, f_pro, gnew4, cam4, cat_A)


# ----------------- full module forward -----------------
def circle_fine_grained_extractor_forward(params, x, cam_ids, sub, training=True):
    """x: (B, C, H, W) NCHW feature map; cam_ids: (B,) int in [1,6]; sub: (B,) bool."""
    B, C, H, W = x.shape
    assert H * W == PATCH, "catcher.patch_num == 288 requires H*W == 288"
    xt = x.reshape(B, C, H * W).transpose(0, 2, 1)            # (B, 288, C)
    cam_embed = params["cam_embed"][cam_ids - 1]              # (B, 1, C)

    # Fold the bias-free q/g linears of each attention into one C x C matrix,
    # pre-scale by SCALE and pre-cast to bf16 (score is linear in the folded matrix).
    cat_A = ((params["cat_wqT"] @ params["cat_wgT"].T) * SCALE).astype(MXU_DTYPE)
    del_A = ((params["del_wqT"] @ params["del_wgT"].T) * SCALE).astype(MXU_DTYPE)

    # Hoisted prototype-LayerNorm algebra (shared across all batch rows), lane-dense.
    proto = params["prototype"][0]                            # (PROTO, C)
    pc = proto - jnp.mean(proto, axis=-1, keepdims=True)      # centered prototype
    pcT = jnp.transpose(pc)                                   # (C, PROTO)
    var_p = jnp.mean(pc * pc, axis=-1)[None, :]               # (1, PROTO) biased variance

    outs = main_forward(params["query_v"], xt, cam_embed, pcT, var_p,
                        cat_A, del_A, training)
    f_rec = f_cor = None
    if training:
        f_rel, f_pro_raw, f_rec, gnew = outs
    else:
        f_rel, f_pro_raw = outs

    if training:
        NI = NUM_INSTANCE
        assert B % NI == 0
        # torch.cat([a[~sub], a[sub]], 0) == stable permutation (False rows first).
        # The NI-tiled x/cam row b (built BEFORE the permutation) holds all NI
        # instances of original chunk b//NI, so permuted row j needs chunk perm[j]//NI,
        # whose group self-relations (gnew) were already computed by the main kernel.
        perm = jnp.argsort(sub.astype(jnp.int32), stable=True)
        chunk_ids = (perm // NI).astype(jnp.int32)
        gnew4 = gnew.reshape(B // NI, NI, PATCH, C)
        cam4 = cam_embed.reshape(B // NI, NI, C)
        f_cor = fcor_forward(chunk_ids, f_pro_raw, gnew4, cam4, cat_A)

    w = jax.nn.softmax(params["weights"], axis=1)             # (1, q_num, 1)
    f_pro = w * f_pro_raw                                     # applied AFTER f_rec/f_cor
    return f_rel, f_pro, f_rec, f_cor


if __name__ == "__main__":
    dim, q_num, rank = 32, 8, 0
    B, H, W = 4, 16, 18                       # H*W == 288 == catcher.patch_num
    key = jax.random.PRNGKey(0)
    ks = jax.random.split(key, 8)

    def trunc_normal(k, shape, std=0.02):
        return std * jax.random.truncated_normal(k, -2.0, 2.0, shape, jnp.float32)

    bound = 1.0 / jnp.sqrt(jnp.float32(dim))
    params = dict(
        query_v=trunc_normal(ks[0], (1, q_num, dim)),
        prototype=trunc_normal(ks[1], (1, 2048, dim)),
        weights=jnp.ones((1, q_num, 1), jnp.float32),
        cam_embed=trunc_normal(ks[2], (6, 1, dim)),
        # nn.Linear(dim, dim, bias=False) weights; stored transposed (x @ W^T)
        cat_wqT=jax.random.uniform(ks[3], (dim, dim), jnp.float32, -bound, bound).T,
        cat_wgT=jax.random.uniform(ks[4], (dim, dim), jnp.float32, -bound, bound).T,
        del_wqT=jax.random.uniform(ks[5], (dim, dim), jnp.float32, -bound, bound).T,
        del_wgT=jax.random.uniform(ks[6], (dim, dim), jnp.float32, -bound, bound).T,
    )
    # TODO(synk): catcher.pos_embed (1, 288, 2048), catcher.dropout, query_i and
    # rank are defined in __init__ but never used on this forward path (cam_embed
    # is always provided, dropout is never applied), so they are omitted.

    x = jax.random.normal(jax.random.fold_in(key, 7), (B, dim, H, W), jnp.float32)
    cam_ids = jnp.array([1, 2, 3, 4], dtype=jnp.int32)
    sub = jnp.array([True, False, False, True])

    f_rel, f_pro, f_rec, f_cor = circle_fine_grained_extractor_forward(
        params, x, cam_ids, sub, training=True)
    jax.block_until_ready((f_rel, f_pro, f_rec, f_cor))

    assert f_rel.shape == (B, q_num, dim)
    assert f_pro.shape == (B, q_num, dim)
    assert f_rec.shape == (B, q_num, dim)
    assert f_cor.shape == (B, q_num, dim)
    print("KERNEL_OK")
</pallas_src>

<mosaic_0001>
module attributes {stable_mosaic.version = 11 : i64} {
  func.func @kernel(%arg0: i32, %arg1: memref<1x8x32xf32, #tpu.memory_space<vmem>>, %arg2: memref<1x288x32xf32, #tpu.memory_space<vmem>>, %arg3: memref<1x1x32xf32, #tpu.memory_space<vmem>>, %arg4: memref<32x2048xf32, #tpu.memory_space<vmem>>, %arg5: memref<1x2048xf32, #tpu.memory_space<vmem>>, %arg6: memref<32x32xbf16, #tpu.memory_space<vmem>>, %arg7: memref<32x32xbf16, #tpu.memory_space<vmem>>, %arg8: memref<1x8x32xf32, #tpu.memory_space<vmem>>, %arg9: memref<1x8x32xf32, #tpu.memory_space<vmem>>, %arg10: memref<1x8x32xf32, #tpu.memory_space<vmem>>, %arg11: memref<1x288x32xbf16, #tpu.memory_space<vmem>>) attributes {dimension_semantics = [#tpu.dimension_semantics<parallel>], iteration_bounds = array<i64: 4>, scalar_prefetch = 0 : i64, scratch_operands = 0 : i64, tpu.core_type = #tpu.core_type<tc>, window_params = [{pipeline_mode = #tpu.pipeline_mode<synchronous>, transform_indices = @transform_0, window_bounds = array<i64: 1, 8, 32>}, {transform_indices = @transform_1, window_bounds = array<i64: 1, 288, 32>}, {transform_indices = @transform_2, window_bounds = array<i64: 1, 1, 32>}, {pipeline_mode = #tpu.pipeline_mode<synchronous>, transform_indices = @transform_3, window_bounds = array<i64: 32, 2048>}, {pipeline_mode = #tpu.pipeline_mode<synchronous>, transform_indices = @transform_4, window_bounds = array<i64: 1, 2048>}, {pipeline_mode = #tpu.pipeline_mode<synchronous>, transform_indices = @transform_5, window_bounds = array<i64: 32, 32>}, {pipeline_mode = #tpu.pipeline_mode<synchronous>, transform_indices = @transform_6, window_bounds = array<i64: 32, 32>}, {transform_indices = @transform_7, window_bounds = array<i64: 1, 8, 32>}, {transform_indices = @transform_8, window_bounds = array<i64: 1, 8, 32>}, {transform_indices = @transform_9, window_bounds = array<i64: 1, 8, 32>}, {transform_indices = @transform_10, window_bounds = array<i64: 1, 288, 32>}]} {
    %c0 = arith.constant 0 : index
    %c0_0 = arith.constant 0 : index
    %c0_1 = arith.constant 0 : index
    %0 = vector.load %arg2[%c0, %c0_0, %c0_1] : memref<1x288x32xf32, #tpu.memory_space<vmem>>, vector<1x288x32xf32>
    %1 = vector.shape_cast %0 : vector<1x288x32xf32> to vector<288x32xf32>
    %c0_2 = arith.constant 0 : index
    %c0_3 = arith.constant 0 : index
    %c0_4 = arith.constant 0 : index
    %2 = vector.load %arg3[%c0_2, %c0_3, %c0_4] : memref<1x1x32xf32, #tpu.memory_space<vmem>>, vector<1x1x32xf32>
    %3 = vector.shape_cast %2 : vector<1x1x32xf32> to vector<1x32xf32>
    %c0_5 = arith.constant 0 : index
    %c0_6 = arith.constant 0 : index
    %4 = vector.load %arg6[%c0_5, %c0_6] : memref<32x32xbf16, #tpu.memory_space<vmem>>, vector<32x32xbf16>
    %5 = arith.mulf %1, %1 : vector<288x32xf32>
    %cst = arith.constant dense<0.000000e+00> : vector<288xf32>
    %6 = vector.multi_reduction <add>, %5, %cst [1] : vector<288x32xf32> to vector<288xf32>
    %7 = vector.shape_cast %6 : vector<288xf32> to vector<288x1xf32>
    %8 = math.sqrt %7 : vector<288x1xf32>
    %cst_7 = arith.constant 9.99999996E-13 : f32
    %9 = vector.broadcast %cst_7 : f32 to vector<288x1xf32>
    %10 = arith.maximumf %8, %9 : vector<288x1xf32>
    %11 = vector.broadcast %10 : vector<288x1xf32> to vector<288x32xf32>
    %12 = arith.divf %1, %11 : vector<288x32xf32>
    %13 = arith.truncf %12 : vector<288x32xf32> to vector<288x32xbf16>
    %cst_8 = arith.constant dense<0.000000e+00> : vector<288x288xf32>
    %14 = tpu.matmul %13, %13, %cst_8 {dimension_numbers = #tpu.dot_dimension_numbers<[1], [1], [0], [0], [0, 0, 1, 0], [], []>} : vector<288x32xbf16>, vector<288x32xbf16>, vector<288x288xf32> -> vector<288x288xf32>
    %15 = math.exp %14 : vector<288x288xf32>
    %cst_9 = arith.constant dense<0.000000e+00> : vector<288xf32>
    %16 = vector.multi_reduction <add>, %15, %cst_9 [1] : vector<288x288xf32> to vector<288xf32>
    %17 = vector.shape_cast %16 : vector<288xf32> to vector<288x1xf32>
    %18 = tpu.reciprocal %17 {approx = true} : vector<288x1xf32> -> vector<288x1xf32>
    %19 = arith.truncf %15 : vector<288x288xf32> to vector<288x288xbf16>
    %20 = arith.truncf %1 : vector<288x32xf32> to vector<288x32xbf16>
    %cst_10 = arith.constant dense<0.000000e+00> : vector<288x32xf32>
    %21 = tpu.matmul %19, %20, %cst_10 {dimension_numbers = #tpu.dot_dimension_numbers<[1], [0], [0], [1], [0, 0, 1, 1], [], []>} : vector<288x288xbf16>, vector<288x32xbf16>, vector<288x32xf32> -> vector<288x32xf32>
    %22 = vector.broadcast %18 : vector<288x1xf32> to vector<288x32xf32>
    %23 = arith.mulf %21, %22 : vector<288x32xf32>
    %24 = arith.truncf %23 : vector<288x32xf32> to vector<288x32xbf16>
    %c0_11 = arith.constant 0 : index
    %c0_12 = arith.constant 0 : index
    %c0_13 = arith.constant 0 : index
    %25 = vector.load %arg1[%c0_11, %c0_12, %c0_13] : memref<1x8x32xf32, #tpu.memory_space<vmem>>, vector<1x8x32xf32>
    %26 = vector.shape_cast %25 : vector<1x8x32xf32> to vector<8x32xf32>
    %27 = arith.truncf %26 : vector<8x32xf32> to vector<8x32xbf16>
    %cst_14 = arith.constant dense<0.000000e+00> : vector<8x32xf32>
    %28 = tpu.matmul %27, %4, %cst_14 {dimension_numbers = #tpu.dot_dimension_numbers<[1], [0], [0], [1], [0, 0, 1, 1], [], []>} : vector<8x32xbf16>, vector<32x32xbf16>, vector<8x32xf32> -> vector<8x32xf32>
    %29 = arith.truncf %28 : vector<8x32xf32> to vector<8x32xbf16>
    %cst_15 = arith.constant dense<0.000000e+00> : vector<8x288xf32>
    %30 = tpu.matmul %29, %24, %cst_15 {dimension_numbers = #tpu.dot_dimension_numbers<[1], [1], [0], [0], [0, 0, 1, 0], [], []>} : vector<8x32xbf16>, vector<288x32xbf16>, vector<8x288xf32> -> vector<8x288xf32>
    %31 = vector.broadcast %3 : vector<1x32xf32> to vector<8x32xf32>
    %32 = arith.mulf %28, %31 : vector<8x32xf32>
    %cst_16 = arith.constant dense<0.000000e+00> : vector<8xf32>
    %33 = vector.multi_reduction <add>, %32, %cst_16 [1] : vector<8x32xf32> to vector<8xf32>
    %34 = vector.shape_cast %33 : vector<8xf32> to vector<8x1xf32>
    %35 = vector.broadcast %34 : vector<8x1xf32> to vector<8x288xf32>
    %36 = arith.addf %30, %35 : vector<8x288xf32>
    %cst_17 = arith.constant dense<0xFF800000> : vector<8xf32>
    %37 = vector.multi_reduction <maximumf>, %36, %cst_17 [1] : vector<8x288xf32> to vector<8xf32>
    %38 = vector.shape_cast %37 : vector<8xf32> to vector<8x1xf32>
    %39 = vector.broadcast %38 : vector<8x1xf32> to vector<8x288xf32>
    %40 = arith.subf %36, %39 : vector<8x288xf32>
    %41 = math.exp %40 : vector<8x288xf32>
    %cst_18 = arith.constant dense<0.000000e+00> : vector<8xf32>
    %42 = vector.multi_reduction <add>, %41, %cst_18 [1] : vector<8x288xf32> to vector<8xf32>
    %43 = vector.shape_cast %42 : vector<8xf32> to vector<8x1xf32>
    %44 = tpu.reciprocal %43 {approx = true} : vector<8x1xf32> -> vector<8x1xf32>
    %45 = vector.broadcast %44 : vector<8x1xf32> to vector<8x288xf32>
    %46 = arith.mulf %41, %45 : vector<8x288xf32>
    %47 = arith.truncf %46 : vector<8x288xf32> to vector<8x288xbf16>
    %cst_19 = arith.constant dense<0.000000e+00> : vector<8x32xf32>
    %48 = tpu.matmul %47, %24, %cst_19 {dimension_numbers = #tpu.dot_dimension_numbers<[1], [0], [0], [1], [0, 0, 1, 1], [], []>} : vector<8x288xbf16>, vector<288x32xbf16>, vector<8x32xf32> -> vector<8x32xf32>
    %c0_20 = arith.constant 0 : index
    %c0_21 = arith.constant 0 : index
    %c0_22 = arith.constant 0 : index
    %49 = vector.load %arg8[%c0_20, %c0_21, %c0_22] : memref<1x8x32xf32, #tpu.memory_space<vmem>>, vector<1x8x32xf32>
    %50 = vector.shape_cast %49 : vector<1x8x32xf32> to vector<8x32xf32>
    %51 = vector.shape_cast %48 : vector<8x32xf32> to vector<1x8x32xf32>
    tpu.vector_store %arg8[%c0_20, %c0_21, %c0_22], %51 {strides = array<i32>} : memref<1x8x32xf32, #tpu.memory_space<vmem>>, vector<1x8x32xf32>,
    %c0_23 = arith.constant 0 : index
    %c0_24 = arith.constant 0 : index
    %52 = vector.load %arg4[%c0_23, %c0_24] : memref<32x2048xf32, #tpu.memory_space<vmem>>, vector<32x2048xf32>
    %c0_25 = arith.constant 0 : index
    %c0_26 = arith.constant 0 : index
    %53 = vector.load %arg5[%c0_25, %c0_26] : memref<1x2048xf32, #tpu.memory_space<vmem>>, vector<1x2048xf32>
    %cst_27 = arith.constant dense<0.000000e+00> : vector<32xf32>
    %54 = vector.multi_reduction <add>, %48, %cst_27 [0] : vector<8x32xf32> to vector<32xf32>
    %55 = vector.shape_cast %54 : vector<32xf32> to vector<1x32xf32>
    %cst_28 = arith.constant 8.000000e+00 : f32
    %56 = vector.broadcast %cst_28 : f32 to vector<1x32xf32>
    %57 = arith.divf %55, %56 : vector<1x32xf32>
    %cst_29 = arith.constant dense<0.000000e+00> : vector<1xf32>
    %58 = vector.multi_reduction <add>, %57, %cst_29 [1] : vector<1x32xf32> to vector<1xf32>
    %59 = vector.shape_cast %58 : vector<1xf32> to vector<1x1xf32>
    %cst_30 = arith.constant 3.200000e+01 : f32
    %60 = vector.broadcast %cst_30 : f32 to vector<1x1xf32>
    %61 = arith.divf %59, %60 : vector<1x1xf32>
    %62 = vector.broadcast %61 : vector<1x1xf32> to vector<1x32xf32>
    %63 = arith.subf %57, %62 : vector<1x32xf32>
    %64 = vector.shape_cast %63 : vector<1x32xf32> to vector<1x32xf32>
    %65 = vector.broadcast %64 : vector<1x32xf32> to vector<8x32xf32>
    %cst_31 = arith.constant dense<0.000000e+00> : vector<8x2048xf32>
    %66 = tpu.matmul %65, %52, %cst_31 {dimension_numbers = #tpu.dot_dimension_numbers<[1], [0], [0], [1], [0, 0, 1, 1], [], []>} : vector<8x32xf32>, vector<32x2048xf32>, vector<8x2048xf32> -> vector<8x2048xf32>
    %cst_32 = arith.constant 6.250000e-02 : f32
    %67 = vector.broadcast %cst_32 : f32 to vector<8x2048xf32>
    %68 = arith.mulf %67, %66 : vector<8x2048xf32>
    %69 = vector.broadcast %53 : vector<1x2048xf32> to vector<8x2048xf32>
    %70 = arith.subf %69, %68 : vector<8x2048xf32>
    %71 = arith.mulf %63, %63 : vector<1x32xf32>
    %cst_33 = arith.constant dense<0.000000e+00> : vector<1xf32>
    %72 = vector.multi_reduction <add>, %71, %cst_33 [1] : vector<1x32xf32> to vector<1xf32>
    %73 = vector.shape_cast %72 : vector<1xf32> to vector<1x1xf32>
    %cst_34 = arith.constant 3.200000e+01 : f32
    %74 = vector.broadcast %cst_34 : f32 to vector<1x1xf32>
    %75 = arith.divf %73, %74 : vector<1x1xf32>
    %76 = vector.broadcast %75 : vector<1x1xf32> to vector<8x2048xf32>
    %77 = arith.addf %70, %76 : vector<8x2048xf32>
    %cst_35 = arith.constant 9.99999974E-6 : f32
    %78 = vector.broadcast %cst_35 : f32 to vector<8x2048xf32>
    %79 = arith.addf %77, %78 : vector<8x2048xf32>
    %80 = math.rsqrt %79 : vector<8x2048xf32>
    %81 = arith.truncf %52 : vector<32x2048xf32> to vector<32x2048xbf16>
    %cst_36 = arith.constant dense<0.000000e+00> : vector<8xf32>
    %82 = vector.multi_reduction <add>, %48, %cst_36 [1] : vector<8x32xf32> to vector<8xf32>
    %83 = vector.shape_cast %82 : vector<8xf32> to vector<8x1xf32>
    %cst_37 = arith.constant 3.200000e+01 : f32
    %84 = vector.broadcast %cst_37 : f32 to vector<8x1xf32>
    %85 = arith.divf %83, %84 : vector<8x1xf32>
    %86 = vector.broadcast %85 : vector<8x1xf32> to vector<8x32xf32>
    %87 = arith.subf %48, %86 : vector<8x32xf32>
    %88 = arith.mulf %87, %87 : vector<8x32xf32>
    %cst_38 = arith.constant dense<0.000000e+00> : vector<8xf32>
    %89 = vector.multi_reduction <add>, %88, %cst_38 [1] : vector<8x32xf32> to vector<8xf32>
    %90 = vector.shape_cast %89 : vector<8xf32> to vector<8x1xf32>
    %cst_39 = arith.constant 3.200000e+01 : f32
    %91 = vector.broadcast %cst_39 : f32 to vector<8x1xf32>
    %92 = arith.divf %90, %91 : vector<8x1xf32>
    %cst_40 = arith.constant 9.99999974E-6 : f32
    %93 = vector.broadcast %cst_40 : f32 to vector<8x1xf32>
    %94 = arith.addf %92, %93 : vector<8x1xf32>
    %95 = math.rsqrt %94 : vector<8x1xf32>
    %96 = vector.broadcast %95 : vector<8x1xf32> to vector<8x32xf32>
    %97 = arith.mulf %87, %96 : vector<8x32xf32>
    %c0_41 = arith.constant 0 : index
    %c0_42 = arith.constant 0 : index
    %98 = vector.load %arg7[%c0_41, %c0_42] : memref<32x32xbf16, #tpu.memory_space<vmem>>, vector<32x32xbf16>
    %99 = arith.truncf %97 : vector<8x32xf32> to vector<8x32xbf16>
    %cst_43 = arith.constant dense<0.000000e+00> : vector<8x32xf32>
    %100 = tpu.matmul %99, %98, %cst_43 {dimension_numbers = #tpu.dot_dimension_numbers<[1], [0], [0], [1], [0, 0, 1, 1], [], []>} : vector<8x32xbf16>, vector<32x32xbf16>, vector<8x32xf32> -> vector<8x32xf32>
    %101 = arith.truncf %100 : vector<8x32xf32> to vector<8x32xbf16>
    %cst_44 = arith.constant dense<0.000000e+00> : vector<8x2048xf32>
    %102 = tpu.matmul %101, %81, %cst_44 {dimension_numbers = #tpu.dot_dimension_numbers<[1], [0], [0], [1], [0, 0, 1, 1], [], []>} : vector<8x32xbf16>, vector<32x2048xbf16>, vector<8x2048xf32> -> vector<8x2048xf32>
    %103 = vector.broadcast %63 : vector<1x32xf32> to vector<8x32xf32>
    %104 = arith.mulf %100, %103 : vector<8x32xf32>
    %cst_45 = arith.constant dense<0.000000e+00> : vector<8xf32>
    %105 = vector.multi_reduction <add>, %104, %cst_45 [1] : vector<8x32xf32> to vector<8xf32>
    %106 = vector.shape_cast %105 : vector<8xf32> to vector<8x1xf32>
    %107 = vector.broadcast %106 : vector<8x1xf32> to vector<8x2048xf32>
    %108 = arith.subf %102, %107 : vector<8x2048xf32>
    %109 = arith.mulf %108, %80 : vector<8x2048xf32>
    %cst_46 = arith.constant dense<0xFF800000> : vector<8xf32>
    %110 = vector.multi_reduction <maximumf>, %109, %cst_46 [1] : vector<8x2048xf32> to vector<8xf32>
    %111 = vector.shape_cast %110 : vector<8xf32> to vector<8x1xf32>
    %112 = vector.broadcast %111 : vector<8x1xf32> to vector<8x2048xf32>
    %113 = arith.subf %109, %112 : vector<8x2048xf32>
    %114 = math.exp %113 : vector<8x2048xf32>
    %cst_47 = arith.constant dense<0.000000e+00> : vector<8xf32>
    %115 = vector.multi_reduction <add>, %114, %cst_47 [1] : vector<8x2048xf32> to vector<8xf32>
    %116 = vector.shape_cast %115 : vector<8xf32> to vector<8x1xf32>
    %117 = tpu.reciprocal %116 {approx = true} : vector<8x1xf32> -> vector<8x1xf32>
    %118 = vector.broadcast %117 : vector<8x1xf32> to vector<8x2048xf32>
    %119 = arith.mulf %114, %118 : vector<8x2048xf32>
    %120 = arith.mulf %119, %80 : vector<8x2048xf32>
    %121 = arith.truncf %120 : vector<8x2048xf32> to vector<8x2048xbf16>
    %cst_48 = arith.constant dense<0.000000e+00> : vector<8x32xf32>
    %122 = tpu.matmul %121, %81, %cst_48 {dimension_numbers = #tpu.dot_dimension_numbers<[1], [1], [0], [0], [0, 0, 1, 0], [], []>} : vector<8x2048xbf16>, vector<32x2048xbf16>, vector<8x32xf32> -> vector<8x32xf32>
    %123 = arith.addf %48, %122 : vector<8x32xf32>
    %cst_49 = arith.constant dense<0.000000e+00> : vector<8xf32>
    %124 = vector.multi_reduction <add>, %120, %cst_49 [1] : vector<8x2048xf32> to vector<8xf32>
    %125 = vector.shape_cast %124 : vector<8xf32> to vector<8x1xf32>
    %126 = vector.broadcast %125 : vector<8x1xf32> to vector<8x32xf32>
    %127 = vector.broadcast %63 : vector<1x32xf32> to vector<8x32xf32>
    %128 = arith.mulf %126, %127 : vector<8x32xf32>
    %129 = arith.subf %123, %128 : vector<8x32xf32>
    %c0_50 = arith.constant 0 : index
    %c0_51 = arith.constant 0 : index
    %c0_52 = arith.constant 0 : index
    %130 = vector.load %arg9[%c0_50, %c0_51, %c0_52] : memref<1x8x32xf32, #tpu.memory_space<vmem>>, vector<1x8x32xf32>
    %131 = vector.shape_cast %130 : vector<1x8x32xf32> to vector<8x32xf32>
    %132 = vector.shape_cast %129 : vector<8x32xf32> to vector<1x8x32xf32>
    tpu.vector_store %arg9[%c0_50, %c0_51, %c0_52], %132 {strides = array<i32>} : memref<1x8x32xf32, #tpu.memory_space<vmem>>, vector<1x8x32xf32>,
    %133 = arith.truncf %129 : vector<8x32xf32> to vector<8x32xbf16>
    %cst_53 = arith.constant dense<0.000000e+00> : vector<8x32xf32>
    %134 = tpu.matmul %133, %4, %cst_53 {dimension_numbers = #tpu.dot_dimension_numbers<[1], [0], [0], [1], [0, 0, 1, 1], [], []>} : vector<8x32xbf16>, vector<32x32xbf16>, vector<8x32xf32> -> vector<8x32xf32>
    %135 = arith.truncf %134 : vector<8x32xf32> to vector<8x32xbf16>
    %cst_54 = arith.constant dense<0.000000e+00> : vector<8x288xf32>
    %136 = tpu.matmul %135, %24, %cst_54 {dimension_numbers = #tpu.dot_dimension_numbers<[1], [1], [0], [0], [0, 0, 1, 0], [], []>} : vector<8x32xbf16>, vector<288x32xbf16>, vector<8x288xf32> -> vector<8x288xf32>
    %137 = vector.broadcast %3 : vector<1x32xf32> to vector<8x32xf32>
    %138 = arith.mulf %134, %137 : vector<8x32xf32>
    %cst_55 = arith.constant dense<0.000000e+00> : vector<8xf32>
    %139 = vector.multi_reduction <add>, %138, %cst_55 [1] : vector<8x32xf32> to vector<8xf32>
    %140 = vector.shape_cast %139 : vector<8xf32> to vector<8x1xf32>
    %141 = vector.broadcast %140 : vector<8x1xf32> to vector<8x288xf32>
    %142 = arith.addf %136, %141 : vector<8x288xf32>
    %cst_56 = arith.constant dense<0xFF800000> : vector<8xf32>
    %143 = vector.multi_reduction <maximumf>, %142, %cst_56 [1] : vector<8x288xf32> to vector<8xf32>
    %144 = vector.shape_cast %143 : vector<8xf32> to vector<8x1xf32>
    %145 = vector.broadcast %144 : vector<8x1xf32> to vector<8x288xf32>
    %146 = arith.subf %142, %145 : vector<8x288xf32>
    %147 = math.exp %146 : vector<8x288xf32>
    %cst_57 = arith.constant dense<0.000000e+00> : vector<8xf32>
    %148 = vector.multi_reduction <add>, %147, %cst_57 [1] : vector<8x288xf32> to vector<8xf32>
    %149 = vector.shape_cast %148 : vector<8xf32> to vector<8x1xf32>
    %150 = tpu.reciprocal %149 {approx = true} : vector<8x1xf32> -> vector<8x1xf32>
    %151 = vector.broadcast %150 : vector<8x1xf32> to vector<8x288xf32>
    %152 = arith.mulf %147, %151 : vector<8x288xf32>
    %153 = arith.truncf %152 : vector<8x288xf32> to vector<8x288xbf16>
    %cst_58 = arith.constant dense<0.000000e+00> : vector<8x32xf32>
    %154 = tpu.matmul %153, %24, %cst_58 {dimension_numbers = #tpu.dot_dimension_numbers<[1], [0], [0], [1], [0, 0, 1, 1], [], []>} : vector<8x288xbf16>, vector<288x32xbf16>, vector<8x32xf32> -> vector<8x32xf32>
    %c0_59 = arith.constant 0 : index
    %c0_60 = arith.constant 0 : index
    %c0_61 = arith.constant 0 : index
    %155 = vector.load %arg10[%c0_59, %c0_60, %c0_61] : memref<1x8x32xf32, #tpu.memory_space<vmem>>, vector<1x8x32xf32>
    %156 = vector.shape_cast %155 : vector<1x8x32xf32> to vector<8x32xf32>
    %157 = vector.shape_cast %154 : vector<8x32xf32> to vector<1x8x32xf32>
    tpu.vector_store %arg10[%c0_59, %c0_60, %c0_61], %157 {strides = array<i32>} : memref<1x8x32xf32, #tpu.memory_space<vmem>>, vector<1x8x32xf32>,
    %c0_62 = arith.constant 0 : index
    %c0_63 = arith.constant 0 : index
    %c0_64 = arith.constant 0 : index
    %158 = vector.load %arg11[%c0_62, %c0_63, %c0_64] : memref<1x288x32xbf16, #tpu.memory_space<vmem>>, vector<1x288x32xbf16>
    %159 = vector.shape_cast %158 : vector<1x288x32xbf16> to vector<288x32xbf16>
    %160 = vector.shape_cast %24 : vector<288x32xbf16> to vector<1x288x32xbf16>
    tpu.vector_store %arg11[%c0_62, %c0_63, %c0_64], %160 {strides = array<i32>} : memref<1x288x32xbf16, #tpu.memory_space<vmem>>, vector<1x288x32xbf16>,
    return
  }
  func.func @transform_0(%arg0: i32) -> (i32, i32, i32) {
    %c0_i32 = arith.constant 0 : i32
    %c0_i32_0 = arith.constant 0 : i32
    %c0_i32_1 = arith.constant 0 : i32
    %c0_i32_2 = arith.constant 0 : i32
    return %c0_i32, %c0_i32_0, %c0_i32_1 : i32, i32, i32
  }
  func.func @transform_1(%arg0: i32) -> (i32, i32, i32) {
    %c0_i32 = arith.constant 0 : i32
    %c0_i32_0 = arith.constant 0 : i32
    %c0_i32_1 = arith.constant 0 : i32
    return %arg0, %c0_i32, %c0_i32_0 : i32, i32, i32
  }
  func.func @transform_2(%arg0: i32) -> (i32, i32, i32) {
    %c0_i32 = arith.constant 0 : i32
    %c0_i32_0 = arith.constant 0 : i32
    %c0_i32_1 = arith.constant 0 : i32
    return %arg0, %c0_i32, %c0_i32_0 : i32, i32, i32
  }
  func.func @transform_3(%arg0: i32) -> (i32, i32) {
    %c0_i32 = arith.constant 0 : i32
    %c0_i32_0 = arith.constant 0 : i32
    %c0_i32_1 = arith.constant 0 : i32
    return %c0_i32, %c0_i32_0 : i32, i32
  }
  func.func @transform_4(%arg0: i32) -> (i32, i32) {
    %c0_i32 = arith.constant 0 : i32
    %c0_i32_0 = arith.constant 0 : i32
    %c0_i32_1 = arith.constant 0 : i32
    return %c0_i32, %c0_i32_0 : i32, i32
  }
  func.func @transform_5(%arg0: i32) -> (i32, i32) {
    %c0_i32 = arith.constant 0 : i32
    %c0_i32_0 = arith.constant 0 : i32
    %c0_i32_1 = arith.constant 0 : i32
    return %c0_i32, %c0_i32_0 : i32, i32
  }
  func.func @transform_6(%arg0: i32) -> (i32, i32) {
    %c0_i32 = arith.constant 0 : i32
    %c0_i32_0 = arith.constant 0 : i32
    %c0_i32_1 = arith.constant 0 : i32
    return %c0_i32, %c0_i32_0 : i32, i32
  }
  func.func @transform_7(%arg0: i32) -> (i32, i32, i32) {
    %c0_i32 = arith.constant 0 : i32
    %c0_i32_0 = arith.constant 0 : i32
    %c0_i32_1 = arith.constant 0 : i32
    return %arg0, %c0_i32, %c0_i32_0 : i32, i32, i32
  }
  func.func @transform_8(%arg0: i32) -> (i32, i32, i32) {
    %c0_i32 = arith.constant 0 : i32
    %c0_i32_0 = arith.constant 0 : i32
    %c0_i32_1 = arith.constant 0 : i32
    return %arg0, %c0_i32, %c0_i32_0 : i32, i32, i32
  }
  func.func @transform_9(%arg0: i32) -> (i32, i32, i32) {
    %c0_i32 = arith.constant 0 : i32
    %c0_i32_0 = arith.constant 0 : i32
    %c0_i32_1 = arith.constant 0 : i32
    return %arg0, %c0_i32, %c0_i32_0 : i32, i32, i32
  }
  func.func @transform_10(%arg0: i32) -> (i32, i32, i32) {
    %c0_i32 = arith.constant 0 : i32
    %c0_i32_0 = arith.constant 0 : i32
    %c0_i32_1 = arith.constant 0 : i32
    return %arg0, %c0_i32, %c0_i32_0 : i32, i32, i32
  }
}

</mosaic_0001>

<llo_original>
// kernel: tpu_custom_call.1
$region0: #{tpu_custom_call.1}
  #allocation0 [shape = 'u32[]', space=smem, size = 0x4, offset = 0x4, fixed_abs, tag = 'smem constant byte address 0x4 - core index']
  #allocation1 [shape = 'u32[72,128]{1,0:T(1,128)}', space=vmem, size = 0x9000, scoped, tag = 'internal scratch']
  %s0 = inlined_call_operand.vmem [shape: f32[1,8,32], index: 0, kind: input, shape index: {}]
  %s1 = inlined_call_operand.vmem [shape: f32[4,288,32], index: 1, kind: input, shape index: {}]
  %s2 = inlined_call_operand.vmem [shape: f32[4,1,32], index: 2, kind: input, shape index: {}]
  %s3 = inlined_call_operand.vmem [shape: f32[32,2048], index: 3, kind: input, shape index: {}]
  %s4 = inlined_call_operand.vmem [shape: f32[1,2048], index: 4, kind: input, shape index: {}]
  %s5 = inlined_call_operand.vmem [shape: bf16[32,32], index: 5, kind: input, shape index: {}]
  %s6 = inlined_call_operand.vmem [shape: bf16[32,32], index: 6, kind: input, shape index: {}]
  %s7 = inlined_call_operand.hbm [shape: f32[4,8,32], index: 7, kind: output, shape index: {0}]
  %s8 = inlined_call_operand.hbm [shape: f32[4,8,32], index: 8, kind: output, shape index: {1}]
  %s9 = inlined_call_operand.hbm [shape: f32[4,8,32], index: 9, kind: output, shape index: {2}]
  %s10 = inlined_call_operand.vmem [shape: bf16[4,288,32], index: 10, kind: output, shape index: {3}]
  %11 = xla_tuple %s7, %s8, %s9, %s10
  %s12 = sld [smem:[#allocation0]]
  $region85: #{tpu_custom_call.1} parent=0
    _
  %s14 = ssub.s32 1, %s12
  %s15 = scalar_select 0, %s14, %s12
  $region1: #{tpu_custom_call.1} parent=0
    #allocation2 [shape = 'u8[8192]{0}', space=vmem, size = 0x2000, scoped, tag = 'output window, operand 0']
    #allocation3 [shape = 's32[2]{0}', space=sflag, size = 0x8, scoped, tag = 'scoped memory for tpu_custom_call.1']
    #allocation4 [shape = 'u8[8192]{0}', space=vmem, size = 0x2000, scoped, tag = 'output window, operand 1']
    #allocation5 [shape = 's32[2]{0}', space=sflag, size = 0x8, scoped, tag = 'scoped memory for tpu_custom_call.1']
    #allocation6 [shape = 'u8[8192]{0}', space=vmem, size = 0x2000, scoped, tag = 'output window, operand 2']
    %16 = vsyncpa [#allocation3], 0
    %s17 = scalar_lea.sflag [#allocation3], 1
    %18 = vsyncpa %s17, 0
    %19 = vsyncpa [#allocation5], 0
    %s20 = scalar_lea.sflag [#allocation5], 1
    %21 = vsyncpa %s20, 0
    loop: start=0, step=1, limit=6
    $region2: #{tpu_custom_call.1} parent=1 // loop_pre_header
      _
    $region3: #{tpu_custom_call.1} parent=1 // loop_header
      %s23 = sphi 0, %s27
      %p24 = scmp.ge.s32.totalorder %s23, 6
      %s31 = sphi 0, %s31
      %s33 = sphi 0, %s31
      %s34 = sphi 0, %s33
      %s48 = sphi 0, %s34
      %s54 = sphi 0, %s56
      %s57 = sphi 0, %s54
      %s58 = sphi 0, %s57
      %s74 = sphi 0, %s58
      %s80 = sphi 0, %s82
      %s83 = sphi 0, %s80
      %s84 = sphi 0, %s83
      %s100 = sphi 0, %s84
      %s104 = sphi 0, %s104
      %s106 = sphi 0, %s104
      %s107 = sphi 0, %s106
      %s121 = sphi 0, %s107
      %s125 = sphi 0, %s125
      %s127 = sphi 0, %s125
      %s128 = sphi 0, %s127
      %s142 = sphi 0, %s128
      %s146 = sphi 0, %s146
      %s148 = sphi 0, %s146
      %s149 = sphi 0, %s148
      %s163 = sphi 0, %s149
      %s167 = sphi 0, %s167
      %s169 = sphi 0, %s167
      %s170 = sphi 0, %s169
      %s184 = sphi 0, %s170
      %s190 = sphi 0, %s192
      %s193 = sphi 0, %s190
      %s194 = sphi 0, %s193
      %s210 = sphi 0, %s194
      %s216 = sphi 0, %s218
      %s219 = sphi 0, %s216
      %s220 = sphi 0, %s219
      %s236 = sphi 0, %s220
      %s242 = sphi 0, %s244
      %s245 = sphi 0, %s242
      %s246 = sphi 0, %s245
      %s262 = sphi 0, %s246
      %s268 = sphi 0, %s270
      %s271 = sphi 0, %s268
      %s272 = sphi 0, %s271
      %s288 = sphi 0, %s272
    $region4: #{tpu_custom_call.1} parent=1 // loop_header_branch
      %26 = sbr.rel (%p24) target = $region8
    $region5: #{tpu_custom_call.1} parent=1 // loop_body
      %s28 = ssub.s32 %s23, 1
      %s29 = ssub.s32 %s23, 2
      %s30 = sadd.s32 %s23, 1
      %s32 = sadd.s32 %s31, 1
      %p35 = scmp.eq.s32.totalorder %s23, 3
      %p36 = scmp.ne.s32.totalorder %s31, %s33
      %p37 = scmp.eq.s32.totalorder %s23, 0
      %p38 = por %p36, %p37
      %p39 = scmp.ne.s32.totalorder %s31, %s33
      %p40 = scmp.eq.s32.totalorder %s28, 3
      %p41 = por %p39, %p40
      %p42 = scmp.ne.s32.totalorder %s33, %s34
      %p43 = scmp.eq.s32.totalorder %s28, 0
      %p44 = por %p42, %p43
      %p45 = scmp.ne.s32.totalorder %s33, %s34
      %p46 = scmp.eq.s32.totalorder %s29, 3
      %p47 = por %p45, %p46
      %p49 = scmp.ne.s32.totalorder %s34, %s48
      %p50 = scmp.eq.s32.totalorder %s29, 0
      %p51 = por %p49, %p50
      %s52 = ssub.s32 %s23, %s30
      %p53 = scmp.eq.s32.totalorder %s52, 0
      %s55 = sadd.s32 %s54, 1
      %s56 = scalar_select %p53, %s54, %s55
      %p59 = pneg %p53
      %p60 = scmp.eq.s32.totalorder %s23, 3
      %p61 = por %p59, %p60
      %p62 = scmp.ne.s32.totalorder %s54, %s57
      %p63 = scmp.eq.s32.totalorder %s23, 0
      %p64 = por %p62, %p63
      %p65 = scmp.ne.s32.totalorder %s54, %s57
      %p66 = scmp.eq.s32.totalorder %s28, 3
      %p67 = por %p65, %p66
      %p68 = scmp.ne.s32.totalorder %s57, %s58
      %p69 = scmp.eq.s32.totalorder %s28, 0
      %p70 = por %p68, %p69
      %p71 = scmp.ne.s32.totalorder %s57, %s58
      %p72 = scmp.eq.s32.totalorder %s29, 3
      %p73 = por %p71, %p72
      %p75 = scmp.ne.s32.totalorder %s58, %s74
      %p76 = scmp.eq.s32.totalorder %s29, 0
      %p77 = por %p75, %p76
      %s78 = ssub.s32 %s23, %s30
      %p79 = scmp.eq.s32.totalorder %s78, 0
      %s81 = sadd.s32 %s80, 1
      %s82 = scalar_select %p79, %s80, %s81
      %p85 = pneg %p79
      %p86 = scmp.eq.s32.totalorder %s23, 3
      %p87 = por %p85, %p86
      %p88 = scmp.ne.s32.totalorder %s80, %s83
      %p89 = scmp.eq.s32.totalorder %s23, 0
      %p90 = por %p88, %p89
      %p91 = scmp.ne.s32.totalorder %s80, %s83
      %p92 = scmp.eq.s32.totalorder %s28, 3
      %p93 = por %p91, %p92
      %p94 = scmp.ne.s32.totalorder %s83, %s84
      %p95 = scmp.eq.s32.totalorder %s28, 0
      %p96 = por %p94, %p95
      %p97 = scmp.ne.s32.totalorder %s83, %s84
      %p98 = scmp.eq.s32.totalorder %s29, 3
      %p99 = por %p97, %p98
      %p101 = scmp.ne.s32.totalorder %s84, %s100
      %p102 = scmp.eq.s32.totalorder %s29, 0
      %p103 = por %p101, %p102
      %s105 = sadd.s32 %s104, 1
      %p108 = scmp.eq.s32.totalorder %s23, 3
      %p109 = scmp.ne.s32.totalorder %s104, %s106
      %p110 = scmp.eq.s32.totalorder %s23, 0
      %p111 = por %p109, %p110
      %p112 = scmp.ne.s32.totalorder %s104, %s106
      %p113 = scmp.eq.s32.totalorder %s28, 3
      %p114 = por %p112, %p113
      %p115 = scmp.ne.s32.totalorder %s106, %s107
      %p116 = scmp.eq.s32.totalorder %s28, 0
      %p117 = por %p115, %p116
      %p118 = scmp.ne.s32.totalorder %s106, %s107
      %p119 = scmp.eq.s32.totalorder %s29, 3
      %p120 = por %p118, %p119
      %p122 = scmp.ne.s32.totalorder %s107, %s121
      %p123 = scmp.eq.s32.totalorder %s29, 0
      %p124 = por %p122, %p123
      %s126 = sadd.s32 %s125, 1
      %p129 = scmp.eq.s32.totalorder %s23, 3
      %p130 = scmp.ne.s32.totalorder %s125, %s127
      %p131 = scmp.eq.s32.totalorder %s23, 0
      %p132 = por %p130, %p131
      %p133 = scmp.ne.s32.totalorder %s125, %s127
      %p134 = scmp.eq.s32.totalorder %s28, 3
      %p135 = por %p133, %p134
      %p136 = scmp.ne.s32.totalorder %s127, %s128
      %p137 = scmp.eq.s32.totalorder %s28, 0
      %p138 = por %p136, %p137
      %p139 = scmp.ne.s32.totalorder %s127, %s128
      %p140 = scmp.eq.s32.totalorder %s29, 3
      %p141 = por %p139, %p140
      %p143 = scmp.ne.s32.totalorder %s128, %s142
      %p144 = scmp.eq.s32.totalorder %s29, 0
      %p145 = por %p143, %p144
      %s147 = sadd.s32 %s146, 1
      %p150 = scmp.eq.s32.totalorder %s23, 3
      %p151 = scmp.ne.s32.totalorder %s146, %s148
      %p152 = scmp.eq.s32.totalorder %s23, 0
      %p153 = por %p151, %p152
      %p154 = scmp.ne.s32.totalorder %s146, %s148
      %p155 = scmp.eq.s32.totalorder %s28, 3
      %p156 = por %p154, %p155
      %p157 = scmp.ne.s32.totalorder %s148, %s149
      %p158 = scmp.eq.s32.totalorder %s28, 0
      %p159 = por %p157, %p158
      %p160 = scmp.ne.s32.totalorder %s148, %s149
      %p161 = scmp.eq.s32.totalorder %s29, 3
      %p162 = por %p160, %p161
      %p164 = scmp.ne.s32.totalorder %s149, %s163
      %p165 = scmp.eq.s32.totalorder %s29, 0
      %p166 = por %p164, %p165
      %s168 = sadd.s32 %s167, 1
      %p171 = scmp.eq.s32.totalorder %s23, 3
      %p172 = scmp.ne.s32.totalorder %s167, %s169
      %p173 = scmp.eq.s32.totalorder %s23, 0
      %p174 = por %p172, %p173
      %p175 = scmp.ne.s32.totalorder %s167, %s169
      %p176 = scmp.eq.s32.totalorder %s28, 3
      %p177 = por %p175, %p176
      %p178 = scmp.ne.s32.totalorder %s169, %s170
      %p179 = scmp.eq.s32.totalorder %s28, 0
      %p180 = por %p178, %p179
      %p181 = scmp.ne.s32.totalorder %s169, %s170
      %p182 = scmp.eq.s32.totalorder %s29, 3
      %p183 = por %p181, %p182
      %p185 = scmp.ne.s32.totalorder %s170, %s184
      %p186 = scmp.eq.s32.totalorder %s29, 0
      %p187 = por %p185, %p186
      %s188 = ssub.s32 %s23, %s30
      %p189 = scmp.eq.s32.totalorder %s188, 0
      %s191 = sadd.s32 %s190, 1
      %s192 = scalar_select %p189, %s190, %s191
      %p195 = pneg %p189
      %p196 = scmp.eq.s32.totalorder %s23, 3
      %p197 = por %p195, %p196
      %p198 = scmp.ne.s32.totalorder %s190, %s193
      %p199 = scmp.eq.s32.totalorder %s23, 0
      %p200 = por %p198, %p199
      %p201 = scmp.ne.s32.totalorder %s190, %s193
      %p202 = scmp.eq.s32.totalorder %s28, 3
      %p203 = por %p201, %p202
      %p204 = scmp.ne.s32.totalorder %s193, %s194
      %p205 = scmp.eq.s32.totalorder %s28, 0
      %p206 = por %p204, %p205
      %p207 = scmp.ne.s32.totalorder %s193, %s194
      %p208 = scmp.eq.s32.totalorder %s29, 3
      %p209 = por %p207, %p208
      %p211 = scmp.ne.s32.totalorder %s194, %s210
      %p212 = scmp.eq.s32.totalorder %s29, 0
      %p213 = por %p211, %p212
      %s214 = ssub.s32 %s23, %s30
      %p215 = scmp.eq.s32.totalorder %s214, 0
      %s217 = sadd.s32 %s216, 1
      %s218 = scalar_select %p215, %s216, %s217
      %p221 = pneg %p215
      %p222 = scmp.eq.s32.totalorder %s23, 3
      %p223 = por %p221, %p222
      %p224 = scmp.ne.s32.totalorder %s216, %s219
      %p225 = scmp.eq.s32.totalorder %s23, 0
      %p226 = por %p224, %p225
      %p227 = scmp.ne.s32.totalorder %s216, %s219
      %p228 = scmp.eq.s32.totalorder %s28, 3
      %p229 = por %p227, %p228
      %p230 = scmp.ne.s32.totalorder %s219, %s220
      %p231 = scmp.eq.s32.totalorder %s28, 0
      %p232 = por %p230, %p231
      %p233 = scmp.ne.s32.totalorder %s219, %s220
      %p234 = scmp.eq.s32.totalorder %s29, 3
      %p235 = por %p233, %p234
      %p237 = scmp.ne.s32.totalorder %s220, %s236
      %p238 = scmp.eq.s32.totalorder %s29, 0
      %p239 = por %p237, %p238
      %s240 = ssub.s32 %s23, %s30
      %p241 = scmp.eq.s32.totalorder %s240, 0
      %s243 = sadd.s32 %s242, 1
      %s244 = scalar_select %p241, %s242, %s243
      %p247 = pneg %p241
      %p248 = scmp.eq.s32.totalorder %s23, 3
      %p249 = por %p247, %p248
      %p250 = scmp.ne.s32.totalorder %s242, %s245
      %p251 = scmp.eq.s32.totalorder %s23, 0
      %p252 = por %p250, %p251
      %p253 = scmp.ne.s32.totalorder %s242, %s245
      %p254 = scmp.eq.s32.totalorder %s28, 3
      %p255 = por %p253, %p254
      %p256 = scmp.ne.s32.totalorder %s245, %s246
      %p257 = scmp.eq.s32.totalorder %s28, 0
      %p258 = por %p256, %p257
      %p259 = scmp.ne.s32.totalorder %s245, %s246
      %p260 = scmp.eq.s32.totalorder %s29, 3
      %p261 = por %p259, %p260
      %p263 = scmp.ne.s32.totalorder %s246, %s262
      %p264 = scmp.eq.s32.totalorder %s29, 0
      %p265 = por %p263, %p264
      %s266 = ssub.s32 %s23, %s30
      %p267 = scmp.eq.s32.totalorder %s266, 0
      %s269 = sadd.s32 %s268, 1
      %s270 = scalar_select %p267, %s268, %s269
      %p273 = pneg %p267
      %p274 = scmp.eq.s32.totalorder %s23, 3
      %p275 = por %p273, %p274
      %p276 = scmp.ne.s32.totalorder %s268, %s271
      %p277 = scmp.eq.s32.totalorder %s23, 0
      %p278 = por %p276, %p277
      %p279 = scmp.ne.s32.totalorder %s268, %s271
      %p280 = scmp.eq.s32.totalorder %s28, 3
      %p281 = por %p279, %p280
      %p282 = scmp.ne.s32.totalorder %s271, %s272
      %p283 = scmp.eq.s32.totalorder %s28, 0
      %p284 = por %p282, %p283
      %p285 = scmp.ne.s32.totalorder %s271, %s272
      %p286 = scmp.eq.s32.totalorder %s29, 3
      %p287 = por %p285, %p286
      %p289 = scmp.ne.s32.totalorder %s272, %s288
      %p290 = scmp.eq.s32.totalorder %s29, 0
      %p291 = por %p289, %p290
      %p292 = scmp.le.s32.totalorder 1, %s23
      %p293 = scmp.lt.s32.totalorder %s23, 5
      %p294 = pnand %p292, %p293
      %p295 = pneg %p294
      // Predicated region
      $region9: #{tpu_custom_call.1} parent=5 // pred_check
        _
      $region10: #{tpu_custom_call.1} parent=5 // pred_check_branch
        %297 = sbr.rel (%p294) target = $region12
      $region11: #{tpu_custom_call.1} parent=5 // pred_region
        %s298 = ssub.s32 %s23, 1
        // Predicated region
        $region13: #{tpu_custom_call.1} parent=11 // pred_check
          %p299 = pneg %p44
        $region14: #{tpu_custom_call.1} parent=11 // pred_check_branch
          %301 = sbr.rel (%p299) target = $region16
        $region15: #{tpu_custom_call.1} parent=11 // pred_region
          _
        $region16: #{tpu_custom_call.1} parent=11 // pred_fallthru
          _
        // Predicated region
        $region17: #{tpu_custom_call.1} parent=11 // pred_check
          %p302 = pneg %p117
        $region18: #{tpu_custom_call.1} parent=11 // pred_check_branch
          %304 = sbr.rel (%p302) target = $region20
        $region19: #{tpu_custom_call.1} parent=11 // pred_region
          _
        $region20: #{tpu_custom_call.1} parent=11 // pred_fallthru
          _
        // Predicated region
        $region21: #{tpu_custom_call.1} parent=11 // pred_check
          %p305 = pneg %p138
        $region22: #{tpu_custom_call.1} parent=11 // pred_check_branch
          %307 = sbr.rel (%p305) target = $region24
        $region23: #{tpu_custom_call.1} parent=11 // pred_region
          _
        $region24: #{tpu_custom_call.1} parent=11 // pred_fallthru
          _
        // Predicated region
        $region25: #{tpu_custom_call.1} parent=11 // pred_check
          %p308 = pneg %p159
        $region26: #{tpu_custom_call.1} parent=11 // pred_check_branch
          %310 = sbr.rel (%p308) target = $region28
        $region27: #{tpu_custom_call.1} parent=11 // pred_region
          _
        $region28: #{tpu_custom_call.1} parent=11 // pred_fallthru
          _
        // Predicated region
        $region29: #{tpu_custom_call.1} parent=11 // pred_check
          %p311 = pneg %p180
        $region30: #{tpu_custom_call.1} parent=11 // pred_check_branch
          %313 = sbr.rel (%p311) target = $region32
        $region31: #{tpu_custom_call.1} parent=11 // pred_region
          _
        $region32: #{tpu_custom_call.1} parent=11 // pred_fallthru
          _
      $region12: #{tpu_custom_call.1} parent=5 // pred_fallthru
        _
      %p314 = scmp.lt.s32.totalorder %s23, 4
      // Predicated region
      $region33: #{tpu_custom_call.1} parent=5 // pred_check
        %p315 = pneg %p314
      $region34: #{tpu_custom_call.1} parent=5 // pred_check_branch
        %317 = sbr.rel (%p315) target = $region36
      $region35: #{tpu_custom_call.1} parent=5 // pred_region
        // Predicated region
        $region37: #{tpu_custom_call.1} parent=35 // pred_check
          %p318 = pneg %p64
        $region38: #{tpu_custom_call.1} parent=35 // pred_check_branch
          %320 = sbr.rel (%p318) target = $region40
        $region39: #{tpu_custom_call.1} parent=35 // pred_region
          %p321 = scmp.lt.s32.totalorder %s23, 3
          %s322 = scalar_select %p321, %s23, 3
          %s323 = smul.addr %s322, 36
          %s324 = smul.addr %s323, 8
          %s325 = scalar_lea.vmem %s1, %s324
        $region40: #{tpu_custom_call.1} parent=35 // pred_fallthru
          _
        // Predicated region
        $region41: #{tpu_custom_call.1} parent=35 // pred_check
          %p326 = pneg %p90
        $region42: #{tpu_custom_call.1} parent=35 // pred_check_branch
          %328 = sbr.rel (%p326) target = $region44
        $region43: #{tpu_custom_call.1} parent=35 // pred_region
          %p329 = scmp.lt.s32.totalorder %s23, 3
          %s330 = scalar_select %p329, %s23, 3
          %s331 = scalar_lea.vmem %s2, %s330
        $region44: #{tpu_custom_call.1} parent=35 // pred_fallthru
          _
      $region36: #{tpu_custom_call.1} parent=5 // pred_fallthru
        _
      %p332 = scmp.le.s32.totalorder 1, %s23
      %p333 = scmp.lt.s32.totalorder %s23, 5
      %p334 = pnand %p332, %p333
      %p335 = pneg %p334
      // Predicated region
      $region45: #{tpu_custom_call.1} parent=5 // pred_check
        _
      $region46: #{tpu_custom_call.1} parent=5 // pred_check_branch
        %337 = sbr.rel (%p334) target = $region48
      $region47: #{tpu_custom_call.1} parent=5 // pred_region
        %s338 = ssub.s32 %s23, 1
        %p339 = pneg %p44
        %p340 = pneg %p41
        %p341 = scmp.lt.s32.totalorder %s28, 3
        %s342 = scalar_select %p341, %s28, 3
        %s343 = smul.addr %s342, 36
        %s344 = smul.addr %s343, 8
        %s345 = scalar_lea.vmem %s1, %s344
        %p346 = pneg %p70
        %p347 = pneg %p67
        %p348 = scmp.lt.s32.totalorder %s28, 3
        %s349 = scalar_select %p348, %s28, 3
        %s350 = scalar_lea.vmem %s2, %s349
        %p351 = pneg %p96
        %p352 = pneg %p93
        %p353 = pneg %p117
        %p354 = pneg %p114
        %p355 = pneg %p138
        %p356 = pneg %p135
        %p357 = pneg %p159
        %p358 = pneg %p156
        %p359 = pneg %p180
        %p360 = pneg %p177
        %p361 = pneg %p206
        %p362 = pneg %p203
        %s363 = sand.u32 %s193, 1
        %s364 = scalar_lea.sflag [#allocation3], %s363
        %s365 = sand.u32 %s193, 1
        %s366 = smul.addr %s365, 8
        %s367 = scalar_lea.vmem [#allocation2], %s366
        %p368 = pneg %p232
        %p369 = pneg %p229
        %s370 = sand.u32 %s28, 1
        %s371 = scalar_lea.sflag [#allocation5], %s370
        %s372 = sand.u32 %s219, 1
        %s373 = smul.addr %s372, 8
        %s374 = scalar_lea.vmem [#allocation4], %s373
        %p375 = pneg %p258
        %p376 = pneg %p255
        %s377 = sand.u32 %s28, 1
        %s378 = scalar_lea.sflag [#allocation5], %s377
        %s379 = sand.u32 %s245, 1
        %s380 = smul.addr %s379, 8
        %s381 = scalar_lea.vmem [#allocation6], %s380
        %p382 = pneg %p284
        %p383 = pneg %p281
        %p384 = scmp.lt.s32.totalorder %s28, 3
        %s385 = scalar_select %p384, %s28, 3
        %s386 = smul.addr %s385, 36
        %s387 = smul.addr %s386, 4
        %s388 = scalar_lea.vmem %s10, %s387
        %p389 = scmp.lt.s32.totalorder %s28, 3
        %s390 = scalar_select %p389, %s28, 3
        %s391 = smul.addr %s390, 36
        %s392 = smul.addr %s391, 8
        %s393 = scalar_lea.vmem %s1, %s392
        %p394 = scmp.lt.s32.totalorder %s28, 3
        %s395 = scalar_select %p394, %s28, 3
        %s396 = scalar_lea.vmem %s2, %s395
        %p397 = scmp.lt.s32.totalorder %s28, 3
        %s398 = scalar_select %p397, %s28, 3
        %s399 = smul.addr %s398, 36
        %s400 = smul.addr %s399, 4
        %s401 = scalar_lea.vmem %s10, %s400
        %v403 = vld [vmem:[%s393] sm:$0xff]
        %v404 = vld [vmem:[%s393 + $0x8] sm:$0xff]
        %v405 = vld [vmem:[%s393 + $0x10] sm:$0xff]
        %v406 = vld [vmem:[%s393 + $0x18] sm:$0xff]
        %v407 = vld [vmem:[%s393 + $0x20] sm:$0xff]
        %v408 = vld [vmem:[%s393 + $0x28] sm:$0xff]
        %v409 = vld [vmem:[%s393 + $0x30] sm:$0xff]
        %v410 = vld [vmem:[%s393 + $0x38] sm:$0xff]
        %v411 = vld [vmem:[%s393 + $0x40] sm:$0xff]
        %v412 = vld [vmem:[%s393 + $0x48] sm:$0xff]
        %v413 = vld [vmem:[%s393 + $0x50] sm:$0xff]
        %v414 = vld [vmem:[%s393 + $0x58] sm:$0xff]
        %v415 = vld [vmem:[%s393 + $0x60] sm:$0xff]
        %v416 = vld [vmem:[%s393 + $0x68] sm:$0xff]
        %v417 = vld [vmem:[%s393 + $0x70] sm:$0xff]
        %v418 = vld [vmem:[%s393 + $0x78] sm:$0xff]
        %v419 = vld [vmem:[%s393 + $0x80] sm:$0xff]
        %v420 = vld [vmem:[%s393 + $0x88] sm:$0xff]
        %v421 = vld [vmem:[%s393 + $0x90] sm:$0xff]
        %v422 = vld [vmem:[%s393 + $0x98] sm:$0xff]
        %v423 = vld [vmem:[%s393 + $0xa0] sm:$0xff]
        %v424 = vld [vmem:[%s393 + $0xa8] sm:$0xff]
        %v425 = vld [vmem:[%s393 + $0xb0] sm:$0xff]
        %v426 = vld [vmem:[%s393 + $0xb8] sm:$0xff]
        %v427 = vld [vmem:[%s393 + $0xc0] sm:$0xff]
        %v428 = vld [vmem:[%s393 + $0xc8] sm:$0xff]
        %v429 = vld [vmem:[%s393 + $0xd0] sm:$0xff]
        %v430 = vld [vmem:[%s393 + $0xd8] sm:$0xff]
        %v431 = vld [vmem:[%s393 + $0xe0] sm:$0xff]
        %v432 = vld [vmem:[%s393 + $0xe8] sm:$0xff]
        %v433 = vld [vmem:[%s393 + $0xf0] sm:$0xff]
        %v434 = vld [vmem:[%s393 + $0xf8] sm:$0xff]
        %v435 = vld [vmem:[%s393 + $0x100] sm:$0xff]
        %v436 = vld [vmem:[%s393 + $0x108] sm:$0xff]
        %v437 = vld [vmem:[%s393 + $0x110] sm:$0xff]
        %v438 = vld [vmem:[%s393 + $0x118] sm:$0xff]
        %v439 = vld [vmem:[%s396] sm:$0x1]
        %v440 = vld [vmem:[%s5] sm:$0xf]
        %v441 = vld [vmem:[%s5 + $0x4] sm:$0xf]
        %v442 = vld [vmem:[%s5 + $0x8] sm:$0xf]
        %v443 = vld [vmem:[%s5 + $0xc] sm:$0xf]
        %v444 = vmul.f32 %v403, %v403
        %v445 = vmul.f32 %v404, %v404
        %v446 = vmul.f32 %v405, %v405
        %v447 = vmul.f32 %v406, %v406
        %v448 = vmul.f32 %v407, %v407
        %v449 = vmul.f32 %v408, %v408
        %v450 = vmul.f32 %v409, %v409
        %v451 = vmul.f32 %v410, %v410
        %v452 = vmul.f32 %v411, %v411
        %v453 = vmul.f32 %v412, %v412
        %v454 = vmul.f32 %v413, %v413
        %v455 = vmul.f32 %v414, %v414
        %v456 = vmul.f32 %v415, %v415
        %v457 = vmul.f32 %v416, %v416
        %v458 = vmul.f32 %v417, %v417
        %v459 = vmul.f32 %v418, %v418
        %v460 = vmul.f32 %v419, %v419
        %v461 = vmul.f32 %v420, %v420
        %v462 = vmul.f32 %v421, %v421
        %v463 = vmul.f32 %v422, %v422
        %v464 = vmul.f32 %v423, %v423
        %v465 = vmul.f32 %v424, %v424
        %v466 = vmul.f32 %v425, %v425
        %v467 = vmul.f32 %v426, %v426
        %v468 = vmul.f32 %v427, %v427
        %v469 = vmul.f32 %v428, %v428
        %v470 = vmul.f32 %v429, %v429
        %v471 = vmul.f32 %v430, %v430
        %v472 = vmul.f32 %v431, %v431
        %v473 = vmul.f32 %v432, %v432
        %v474 = vmul.f32 %v433, %v433
        %v475 = vmul.f32 %v434, %v434
        %v476 = vmul.f32 %v435, %v435
        %v477 = vmul.f32 %v436, %v436
        %v478 = vmul.f32 %v437, %v437
        %v479 = vmul.f32 %v438, %v438
        %vm480 = vcmask 261120
        %v481 = vsel %vm480, %v444, 0.0
        %482 = vadd.xlane.f32.xlu0 %v481
        %v483 = vpop.xlane.xlu0 %482
        %v484 = vsel %vm480, %v445, 0.0
        %485 = vadd.xlane.f32.xlu0 %v484
        %v486 = vpop.xlane.xlu0 %485
        %v487 = vsel %vm480, %v446, 0.0
        %488 = vadd.xlane.f32.xlu0 %v487
        %v489 = vpop.xlane.xlu0 %488
        %v490 = vsel %vm480, %v447, 0.0
        %491 = vadd.xlane.f32.xlu0 %v490
        %v492 = vpop.xlane.xlu0 %491
        %v493 = vsel %vm480, %v448, 0.0
        %494 = vadd.xlane.f32.xlu0 %v493
        %v495 = vpop.xlane.xlu0 %494
        %v496 = vsel %vm480, %v449, 0.0
        %497 = vadd.xlane.f32.xlu0 %v496
        %v498 = vpop.xlane.xlu0 %497
        %v499 = vsel %vm480, %v450, 0.0
        %500 = vadd.xlane.f32.xlu0 %v499
        %v501 = vpop.xlane.xlu0 %500
        %v502 = vsel %vm480, %v451, 0.0
        %503 = vadd.xlane.f32.xlu0 %v502
        %v504 = vpop.xlane.xlu0 %503
        %v505 = vsel %vm480, %v452, 0.0
        %506 = vadd.xlane.f32.xlu0 %v505
        %v507 = vpop.xlane.xlu0 %506
        %v508 = vsel %vm480, %v453, 0.0
        %509 = vadd.xlane.f32.xlu0 %v508
        %v510 = vpop.xlane.xlu0 %509
        %v511 = vsel %vm480, %v454, 0.0
        %512 = vadd.xlane.f32.xlu0 %v511
        %v513 = vpop.xlane.xlu0 %512
        %v514 = vsel %vm480, %v455, 0.0
        %515 = vadd.xlane.f32.xlu0 %v514
        %v516 = vpop.xlane.xlu0 %515
        %v517 = vsel %vm480, %v456, 0.0
        %518 = vadd.xlane.f32.xlu0 %v517
        %v519 = vpop.xlane.xlu0 %518
        %v520 = vsel %vm480, %v457, 0.0
        %521 = vadd.xlane.f32.xlu0 %v520
        %v522 = vpop.xlane.xlu0 %521
        %v523 = vsel %vm480, %v458, 0.0
        %524 = vadd.xlane.f32.xlu0 %v523
        %v525 = vpop.xlane.xlu0 %524
        %v526 = vsel %vm480, %v459, 0.0
        %527 = vadd.xlane.f32.xlu0 %v526
        %v528 = vpop.xlane.xlu0 %527
        %v529 = vsel %vm480, %v460, 0.0
        %530 = vadd.xlane.f32.xlu0 %v529
        %v531 = vpop.xlane.xlu0 %530
        %v532 = vsel %vm480, %v461, 0.0
        %533 = vadd.xlane.f32.xlu0 %v532
        %v534 = vpop.xlane.xlu0 %533
        %v535 = vsel %vm480, %v462, 0.0
        %536 = vadd.xlane.f32.xlu0 %v535
        %v537 = vpop.xlane.xlu0 %536
        %v538 = vsel %vm480, %v463, 0.0
        %539 = vadd.xlane.f32.xlu0 %v538
        %v540 = vpop.xlane.xlu0 %539
        %v541 = vsel %vm480, %v464, 0.0
        %542 = vadd.xlane.f32.xlu0 %v541
        %v543 = vpop.xlane.xlu0 %542
        %v544 = vsel %vm480, %v465, 0.0
        %545 = vadd.xlane.f32.xlu0 %v544
        %v546 = vpop.xlane.xlu0 %545
        %v547 = vsel %vm480, %v466, 0.0
        %548 = vadd.xlane.f32.xlu0 %v547
        %v549 = vpop.xlane.xlu0 %548
        %v550 = vsel %vm480, %v467, 0.0
        %551 = vadd.xlane.f32.xlu0 %v550
        %v552 = vpop.xlane.xlu0 %551
        %v553 = vsel %vm480, %v468, 0.0
        %554 = vadd.xlane.f32.xlu0 %v553
        %v555 = vpop.xlane.xlu0 %554
        %v556 = vsel %vm480, %v469, 0.0
        %557 = vadd.xlane.f32.xlu0 %v556
        %v558 = vpop.xlane.xlu0 %557
        %v559 = vsel %vm480, %v470, 0.0
        %560 = vadd.xlane.f32.xlu0 %v559
        %v561 = vpop.xlane.xlu0 %560
        %v562 = vsel %vm480, %v471, 0.0
        %563 = vadd.xlane.f32.xlu0 %v562
        %v564 = vpop.xlane.xlu0 %563
        %v565 = vsel %vm480, %v472, 0.0
        %566 = vadd.xlane.f32.xlu0 %v565
        %v567 = vpop.xlane.xlu0 %566
        %v568 = vsel %vm480, %v473, 0.0
        %569 = vadd.xlane.f32.xlu0 %v568
        %v570 = vpop.xlane.xlu0 %569
        %v571 = vsel %vm480, %v474, 0.0
        %572 = vadd.xlane.f32.xlu0 %v571
        %v573 = vpop.xlane.xlu0 %572
        %v574 = vsel %vm480, %v475, 0.0
        %575 = vadd.xlane.f32.xlu0 %v574
        %v576 = vpop.xlane.xlu0 %575
        %v577 = vsel %vm480, %v476, 0.0
        %578 = vadd.xlane.f32.xlu0 %v577
        %v579 = vpop.xlane.xlu0 %578
        %v580 = vsel %vm480, %v477, 0.0
        %581 = vadd.xlane.f32.xlu0 %v580
        %v582 = vpop.xlane.xlu0 %581
        %v583 = vsel %vm480, %v478, 0.0
        %584 = vadd.xlane.f32.xlu0 %v583
        %v585 = vpop.xlane.xlu0 %584
        %v586 = vsel %vm480, %v479, 0.0
        %587 = vadd.xlane.f32.xlu0 %v586
        %v588 = vpop.xlane.xlu0 %587
        %v589 = vrsqrt.pop %v483
        %v590 = vmul.f32 %v589, %v483
        %v591 = vmul.f32 %v590, %v589
        %v592 = vmul.f32 0.5, %v591
        %v593 = vsub.f32 1.5, %v592
        %v594 = vmul.f32 %v589, %v593
        %v595 = vmul.f32 %v483, %v594
        %vm596 = vcmp.eq.f32.partialorder %v483, inf
        %v597 = vsel %vm596, %v483, %v595
        %vm598 = vcmp.eq.f32.partialorder %v483, 0.0
        %v599 = vand.u32 %v483, 2147483648
        %v600 = vsel %vm598, %v599, %v597
        %v601 = vrsqrt.pop %v486
        %v602 = vmul.f32 %v601, %v486
        %v603 = vmul.f32 %v602, %v601
        %v604 = vmul.f32 0.5, %v603
        %v605 = vsub.f32 1.5, %v604
        %v606 = vmul.f32 %v601, %v605
        %v607 = vmul.f32 %v486, %v606
        %vm608 = vcmp.eq.f32.partialorder %v486, inf
        %v609 = vsel %vm608, %v486, %v607
        %vm610 = vcmp.eq.f32.partialorder %v486, 0.0
        %v611 = vand.u32 %v486, 2147483648
        %v612 = vsel %vm610, %v611, %v609
        %v613 = vrsqrt.pop %v489
        %v614 = vmul.f32 %v613, %v489
        %v615 = vmul.f32 %v614, %v613
        %v616 = vmul.f32 0.5, %v615
        %v617 = vsub.f32 1.5, %v616
        %v618 = vmul.f32 %v613, %v617
        %v619 = vmul.f32 %v489, %v618
        %vm620 = vcmp.eq.f32.partialorder %v489, inf
        %v621 = vsel %vm620, %v489, %v619
        %vm622 = vcmp.eq.f32.partialorder %v489, 0.0
        %v623 = vand.u32 %v489, 2147483648
        %v624 = vsel %vm622, %v623, %v621
        %v625 = vrsqrt.pop %v492
        %v626 = vmul.f32 %v625, %v492
        %v627 = vmul.f32 %v626, %v625
        %v628 = vmul.f32 0.5, %v627
        %v629 = vsub.f32 1.5, %v628
        %v630 = vmul.f32 %v625, %v629
        %v631 = vmul.f32 %v492, %v630
        %vm632 = vcmp.eq.f32.partialorder %v492, inf
        %v633 = vsel %vm632, %v492, %v631
        %vm634 = vcmp.eq.f32.partialorder %v492, 0.0
        %v635 = vand.u32 %v492, 2147483648
        %v636 = vsel %vm634, %v635, %v633
        %v637 = vrsqrt.pop %v495
        %v638 = vmul.f32 %v637, %v495
        %v639 = vmul.f32 %v638, %v637
        %v640 = vmul.f32 0.5, %v639
        %v641 = vsub.f32 1.5, %v640
        %v642 = vmul.f32 %v637, %v641
        %v643 = vmul.f32 %v495, %v642
        %vm644 = vcmp.eq.f32.partialorder %v495, inf
        %v645 = vsel %vm644, %v495, %v643
        %vm646 = vcmp.eq.f32.partialorder %v495, 0.0
        %v647 = vand.u32 %v495, 2147483648
        %v648 = vsel %vm646, %v647, %v645
        %v649 = vrsqrt.pop %v498
        %v650 = vmul.f32 %v649, %v498
        %v651 = vmul.f32 %v650, %v649
        %v652 = vmul.f32 0.5, %v651
        %v653 = vsub.f32 1.5, %v652
        %v654 = vmul.f32 %v649, %v653
        %v655 = vmul.f32 %v498, %v654
        %vm656 = vcmp.eq.f32.partialorder %v498, inf
        %v657 = vsel %vm656, %v498, %v655
        %vm658 = vcmp.eq.f32.partialorder %v498, 0.0
        %v659 = vand.u32 %v498, 2147483648
        %v660 = vsel %vm658, %v659, %v657
        %v661 = vrsqrt.pop %v501
        %v662 = vmul.f32 %v661, %v501
        %v663 = vmul.f32 %v662, %v661
        %v664 = vmul.f32 0.5, %v663
        %v665 = vsub.f32 1.5, %v664
        %v666 = vmul.f32 %v661, %v665
        %v667 = vmul.f32 %v501, %v666
        %vm668 = vcmp.eq.f32.partialorder %v501, inf
        %v669 = vsel %vm668, %v501, %v667
        %vm670 = vcmp.eq.f32.partialorder %v501, 0.0
        %v671 = vand.u32 %v501, 2147483648
        %v672 = vsel %vm670, %v671, %v669
        %v673 = vrsqrt.pop %v504
        %v674 = vmul.f32 %v673, %v504
        %v675 = vmul.f32 %v674, %v673
        %v676 = vmul.f32 0.5, %v675
        %v677 = vsub.f32 1.5, %v676
        %v678 = vmul.f32 %v673, %v677
        %v679 = vmul.f32 %v504, %v678
        %vm680 = vcmp.eq.f32.partialorder %v504, inf
        %v681 = vsel %vm680, %v504, %v679
        %vm682 = vcmp.eq.f32.partialorder %v504, 0.0
        %v683 = vand.u32 %v504, 2147483648
        %v684 = vsel %vm682, %v683, %v681
        %v685 = vrsqrt.pop %v507
        %v686 = vmul.f32 %v685, %v507
        %v687 = vmul.f32 %v686, %v685
        %v688 = vmul.f32 0.5, %v687
        %v689 = vsub.f32 1.5, %v688
        %v690 = vmul.f32 %v685, %v689
        %v691 = vmul.f32 %v507, %v690
        %vm692 = vcmp.eq.f32.partialorder %v507, inf
        %v693 = vsel %vm692, %v507, %v691
        %vm694 = vcmp.eq.f32.partialorder %v507, 0.0
        %v695 = vand.u32 %v507, 2147483648
        %v696 = vsel %vm694, %v695, %v693
        %v697 = vrsqrt.pop %v510
        %v698 = vmul.f32 %v697, %v510
        %v699 = vmul.f32 %v698, %v697
        %v700 = vmul.f32 0.5, %v699
        %v701 = vsub.f32 1.5, %v700
        %v702 = vmul.f32 %v697, %v701
        %v703 = vmul.f32 %v510, %v702
        %vm704 = vcmp.eq.f32.partialorder %v510, inf
        %v705 = vsel %vm704, %v510, %v703
        %vm706 = vcmp.eq.f32.partialorder %v510, 0.0
        %v707 = vand.u32 %v510, 2147483648
        %v708 = vsel %vm706, %v707, %v705
        %v709 = vrsqrt.pop %v513
        %v710 = vmul.f32 %v709, %v513
        %v711 = vmul.f32 %v710, %v709
        %v712 = vmul.f32 0.5, %v711
        %v713 = vsub.f32 1.5, %v712
        %v714 = vmul.f32 %v709, %v713
        %v715 = vmul.f32 %v513, %v714
        %vm716 = vcmp.eq.f32.partialorder %v513, inf
        %v717 = vsel %vm716, %v513, %v715
        %vm718 = vcmp.eq.f32.partialorder %v513, 0.0
        %v719 = vand.u32 %v513, 2147483648
        %v720 = vsel %vm718, %v719, %v717
        %v721 = vrsqrt.pop %v516
        %v722 = vmul.f32 %v721, %v516
        %v723 = vmul.f32 %v722, %v721
        %v724 = vmul.f32 0.5, %v723
        %v725 = vsub.f32 1.5, %v724
        %v726 = vmul.f32 %v721, %v725
        %v727 = vmul.f32 %v516, %v726
        %vm728 = vcmp.eq.f32.partialorder %v516, inf
        %v729 = vsel %vm728, %v516, %v727
        %vm730 = vcmp.eq.f32.partialorder %v516, 0.0
        %v731 = vand.u32 %v516, 2147483648
        %v732 = vsel %vm730, %v731, %v729
        %v733 = vrsqrt.pop %v519
        %v734 = vmul.f32 %v733, %v519
        %v735 = vmul.f32 %v734, %v733
        %v736 = vmul.f32 0.5, %v735
        %v737 = vsub.f32 1.5, %v736
        %v738 = vmul.f32 %v733, %v737
        %v739 = vmul.f32 %v519, %v738
        %vm740 = vcmp.eq.f32.partialorder %v519, inf
        %v741 = vsel %vm740, %v519, %v739
        %vm742 = vcmp.eq.f32.partialorder %v519, 0.0
        %v743 = vand.u32 %v519, 2147483648
        %v744 = vsel %vm742, %v743, %v741
        %v745 = vrsqrt.pop %v522
        %v746 = vmul.f32 %v745, %v522
        %v747 = vmul.f32 %v746, %v745
        %v748 = vmul.f32 0.5, %v747
        %v749 = vsub.f32 1.5, %v748
        %v750 = vmul.f32 %v745, %v749
        %v751 = vmul.f32 %v522, %v750
        %vm752 = vcmp.eq.f32.partialorder %v522, inf
        %v753 = vsel %vm752, %v522, %v751
        %vm754 = vcmp.eq.f32.partialorder %v522, 0.0
        %v755 = vand.u32 %v522, 2147483648
        %v756 = vsel %vm754, %v755, %v753
        %v757 = vrsqrt.pop %v525
        %v758 = vmul.f32 %v757, %v525
        %v759 = vmul.f32 %v758, %v757
        %v760 = vmul.f32 0.5, %v759
        %v761 = vsub.f32 1.5, %v760
        %v762 = vmul.f32 %v757, %v761
        %v763 = vmul.f32 %v525, %v762
        %vm764 = vcmp.eq.f32.partialorder %v525, inf
        %v765 = vsel %vm764, %v525, %v763
        %vm766 = vcmp.eq.f32.partialorder %v525, 0.0
        %v767 = vand.u32 %v525, 2147483648
        %v768 = vsel %vm766, %v767, %v765
        %v769 = vrsqrt.pop %v528
        %v770 = vmul.f32 %v769, %v528
        %v771 = vmul.f32 %v770, %v769
        %v772 = vmul.f32 0.5, %v771
        %v773 = vsub.f32 1.5, %v772
        %v774 = vmul.f32 %v769, %v773
        %v775 = vmul.f32 %v528, %v774
        %vm776 = vcmp.eq.f32.partialorder %v528, inf
        %v777 = vsel %vm776, %v528, %v775
        %vm778 = vcmp.eq.f32.partialorder %v528, 0.0
        %v779 = vand.u32 %v528, 2147483648
        %v780 = vsel %vm778, %v779, %v777
        %v781 = vrsqrt.pop %v531
        %v782 = vmul.f32 %v781, %v531
        %v783 = vmul.f32 %v782, %v781
        %v784 = vmul.f32 0.5, %v783
        %v785 = vsub.f32 1.5, %v784
        %v786 = vmul.f32 %v781, %v785
        %v787 = vmul.f32 %v531, %v786
        %vm788 = vcmp.eq.f32.partialorder %v531, inf
        %v789 = vsel %vm788, %v531, %v787
        %vm790 = vcmp.eq.f32.partialorder %v531, 0.0
        %v791 = vand.u32 %v531, 2147483648
        %v792 = vsel %vm790, %v791, %v789
        %v793 = vrsqrt.pop %v534
        %v794 = vmul.f32 %v793, %v534
        %v795 = vmul.f32 %v794, %v793
        %v796 = vmul.f32 0.5, %v795
        %v797 = vsub.f32 1.5, %v796
        %v798 = vmul.f32 %v793, %v797
        %v799 = vmul.f32 %v534, %v798
        %vm800 = vcmp.eq.f32.partialorder %v534, inf
        %v801 = vsel %vm800, %v534, %v799
        %vm802 = vcmp.eq.f32.partialorder %v534, 0.0
        %v803 = vand.u32 %v534, 2147483648
        %v804 = vsel %vm802, %v803, %v801
        %v805 = vrsqrt.pop %v537
        %v806 = vmul.f32 %v805, %v537
        %v807 = vmul.f32 %v806, %v805
        %v808 = vmul.f32 0.5, %v807
        %v809 = vsub.f32 1.5, %v808
        %v810 = vmul.f32 %v805, %v809
        %v811 = vmul.f32 %v537, %v810
        %vm812 = vcmp.eq.f32.partialorder %v537, inf
        %v813 = vsel %vm812, %v537, %v811
        %vm814 = vcmp.eq.f32.partialorder %v537, 0.0
        %v815 = vand.u32 %v537, 2147483648
        %v816 = vsel %vm814, %v815, %v813
        %v817 = vrsqrt.pop %v540
        %v818 = vmul.f32 %v817, %v540
        %v819 = vmul.f32 %v818, %v817
        %v820 = vmul.f32 0.5, %v819
        %v821 = vsub.f32 1.5, %v820
        %v822 = vmul.f32 %v817, %v821
        %v823 = vmul.f32 %v540, %v822
        %vm824 = vcmp.eq.f32.partialorder %v540, inf
        %v825 = vsel %vm824, %v540, %v823
        %vm826 = vcmp.eq.f32.partialorder %v540, 0.0
        %v827 = vand.u32 %v540, 2147483648
        %v828 = vsel %vm826, %v827, %v825
        %v829 = vrsqrt.pop %v543
        %v830 = vmul.f32 %v829, %v543
        %v831 = vmul.f32 %v830, %v829
        %v832 = vmul.f32 0.5, %v831
        %v833 = vsub.f32 1.5, %v832
        %v834 = vmul.f32 %v829, %v833
        %v835 = vmul.f32 %v543, %v834
        %vm836 = vcmp.eq.f32.partialorder %v543, inf
        %v837 = vsel %vm836, %v543, %v835
        %vm838 = vcmp.eq.f32.partialorder %v543, 0.0
        %v839 = vand.u32 %v543, 2147483648
        %v840 = vsel %vm838, %v839, %v837
        %v841 = vrsqrt.pop %v546
        %v842 = vmul.f32 %v841, %v546
        %v843 = vmul.f32 %v842, %v841
        %v844 = vmul.f32 0.5, %v843
        %v845 = vsub.f32 1.5, %v844
        %v846 = vmul.f32 %v841, %v845
        %v847 = vmul.f32 %v546, %v846
        %vm848 = vcmp.eq.f32.partialorder %v546, inf
        %v849 = vsel %vm848, %v546, %v847
        %vm850 = vcmp.eq.f32.partialorder %v546, 0.0
        %v851 = vand.u32 %v546, 2147483648
        %v852 = vsel %vm850, %v851, %v849
        %v853 = vrsqrt.pop %v549
        %v854 = vmul.f32 %v853, %v549
        %v855 = vmul.f32 %v854, %v853
        %v856 = vmul.f32 0.5, %v855
        %v857 = vsub.f32 1.5, %v856
        %v858 = vmul.f32 %v853, %v857
        %v859 = vmul.f32 %v549, %v858
        %vm860 = vcmp.eq.f32.partialorder %v549, inf
        %v861 = vsel %vm860, %v549, %v859
        %vm862 = vcmp.eq.f32.partialorder %v549, 0.0
        %v863 = vand.u32 %v549, 2147483648
        %v864 = vsel %vm862, %v863, %v861
        %v865 = vrsqrt.pop %v552
        %v866 = vmul.f32 %v865, %v552
        %v867 = vmul.f32 %v866, %v865
        %v868 = vmul.f32 0.5, %v867
        %v869 = vsub.f32 1.5, %v868
        %v870 = vmul.f32 %v865, %v869
        %v871 = vmul.f32 %v552, %v870
        %vm872 = vcmp.eq.f32.partialorder %v552, inf
        %v873 = vsel %vm872, %v552, %v871
        %vm874 = vcmp.eq.f32.partialorder %v552, 0.0
        %v875 = vand.u32 %v552, 2147483648
        %v876 = vsel %vm874, %v875, %v873
        %v877 = vrsqrt.pop %v555
        %v878 = vmul.f32 %v877, %v555
        %v879 = vmul.f32 %v878, %v877
        %v880 = vmul.f32 0.5, %v879
        %v881 = vsub.f32 1.5, %v880
        %v882 = vmul.f32 %v877, %v881
        %v883 = vmul.f32 %v555, %v882
        %vm884 = vcmp.eq.f32.partialorder %v555, inf
        %v885 = vsel %vm884, %v555, %v883
        %vm886 = vcmp.eq.f32.partialorder %v555, 0.0
        %v887 = vand.u32 %v555, 2147483648
        %v888 = vsel %vm886, %v887, %v885
        %v889 = vrsqrt.pop %v558
        %v890 = vmul.f32 %v889, %v558
        %v891 = vmul.f32 %v890, %v889
        %v892 = vmul.f32 0.5, %v891
        %v893 = vsub.f32 1.5, %v892
        %v894 = vmul.f32 %v889, %v893
        %v895 = vmul.f32 %v558, %v894
        %vm896 = vcmp.eq.f32.partialorder %v558, inf
        %v897 = vsel %vm896, %v558, %v895
        %vm898 = vcmp.eq.f32.partialorder %v558, 0.0
        %v899 = vand.u32 %v558, 2147483648
        %v900 = vsel %vm898, %v899, %v897
        %v901 = vrsqrt.pop %v561
        %v902 = vmul.f32 %v901, %v561
        %v903 = vmul.f32 %v902, %v901
        %v904 = vmul.f32 0.5, %v903
        %v905 = vsub.f32 1.5, %v904
        %v906 = vmul.f32 %v901, %v905
        %v907 = vmul.f32 %v561, %v906
        %vm908 = vcmp.eq.f32.partialorder %v561, inf
        %v909 = vsel %vm908, %v561, %v907
        %vm910 = vcmp.eq.f32.partialorder %v561, 0.0
        %v911 = vand.u32 %v561, 2147483648
        %v912 = vsel %vm910, %v911, %v909
        %v913 = vrsqrt.pop %v564
        %v914 = vmul.f32 %v913, %v564
        %v915 = vmul.f32 %v914, %v913
        %v916 = vmul.f32 0.5, %v915
        %v917 = vsub.f32 1.5, %v916
        %v918 = vmul.f32 %v913, %v917
        %v919 = vmul.f32 %v564, %v918
        %vm920 = vcmp.eq.f32.partialorder %v564, inf
        %v921 = vsel %vm920, %v564, %v919
        %vm922 = vcmp.eq.f32.partialorder %v564, 0.0
        %v923 = vand.u32 %v564, 2147483648
        %v924 = vsel %vm922, %v923, %v921
        %v925 = vrsqrt.pop %v567
        %v926 = vmul.f32 %v925, %v567
        %v927 = vmul.f32 %v926, %v925
        %v928 = vmul.f32 0.5, %v927
        %v929 = vsub.f32 1.5, %v928
        %v930 = vmul.f32 %v925, %v929
        %v931 = vmul.f32 %v567, %v930
        %vm932 = vcmp.eq.f32.partialorder %v567, inf
        %v933 = vsel %vm932, %v567, %v931
        %vm934 = vcmp.eq.f32.partialorder %v567, 0.0
        %v935 = vand.u32 %v567, 2147483648
        %v936 = vsel %vm934, %v935, %v933
        %v937 = vrsqrt.pop %v570
        %v938 = vmul.f32 %v937, %v570
        %v939 = vmul.f32 %v938, %v937
        %v940 = vmul.f32 0.5, %v939
        %v941 = vsub.f32 1.5, %v940
        %v942 = vmul.f32 %v937, %v941
        %v943 = vmul.f32 %v570, %v942
        %vm944 = vcmp.eq.f32.partialorder %v570, inf
        %v945 = vsel %vm944, %v570, %v943
        %vm946 = vcmp.eq.f32.partialorder %v570, 0.0
        %v947 = vand.u32 %v570, 2147483648
        %v948 = vsel %vm946, %v947, %v945
        %v949 = vrsqrt.pop %v573
        %v950 = vmul.f32 %v949, %v573
        %v951 = vmul.f32 %v950, %v949
        %v952 = vmul.f32 0.5, %v951
        %v953 = vsub.f32 1.5, %v952
        %v954 = vmul.f32 %v949, %v953
        %v955 = vmul.f32 %v573, %v954
        %vm956 = vcmp.eq.f32.partialorder %v573, inf
        %v957 = vsel %vm956, %v573, %v955
        %vm958 = vcmp.eq.f32.partialorder %v573, 0.0
        %v959 = vand.u32 %v573, 2147483648
        %v960 = vsel %vm958, %v959, %v957
        %v961 = vrsqrt.pop %v576
        %v962 = vmul.f32 %v961, %v576
        %v963 = vmul.f32 %v962, %v961
        %v964 = vmul.f32 0.5, %v963
        %v965 = vsub.f32 1.5, %v964
        %v966 = vmul.f32 %v961, %v965
        %v967 = vmul.f32 %v576, %v966
        %vm968 = vcmp.eq.f32.partialorder %v576, inf
        %v969 = vsel %vm968, %v576, %v967
        %vm970 = vcmp.eq.f32.partialorder %v576, 0.0
        %v971 = vand.u32 %v576, 2147483648
        %v972 = vsel %vm970, %v971, %v969
        %v973 = vrsqrt.pop %v579
        %v974 = vmul.f32 %v973, %v579
        %v975 = vmul.f32 %v974, %v973
        %v976 = vmul.f32 0.5, %v975
        %v977 = vsub.f32 1.5, %v976
        %v978 = vmul.f32 %v973, %v977
        %v979 = vmul.f32 %v579, %v978
        %vm980 = vcmp.eq.f32.partialorder %v579, inf
        %v981 = vsel %vm980, %v579, %v979
        %vm982 = vcmp.eq.f32.partialorder %v579, 0.0
        %v983 = vand.u32 %v579, 2147483648
        %v984 = vsel %vm982, %v983, %v981
        %v985 = vrsqrt.pop %v582
        %v986 = vmul.f32 %v985, %v582
        %v987 = vmul.f32 %v986, %v985
        %v988 = vmul.f32 0.5, %v987
        %v989 = vsub.f32 1.5, %v988
        %v990 = vmul.f32 %v985, %v989
        %v991 = vmul.f32 %v582, %v990
        %vm992 = vcmp.eq.f32.partialorder %v582, inf
        %v993 = vsel %vm992, %v582, %v991
        %vm994 = vcmp.eq.f32.partialorder %v582, 0.0
        %v995 = vand.u32 %v582, 2147483648
        %v996 = vsel %vm994, %v995, %v993
        %v997 = vrsqrt.pop %v585
        %v998 = vmul.f32 %v997, %v585
        %v999 = vmul.f32 %v998, %v997
        %v1000 = vmul.f32 0.5, %v999
        %v1001 = vsub.f32 1.5, %v1000
        %v1002 = vmul.f32 %v997, %v1001
        %v1003 = vmul.f32 %v585, %v1002
        %vm1004 = vcmp.eq.f32.partialorder %v585, inf
        %v1005 = vsel %vm1004, %v585, %v1003
        %vm1006 = vcmp.eq.f32.partialorder %v585, 0.0
        %v1007 = vand.u32 %v585, 2147483648
        %v1008 = vsel %vm1006, %v1007, %v1005
        %v1009 = vrsqrt.pop %v588
        %v1010 = vmul.f32 %v1009, %v588
        %v1011 = vmul.f32 %v1010, %v1009
        %v1012 = vmul.f32 0.5, %v1011
        %v1013 = vsub.f32 1.5, %v1012
        %v1014 = vmul.f32 %v1009, %v1013
        %v1015 = vmul.f32 %v588, %v1014
        %vm1016 = vcmp.eq.f32.partialorder %v588, inf
        %v1017 = vsel %vm1016, %v588, %v1015
        %vm1018 = vcmp.eq.f32.partialorder %v588, 0.0
        %v1019 = vand.u32 %v588, 2147483648
        %v1020 = vsel %vm1018, %v1019, %v1017
        %v1021 = vmax.f32 %v600, 1e-12
        %v1022 = vmax.f32 %v612, 1e-12
        %v1023 = vmax.f32 %v624, 1e-12
        %v1024 = vmax.f32 %v636, 1e-12
        %v1025 = vmax.f32 %v648, 1e-12
        %v1026 = vmax.f32 %v660, 1e-12
        %v1027 = vmax.f32 %v672, 1e-12
        %v1028 = vmax.f32 %v684, 1e-12
        %v1029 = vmax.f32 %v696, 1e-12
        %v1030 = vmax.f32 %v708, 1e-12
        %v1031 = vmax.f32 %v720, 1e-12
        %v1032 = vmax.f32 %v732, 1e-12
        %v1033 = vmax.f32 %v744, 1e-12
        %v1034 = vmax.f32 %v756, 1e-12
        %v1035 = vmax.f32 %v768, 1e-12
        %v1036 = vmax.f32 %v780, 1e-12
        %v1037 = vmax.f32 %v792, 1e-12
        %v1038 = vmax.f32 %v804, 1e-12
        %v1039 = vmax.f32 %v816, 1e-12
        %v1040 = vmax.f32 %v828, 1e-12
        %v1041 = vmax.f32 %v840, 1e-12
        %v1042 = vmax.f32 %v852, 1e-12
        %v1043 = vmax.f32 %v864, 1e-12
        %v1044 = vmax.f32 %v876, 1e-12
        %v1045 = vmax.f32 %v888, 1e-12
        %v1046 = vmax.f32 %v900, 1e-12
        %v1047 = vmax.f32 %v912, 1e-12
        %v1048 = vmax.f32 %v924, 1e-12
        %v1049 = vmax.f32 %v936, 1e-12
        %v1050 = vmax.f32 %v948, 1e-12
        %v1051 = vmax.f32 %v960, 1e-12
        %v1052 = vmax.f32 %v972, 1e-12
        %v1053 = vmax.f32 %v984, 1e-12
        %v1054 = vmax.f32 %v996, 1e-12
        %v1055 = vmax.f32 %v1008, 1e-12
        %v1056 = vmax.f32 %v1020, 1e-12
        %v1057 = vrcp.pop %v1021
        %v1058 = vmul.f32 %v1021, %v1057
        %v1059 = vsub.f32 1.0, %v1058
        %v1060 = vmul.f32 %v1057, %v1059
        %v1061 = vadd.f32 %v1057, %v1060
        %vm1062 = vweird.f32 %v1021
        %vm1063 = vweird.f32 %v1057
        %vm1064 = vmor %vm1062, %vm1063
        %v1065 = vsel %vm1064, %v1057, %v1061
        %v1066 = vand.u32 2147483647, %v1021
        %vm1067 = vcmp.eq.f32.partialorder %v1066, 8.507059e+37
        %v1068 = vand.u32 %v1021, 2147483648
        %v1069 = vor.u32 1.1754944e-38, %v1068
        %v1070 = vsel %vm1067, %v1069, %v1065
        %v1071 = vmul.f32 %v403, %v1070
        %v1072 = vrcp.pop %v1022
        %v1073 = vmul.f32 %v1022, %v1072
        %v1074 = vsub.f32 1.0, %v1073
        %v1075 = vmul.f32 %v1072, %v1074
        %v1076 = vadd.f32 %v1072, %v1075
        %vm1077 = vweird.f32 %v1022
        %vm1078 = vweird.f32 %v1072
        %vm1079 = vmor %vm1077, %vm1078
        %v1080 = vsel %vm1079, %v1072, %v1076
        %v1081 = vand.u32 2147483647, %v1022
        %vm1082 = vcmp.eq.f32.partialorder %v1081, 8.507059e+37
        %v1083 = vand.u32 %v1022, 2147483648
        %v1084 = vor.u32 1.1754944e-38, %v1083
        %v1085 = vsel %vm1082, %v1084, %v1080
        %v1086 = vmul.f32 %v404, %v1085
        %v1087 = vrcp.pop %v1023
        %v1088 = vmul.f32 %v1023, %v1087
        %v1089 = vsub.f32 1.0, %v1088
        %v1090 = vmul.f32 %v1087, %v1089
        %v1091 = vadd.f32 %v1087, %v1090
        %vm1092 = vweird.f32 %v1023
        %vm1093 = vweird.f32 %v1087
        %vm1094 = vmor %vm1092, %vm1093
        %v1095 = vsel %vm1094, %v1087, %v1091
        %v1096 = vand.u32 2147483647, %v1023
        %vm1097 = vcmp.eq.f32.partialorder %v1096, 8.507059e+37
        %v1098 = vand.u32 %v1023, 2147483648
        %v1099 = vor.u32 1.1754944e-38, %v1098
        %v1100 = vsel %vm1097, %v1099, %v1095
        %v1101 = vmul.f32 %v405, %v1100
        %v1102 = vrcp.pop %v1024
        %v1103 = vmul.f32 %v1024, %v1102
        %v1104 = vsub.f32 1.0, %v1103
        %v1105 = vmul.f32 %v1102, %v1104
        %v1106 = vadd.f32 %v1102, %v1105
        %vm1107 = vweird.f32 %v1024
        %vm1108 = vweird.f32 %v1102
        %vm1109 = vmor %vm1107, %vm1108
        %v1110 = vsel %vm1109, %v1102, %v1106
        %v1111 = vand.u32 2147483647, %v1024
        %vm1112 = vcmp.eq.f32.partialorder %v1111, 8.507059e+37
        %v1113 = vand.u32 %v1024, 2147483648
        %v1114 = vor.u32 1.1754944e-38, %v1113
        %v1115 = vsel %vm1112, %v1114, %v1110
        %v1116 = vmul.f32 %v406, %v1115
        %v1117 = vrcp.pop %v1025
        %v1118 = vmul.f32 %v1025, %v1117
        %v1119 = vsub.f32 1.0, %v1118
        %v1120 = vmul.f32 %v1117, %v1119
        %v1121 = vadd.f32 %v1117, %v1120
        %vm1122 = vweird.f32 %v1025
        %vm1123 = vweird.f32 %v1117
        %vm1124 = vmor %vm1122, %vm1123
        %v1125 = vsel %vm1124, %v1117, %v1121
        %v1126 = vand.u32 2147483647, %v1025
        %vm1127 = vcmp.eq.f32.partialorder %v1126, 8.507059e+37
        %v1128 = vand.u32 %v1025, 2147483648
        %v1129 = vor.u32 1.1754944e-38, %v1128
        %v1130 = vsel %vm1127, %v1129, %v1125
        %v1131 = vmul.f32 %v407, %v1130
        %v1132 = vrcp.pop %v1026
        %v1133 = vmul.f32 %v1026, %v1132
        %v1134 = vsub.f32 1.0, %v1133
        %v1135 = vmul.f32 %v1132, %v1134
        %v1136 = vadd.f32 %v1132, %v1135
        %vm1137 = vweird.f32 %v1026
        %vm1138 = vweird.f32 %v1132
        %vm1139 = vmor %vm1137, %vm1138
        %v1140 = vsel %vm1139, %v1132, %v1136
        %v1141 = vand.u32 2147483647, %v1026
        %vm1142 = vcmp.eq.f32.partialorder %v1141, 8.507059e+37
        %v1143 = vand.u32 %v1026, 2147483648
        %v1144 = vor.u32 1.1754944e-38, %v1143
        %v1145 = vsel %vm1142, %v1144, %v1140
        %v1146 = vmul.f32 %v408, %v1145
        %v1147 = vrcp.pop %v1027
        %v1148 = vmul.f32 %v1027, %v1147
        %v1149 = vsub.f32 1.0, %v1148
        %v1150 = vmul.f32 %v1147, %v1149
        %v1151 = vadd.f32 %v1147, %v1150
        %vm1152 = vweird.f32 %v1027
        %vm1153 = vweird.f32 %v1147
        %vm1154 = vmor %vm1152, %vm1153
        %v1155 = vsel %vm1154, %v1147, %v1151
        %v1156 = vand.u32 2147483647, %v1027
        %vm1157 = vcmp.eq.f32.partialorder %v1156, 8.507059e+37
        %v1158 = vand.u32 %v1027, 2147483648
        %v1159 = vor.u32 1.1754944e-38, %v1158
        %v1160 = vsel %vm1157, %v1159, %v1155
        %v1161 = vmul.f32 %v409, %v1160
        %v1162 = vrcp.pop %v1028
        %v1163 = vmul.f32 %v1028, %v1162
        %v1164 = vsub.f32 1.0, %v1163
        %v1165 = vmul.f32 %v1162, %v1164
        %v1166 = vadd.f32 %v1162, %v1165
        %vm1167 = vweird.f32 %v1028
        %vm1168 = vweird.f32 %v1162
        %vm1169 = vmor %vm1167, %vm1168
        %v1170 = vsel %vm1169, %v1162, %v1166
        %v1171 = vand.u32 2147483647, %v1028
        %vm1172 = vcmp.eq.f32.partialorder %v1171, 8.507059e+37
        %v1173 = vand.u32 %v1028, 2147483648
        %v1174 = vor.u32 1.1754944e-38, %v1173
        %v1175 = vsel %vm1172, %v1174, %v1170
        %v1176 = vmul.f32 %v410, %v1175
        %v1177 = vrcp.pop %v1029
        %v1178 = vmul.f32 %v1029, %v1177
        %v1179 = vsub.f32 1.0, %v1178
        %v1180 = vmul.f32 %v1177, %v1179
        %v1181 = vadd.f32 %v1177, %v1180
        %vm1182 = vweird.f32 %v1029
        %vm1183 = vweird.f32 %v1177
        %vm1184 = vmor %vm1182, %vm1183
        %v1185 = vsel %vm1184, %v1177, %v1181
        %v1186 = vand.u32 2147483647, %v1029
        %vm1187 = vcmp.eq.f32.partialorder %v1186, 8.507059e+37
        %v1188 = vand.u32 %v1029, 2147483648
        %v1189 = vor.u32 1.1754944e-38, %v1188
        %v1190 = vsel %vm1187, %v1189, %v1185
        %v1191 = vmul.f32 %v411, %v1190
        %v1192 = vrcp.pop %v1030
        %v1193 = vmul.f32 %v1030, %v1192
        %v1194 = vsub.f32 1.0, %v1193
        %v1195 = vmul.f32 %v1192, %v1194
        %v1196 = vadd.f32 %v1192, %v1195
        %vm1197 = vweird.f32 %v1030
        %vm1198 = vweird.f32 %v1192
        %vm1199 = vmor %vm1197, %vm1198
        %v1200 = vsel %vm1199, %v1192, %v1196
        %v1201 = vand.u32 2147483647, %v1030
        %vm1202 = vcmp.eq.f32.partialorder %v1201, 8.507059e+37
        %v1203 = vand.u32 %v1030, 2147483648
        %v1204 = vor.u32 1.1754944e-38, %v1203
        %v1205 = vsel %vm1202, %v1204, %v1200
        %v1206 = vmul.f32 %v412, %v1205
        %v1207 = vrcp.pop %v1031
        %v1208 = vmul.f32 %v1031, %v1207
        %v1209 = vsub.f32 1.0, %v1208
        %v1210 = vmul.f32 %v1207, %v1209
        %v1211 = vadd.f32 %v1207, %v1210
        %vm1212 = vweird.f32 %v1031
        %vm1213 = vweird.f32 %v1207
        %vm1214 = vmor %vm1212, %vm1213
        %v1215 = vsel %vm1214, %v1207, %v1211
        %v1216 = vand.u32 2147483647, %v1031
        %vm1217 = vcmp.eq.f32.partialorder %v1216, 8.507059e+37
        %v1218 = vand.u32 %v1031, 2147483648
        %v1219 = vor.u32 1.1754944e-38, %v1218
        %v1220 = vsel %vm1217, %v1219, %v1215
        %v1221 = vmul.f32 %v413, %v1220
        %v1222 = vrcp.pop %v1032
        %v1223 = vmul.f32 %v1032, %v1222
        %v1224 = vsub.f32 1.0, %v1223
        %v1225 = vmul.f32 %v1222, %v1224
        %v1226 = vadd.f32 %v1222, %v1225
        %vm1227 = vweird.f32 %v1032
        %vm1228 = vweird.f32 %v1222
        %vm1229 = vmor %vm1227, %vm1228
        %v1230 = vsel %vm1229, %v1222, %v1226
        %v1231 = vand.u32 2147483647, %v1032
        %vm1232 = vcmp.eq.f32.partialorder %v1231, 8.507059e+37
        %v1233 = vand.u32 %v1032, 2147483648
        %v1234 = vor.u32 1.1754944e-38, %v1233
        %v1235 = vsel %vm1232, %v1234, %v1230
        %v1236 = vmul.f32 %v414, %v1235
        %v1237 = vrcp.pop %v1033
        %v1238 = vmul.f32 %v1033, %v1237
        %v1239 = vsub.f32 1.0, %v1238
        %v1240 = vmul.f32 %v1237, %v1239
        %v1241 = vadd.f32 %v1237, %v1240
        %vm1242 = vweird.f32 %v1033
        %vm1243 = vweird.f32 %v1237
        %vm1244 = vmor %vm1242, %vm1243
        %v1245 = vsel %vm1244, %v1237, %v1241
        %v1246 = vand.u32 2147483647, %v1033
        %vm1247 = vcmp.eq.f32.partialorder %v1246, 8.507059e+37
        %v1248 = vand.u32 %v1033, 2147483648
        %v1249 = vor.u32 1.1754944e-38, %v1248
        %v1250 = vsel %vm1247, %v1249, %v1245
        %v1251 = vmul.f32 %v415, %v1250
        %v1252 = vrcp.pop %v1034
        %v1253 = vmul.f32 %v1034, %v1252
        %v1254 = vsub.f32 1.0, %v1253
        %v1255 = vmul.f32 %v1252, %v1254
        %v1256 = vadd.f32 %v1252, %v1255
        %vm1257 = vweird.f32 %v1034
        %vm1258 = vweird.f32 %v1252
        %vm1259 = vmor %vm1257, %vm1258
        %v1260 = vsel %vm1259, %v1252, %v1256
        %v1261 = vand.u32 2147483647, %v1034
        %vm1262 = vcmp.eq.f32.partialorder %v1261, 8.507059e+37
        %v1263 = vand.u32 %v1034, 2147483648
        %v1264 = vor.u32 1.1754944e-38, %v1263
        %v1265 = vsel %vm1262, %v1264, %v1260
        %v1266 = vmul.f32 %v416, %v1265
        %v1267 = vrcp.pop %v1035
        %v1268 = vmul.f32 %v1035, %v1267
        %v1269 = vsub.f32 1.0, %v1268
        %v1270 = vmul.f32 %v1267, %v1269
        %v1271 = vadd.f32 %v1267, %v1270
        %vm1272 = vweird.f32 %v1035
        %vm1273 = vweird.f32 %v1267
        %vm1274 = vmor %vm1272, %vm1273
        %v1275 = vsel %vm1274, %v1267, %v1271
        %v1276 = vand.u32 2147483647, %v1035
        %vm1277 = vcmp.eq.f32.partialorder %v1276, 8.507059e+37
        %v1278 = vand.u32 %v1035, 2147483648
        %v1279 = vor.u32 1.1754944e-38, %v1278
        %v1280 = vsel %vm1277, %v1279, %v1275
        %v1281 = vmul.f32 %v417, %v1280
        %v1282 = vrcp.pop %v1036
        %v1283 = vmul.f32 %v1036, %v1282
        %v1284 = vsub.f32 1.0, %v1283
        %v1285 = vmul.f32 %v1282, %v1284
        %v1286 = vadd.f32 %v1282, %v1285
        %vm1287 = vweird.f32 %v1036
        %vm1288 = vweird.f32 %v1282
        %vm1289 = vmor %vm1287, %vm1288
        %v1290 = vsel %vm1289, %v1282, %v1286
        %v1291 = vand.u32 2147483647, %v1036
        %vm1292 = vcmp.eq.f32.partialorder %v1291, 8.507059e+37
        %v1293 = vand.u32 %v1036, 2147483648
        %v1294 = vor.u32 1.1754944e-38, %v1293
        %v1295 = vsel %vm1292, %v1294, %v1290
        %v1296 = vmul.f32 %v418, %v1295
        %v1297 = vrcp.pop %v1037
        %v1298 = vmul.f32 %v1037, %v1297
        %v1299 = vsub.f32 1.0, %v1298
        %v1300 = vmul.f32 %v1297, %v1299
        %v1301 = vadd.f32 %v1297, %v1300
        %vm1302 = vweird.f32 %v1037
        %vm1303 = vweird.f32 %v1297
        %vm1304 = vmor %vm1302, %vm1303
        %v1305 = vsel %vm1304, %v1297, %v1301
        %v1306 = vand.u32 2147483647, %v1037
        %vm1307 = vcmp.eq.f32.partialorder %v1306, 8.507059e+37
        %v1308 = vand.u32 %v1037, 2147483648
        %v1309 = vor.u32 1.1754944e-38, %v1308
        %v1310 = vsel %vm1307, %v1309, %v1305
        %v1311 = vmul.f32 %v419, %v1310
        %v1312 = vrcp.pop %v1038
        %v1313 = vmul.f32 %v1038, %v1312
        %v1314 = vsub.f32 1.0, %v1313
        %v1315 = vmul.f32 %v1312, %v1314
        %v1316 = vadd.f32 %v1312, %v1315
        %vm1317 = vweird.f32 %v1038
        %vm1318 = vweird.f32 %v1312
        %vm1319 = vmor %vm1317, %vm1318
        %v1320 = vsel %vm1319, %v1312, %v1316
        %v1321 = vand.u32 2147483647, %v1038
        %vm1322 = vcmp.eq.f32.partialorder %v1321, 8.507059e+37
        %v1323 = vand.u32 %v1038, 2147483648
        %v1324 = vor.u32 1.1754944e-38, %v1323
        %v1325 = vsel %vm1322, %v1324, %v1320
        %v1326 = vmul.f32 %v420, %v1325
        %v1327 = vrcp.pop %v1039
        %v1328 = vmul.f32 %v1039, %v1327
        %v1329 = vsub.f32 1.0, %v1328
        %v1330 = vmul.f32 %v1327, %v1329
        %v1331 = vadd.f32 %v1327, %v1330
        %vm1332 = vweird.f32 %v1039
        %vm1333 = vweird.f32 %v1327
        %vm1334 = vmor %vm1332, %vm1333
        %v1335 = vsel %vm1334, %v1327, %v1331
        %v1336 = vand.u32 2147483647, %v1039
        %vm1337 = vcmp.eq.f32.partialorder %v1336, 8.507059e+37
        %v1338 = vand.u32 %v1039, 2147483648
        %v1339 = vor.u32 1.1754944e-38, %v1338
        %v1340 = vsel %vm1337, %v1339, %v1335
        %v1341 = vmul.f32 %v421, %v1340
        %v1342 = vrcp.pop %v1040
        %v1343 = vmul.f32 %v1040, %v1342
        %v1344 = vsub.f32 1.0, %v1343
        %v1345 = vmul.f32 %v1342, %v1344
        %v1346 = vadd.f32 %v1342, %v1345
        %vm1347 = vweird.f32 %v1040
        %vm1348 = vweird.f32 %v1342
        %vm1349 = vmor %vm1347, %vm1348
        %v1350 = vsel %vm1349, %v1342, %v1346
        %v1351 = vand.u32 2147483647, %v1040
        %vm1352 = vcmp.eq.f32.partialorder %v1351, 8.507059e+37
        %v1353 = vand.u32 %v1040, 2147483648
        %v1354 = vor.u32 1.1754944e-38, %v1353
        %v1355 = vsel %vm1352, %v1354, %v1350
        %v1356 = vmul.f32 %v422, %v1355
        %v1357 = vrcp.pop %v1041
        %v1358 = vmul.f32 %v1041, %v1357
        %v1359 = vsub.f32 1.0, %v1358
        %v1360 = vmul.f32 %v1357, %v1359
        %v1361 = vadd.f32 %v1357, %v1360
        %vm1362 = vweird.f32 %v1041
        %vm1363 = vweird.f32 %v1357
        %vm1364 = vmor %vm1362, %vm1363
        %v1365 = vsel %vm1364, %v1357, %v1361
        %v1366 = vand.u32 2147483647, %v1041
        %vm1367 = vcmp.eq.f32.partialorder %v1366, 8.507059e+37
        %v1368 = vand.u32 %v1041, 2147483648
        %v1369 = vor.u32 1.1754944e-38, %v1368
        %v1370 = vsel %vm1367, %v1369, %v1365
        %v1371 = vmul.f32 %v423, %v1370
        %v1372 = vrcp.pop %v1042
        %v1373 = vmul.f32 %v1042, %v1372
        %v1374 = vsub.f32 1.0, %v1373
        %v1375 = vmul.f32 %v1372, %v1374
        %v1376 = vadd.f32 %v1372, %v1375
        %vm1377 = vweird.f32 %v1042
        %vm1378 = vweird.f32 %v1372
        %vm1379 = vmor %vm1377, %vm1378
        %v1380 = vsel %vm1379, %v1372, %v1376
        %v1381 = vand.u32 2147483647, %v1042
        %vm1382 = vcmp.eq.f32.partialorder %v1381, 8.507059e+37
        %v1383 = vand.u32 %v1042, 2147483648
        %v1384 = vor.u32 1.1754944e-38, %v1383
        %v1385 = vsel %vm1382, %v1384, %v1380
        %v1386 = vmul.f32 %v424, %v1385
        %v1387 = vrcp.pop %v1043
        %v1388 = vmul.f32 %v1043, %v1387
        %v1389 = vsub.f32 1.0, %v1388
        %v1390 = vmul.f32 %v1387, %v1389
        %v1391 = vadd.f32 %v1387, %v1390
        %vm1392 = vweird.f32 %v1043
        %vm1393 = vweird.f32 %v1387
        %vm1394 = vmor %vm1392, %vm1393
        %v1395 = vsel %vm1394, %v1387, %v1391
        %v1396 = vand.u32 2147483647, %v1043
        %vm1397 = vcmp.eq.f32.partialorder %v1396, 8.507059e+37
        %v1398 = vand.u32 %v1043, 2147483648
        %v1399 = vor.u32 1.1754944e-38, %v1398
        %v1400 = vsel %vm1397, %v1399, %v1395
        %v1401 = vmul.f32 %v425, %v1400
        %v1402 = vrcp.pop %v1044
        %v1403 = vmul.f32 %v1044, %v1402
        %v1404 = vsub.f32 1.0, %v1403
        %v1405 = vmul.f32 %v1402, %v1404
        %v1406 = vadd.f32 %v1402, %v1405
        %vm1407 = vweird.f32 %v1044
        %vm1408 = vweird.f32 %v1402
        %vm1409 = vmor %vm1407, %vm1408
        %v1410 = vsel %vm1409, %v1402, %v1406
        %v1411 = vand.u32 2147483647, %v1044
        %vm1412 = vcmp.eq.f32.partialorder %v1411, 8.507059e+37
        %v1413 = vand.u32 %v1044, 2147483648
        %v1414 = vor.u32 1.1754944e-38, %v1413
        %v1415 = vsel %vm1412, %v1414, %v1410
        %v1416 = vmul.f32 %v426, %v1415
        %v1417 = vrcp.pop %v1045
        %v1418 = vmul.f32 %v1045, %v1417
        %v1419 = vsub.f32 1.0, %v1418
        %v1420 = vmul.f32 %v1417, %v1419
        %v1421 = vadd.f32 %v1417, %v1420
        %vm1422 = vweird.f32 %v1045
        %vm1423 = vweird.f32 %v1417
        %vm1424 = vmor %vm1422, %vm1423
        %v1425 = vsel %vm1424, %v1417, %v1421
        %v1426 = vand.u32 2147483647, %v1045
        %vm1427 = vcmp.eq.f32.partialorder %v1426, 8.507059e+37
        %v1428 = vand.u32 %v1045, 2147483648
        %v1429 = vor.u32 1.1754944e-38, %v1428
        %v1430 = vsel %vm1427, %v1429, %v1425
        %v1431 = vmul.f32 %v427, %v1430
        %v1432 = vrcp.pop %v1046
        %v1433 = vmul.f32 %v1046, %v1432
        %v1434 = vsub.f32 1.0, %v1433
        %v1435 = vmul.f32 %v1432, %v1434
        %v1436 = vadd.f32 %v1432, %v1435
        %vm1437 = vweird.f32 %v1046
        %vm1438 = vweird.f32 %v1432
        %vm1439 = vmor %vm1437, %vm1438
        %v1440 = vsel %vm1439, %v1432, %v1436
        %v1441 = vand.u32 2147483647, %v1046
        %vm1442 = vcmp.eq.f32.partialorder %v1441, 8.507059e+37
        %v1443 = vand.u32 %v1046, 2147483648
        %v1444 = vor.u32 1.1754944e-38, %v1443
        %v1445 = vsel %vm1442, %v1444, %v1440
        %v1446 = vmul.f32 %v428, %v1445
        %v1447 = vrcp.pop %v1047
        %v1448 = vmul.f32 %v1047, %v1447
        %v1449 = vsub.f32 1.0, %v1448
        %v1450 = vmul.f32 %v1447, %v1449
        %v1451 = vadd.f32 %v1447, %v1450
        %vm1452 = vweird.f32 %v1047
        %vm1453 = vweird.f32 %v1447
        %vm1454 = vmor %vm1452, %vm1453
        %v1455 = vsel %vm1454, %v1447, %v1451
        %v1456 = vand.u32 2147483647, %v1047
        %vm1457 = vcmp.eq.f32.partialorder %v1456, 8.507059e+37
        %v1458 = vand.u32 %v1047, 2147483648
        %v1459 = vor.u32 1.1754944e-38, %v1458
        %v1460 = vsel %vm1457, %v1459, %v1455
        %v1461 = vmul.f32 %v429, %v1460
        %v1462 = vrcp.pop %v1048
        %v1463 = vmul.f32 %v1048, %v1462
        %v1464 = vsub.f32 1.0, %v1463
        %v1465 = vmul.f32 %v1462, %v1464
        %v1466 = vadd.f32 %v1462, %v1465
        %vm1467 = vweird.f32 %v1048
        %vm1468 = vweird.f32 %v1462
        %vm1469 = vmor %vm1467, %vm1468
        %v1470 = vsel %vm1469, %v1462, %v1466
        %v1471 = vand.u32 2147483647, %v1048
        %vm1472 = vcmp.eq.f32.partialorder %v1471, 8.507059e+37
        %v1473 = vand.u32 %v1048, 2147483648
        %v1474 = vor.u32 1.1754944e-38, %v1473
        %v1475 = vsel %vm1472, %v1474, %v1470
        %v1476 = vmul.f32 %v430, %v1475
        %v1477 = vrcp.pop %v1049
        %v1478 = vmul.f32 %v1049, %v1477
        %v1479 = vsub.f32 1.0, %v1478
        %v1480 = vmul.f32 %v1477, %v1479
        %v1481 = vadd.f32 %v1477, %v1480
        %vm1482 = vweird.f32 %v1049
        %vm1483 = vweird.f32 %v1477
        %vm1484 = vmor %vm1482, %vm1483
        %v1485 = vsel %vm1484, %v1477, %v1481
        %v1486 = vand.u32 2147483647, %v1049
        %vm1487 = vcmp.eq.f32.partialorder %v1486, 8.507059e+37
        %v1488 = vand.u32 %v1049, 2147483648
        %v1489 = vor.u32 1.1754944e-38, %v1488
        %v1490 = vsel %vm1487, %v1489, %v1485
        %v1491 = vmul.f32 %v431, %v1490
        %v1492 = vrcp.pop %v1050
        %v1493 = vmul.f32 %v1050, %v1492
        %v1494 = vsub.f32 1.0, %v1493
        %v1495 = vmul.f32 %v1492, %v1494
        %v1496 = vadd.f32 %v1492, %v1495
        %vm1497 = vweird.f32 %v1050
        %vm1498 = vweird.f32 %v1492
        %vm1499 = vmor %vm1497, %vm1498
        %v1500 = vsel %vm1499, %v1492, %v1496
        %v1501 = vand.u32 2147483647, %v1050
        %vm1502 = vcmp.eq.f32.partialorder %v1501, 8.507059e+37
        %v1503 = vand.u32 %v1050, 2147483648
        %v1504 = vor.u32 1.1754944e-38, %v1503
        %v1505 = vsel %vm1502, %v1504, %v1500
        %v1506 = vmul.f32 %v432, %v1505
        %v1507 = vrcp.pop %v1051
        %v1508 = vmul.f32 %v1051, %v1507
        %v1509 = vsub.f32 1.0, %v1508
        %v1510 = vmul.f32 %v1507, %v1509
        %v1511 = vadd.f32 %v1507, %v1510
        %vm1512 = vweird.f32 %v1051
        %vm1513 = vweird.f32 %v1507
        %vm1514 = vmor %vm1512, %vm1513
        %v1515 = vsel %vm1514, %v1507, %v1511
        %v1516 = vand.u32 2147483647, %v1051
        %vm1517 = vcmp.eq.f32.partialorder %v1516, 8.507059e+37
        %v1518 = vand.u32 %v1051, 2147483648
        %v1519 = vor.u32 1.1754944e-38, %v1518
        %v1520 = vsel %vm1517, %v1519, %v1515
        %v1521 = vmul.f32 %v433, %v1520
        %v1522 = vrcp.pop %v1052
        %v1523 = vmul.f32 %v1052, %v1522
        %v1524 = vsub.f32 1.0, %v1523
        %v1525 = vmul.f32 %v1522, %v1524
        %v1526 = vadd.f32 %v1522, %v1525
        %vm1527 = vweird.f32 %v1052
        %vm1528 = vweird.f32 %v1522
        %vm1529 = vmor %vm1527, %vm1528
        %v1530 = vsel %vm1529, %v1522, %v1526
        %v1531 = vand.u32 2147483647, %v1052
        %vm1532 = vcmp.eq.f32.partialorder %v1531, 8.507059e+37
        %v1533 = vand.u32 %v1052, 2147483648
        %v1534 = vor.u32 1.1754944e-38, %v1533
        %v1535 = vsel %vm1532, %v1534, %v1530
        %v1536 = vmul.f32 %v434, %v1535
        %v1537 = vrcp.pop %v1053
        %v1538 = vmul.f32 %v1053, %v1537
        %v1539 = vsub.f32 1.0, %v1538
        %v1540 = vmul.f32 %v1537, %v1539
        %v1541 = vadd.f32 %v1537, %v1540
        %vm1542 = vweird.f32 %v1053
        %vm1543 = vweird.f32 %v1537
        %vm1544 = vmor %vm1542, %vm1543
        %v1545 = vsel %vm1544, %v1537, %v1541
        %v1546 = vand.u32 2147483647, %v1053
        %vm1547 = vcmp.eq.f32.partialorder %v1546, 8.507059e+37
        %v1548 = vand.u32 %v1053, 2147483648
        %v1549 = vor.u32 1.1754944e-38, %v1548
        %v1550 = vsel %vm1547, %v1549, %v1545
        %v1551 = vmul.f32 %v435, %v1550
        %v1552 = vrcp.pop %v1054
        %v1553 = vmul.f32 %v1054, %v1552
        %v1554 = vsub.f32 1.0, %v1553
        %v1555 = vmul.f32 %v1552, %v1554
        %v1556 = vadd.f32 %v1552, %v1555
        %vm1557 = vweird.f32 %v1054
        %vm1558 = vweird.f32 %v1552
        %vm1559 = vmor %vm1557, %vm1558
        %v1560 = vsel %vm1559, %v1552, %v1556
        %v1561 = vand.u32 2147483647, %v1054
        %vm1562 = vcmp.eq.f32.partialorder %v1561, 8.507059e+37
        %v1563 = vand.u32 %v1054, 2147483648
        %v1564 = vor.u32 1.1754944e-38, %v1563
        %v1565 = vsel %vm1562, %v1564, %v1560
        %v1566 = vmul.f32 %v436, %v1565
        %v1567 = vrcp.pop %v1055
        %v1568 = vmul.f32 %v1055, %v1567
        %v1569 = vsub.f32 1.0, %v1568
        %v1570 = vmul.f32 %v1567, %v1569
        %v1571 = vadd.f32 %v1567, %v1570
        %vm1572 = vweird.f32 %v1055
        %vm1573 = vweird.f32 %v1567
        %vm1574 = vmor %vm1572, %vm1573
        %v1575 = vsel %vm1574, %v1567, %v1571
        %v1576 = vand.u32 2147483647, %v1055
        %vm1577 = vcmp.eq.f32.partialorder %v1576, 8.507059e+37
        %v1578 = vand.u32 %v1055, 2147483648
        %v1579 = vor.u32 1.1754944e-38, %v1578
        %v1580 = vsel %vm1577, %v1579, %v1575
        %v1581 = vmul.f32 %v437, %v1580
        %v1582 = vrcp.pop %v1056
        %v1583 = vmul.f32 %v1056, %v1582
        %v1584 = vsub.f32 1.0, %v1583
        %v1585 = vmul.f32 %v1582, %v1584
        %v1586 = vadd.f32 %v1582, %v1585
        %vm1587 = vweird.f32 %v1056
        %vm1588 = vweird.f32 %v1582
        %vm1589 = vmor %vm1587, %vm1588
        %v1590 = vsel %vm1589, %v1582, %v1586
        %v1591 = vand.u32 2147483647, %v1056
        %vm1592 = vcmp.eq.f32.partialorder %v1591, 8.507059e+37
        %v1593 = vand.u32 %v1056, 2147483648
        %v1594 = vor.u32 1.1754944e-38, %v1593
        %v1595 = vsel %vm1592, %v1594, %v1590
        %v1596 = vmul.f32 %v438, %v1595
        %v1597 = vpack.c.bf16 %v1086, %v1071
        %v1598 = vpack.c.bf16 %v1116, %v1101
        %v1599 = vpack.c.bf16 %v1146, %v1131
        %v1600 = vpack.c.bf16 %v1176, %v1161
        %v1601 = vpack.c.bf16 %v1206, %v1191
        %v1602 = vpack.c.bf16 %v1236, %v1221
        %v1603 = vpack.c.bf16 %v1266, %v1251
        %v1604 = vpack.c.bf16 %v1296, %v1281
        %v1605 = vpack.c.bf16 %v1326, %v1311
        %v1606 = vpack.c.bf16 %v1356, %v1341
        %v1607 = vpack.c.bf16 %v1386, %v1371
        %v1608 = vpack.c.bf16 %v1416, %v1401
        %v1609 = vpack.c.bf16 %v1446, %v1431
        %v1610 = vpack.c.bf16 %v1476, %v1461
        %v1611 = vpack.c.bf16 %v1506, %v1491
        %v1612 = vpack.c.bf16 %v1536, %v1521
        %v1613 = vpack.c.bf16 %v1566, %v1551
        %v1614 = vpack.c.bf16 %v1596, %v1581
        %v1616 = vsel %vm480, %v1597, 0
        %v1619 = vsel %vm480, %v1598, 0
        %v1622 = vsel %vm480, %v1599, 0
        %v1625 = vsel %vm480, %v1600, 0
        %v1628 = vsel %vm480, %v1601, 0
        %v1631 = vsel %vm480, %v1602, 0
        %v1634 = vsel %vm480, %v1603, 0
        %v1637 = vsel %vm480, %v1604, 0
        %v1640 = vsel %vm480, %v1605, 0
        %v1643 = vsel %vm480, %v1606, 0
        %v1646 = vsel %vm480, %v1607, 0
        %v1649 = vsel %vm480, %v1608, 0
        %v1652 = vsel %vm480, %v1609, 0
        %v1655 = vsel %vm480, %v1610, 0
        %v1658 = vsel %vm480, %v1611, 0
        %v1661 = vsel %vm480, %v1612, 0
        %v1664 = vsel %vm480, %v1613, 0
        %v1667 = vsel %vm480, %v1614, 0
        %1669 = vmatpush.bf16.xpose.msra.mxu0 %v1637
        %1670 = vmatpush.bf16.xpose.msra.mxu0 %v1634
        %1671 = vmatpush.bf16.xpose.msra.mxu0 %v1631
        %1672 = vmatpush.bf16.xpose.msra.mxu0 %v1628
        %1673 = vmatpush.bf16.xpose.msra.mxu0 %v1625
        %1674 = vmatpush.bf16.xpose.msra.mxu0 %v1622
        %1675 = vmatpush.bf16.xpose.msra.mxu0 %v1619
        %1676 = vmatpush.bf16.xpose.msra.mxu0 %v1616
        %1677 = vmatmul.bf16.gmra.mxu0 %v1616
        %v1678 = vpop.f32.mrf.mxu0
        %v1679 = vadd.f32 0.0, %v1678
        %v1680 = vpop.f32.mrf.mxu0
        %v1681 = vadd.f32 0.0, %v1680
        %1682 = vmatmul.bf16.gmra.mxu0 %v1619
        %v1683 = vpop.f32.mrf.mxu0
        %v1684 = vadd.f32 0.0, %v1683
        %v1685 = vpop.f32.mrf.mxu0
        %v1686 = vadd.f32 0.0, %v1685
        %1687 = vmatmul.bf16.gmra.mxu0 %v1622
        %v1688 = vpop.f32.mrf.mxu0
        %v1689 = vadd.f32 0.0, %v1688
        %v1690 = vpop.f32.mrf.mxu0
        %v1691 = vadd.f32 0.0, %v1690
        %1692 = vmatmul.bf16.gmra.mxu0 %v1625
        %v1693 = vpop.f32.mrf.mxu0
        %v1694 = vadd.f32 0.0, %v1693
        %v1695 = vpop.f32.mrf.mxu0
        %v1696 = vadd.f32 0.0, %v1695
        %1697 = vmatmul.bf16.gmra.mxu0 %v1628
        %v1698 = vpop.f32.mrf.mxu0
        %v1699 = vadd.f32 0.0, %v1698
        %v1700 = vpop.f32.mrf.mxu0
        %v1701 = vadd.f32 0.0, %v1700
        %1702 = vmatmul.bf16.gmra.mxu0 %v1631
        %v1703 = vpop.f32.mrf.mxu0
        %v1704 = vadd.f32 0.0, %v1703
        %v1705 = vpop.f32.mrf.mxu0
        %v1706 = vadd.f32 0.0, %v1705
        %1707 = vmatmul.bf16.gmra.mxu0 %v1634
        %v1708 = vpop.f32.mrf.mxu0
        %v1709 = vadd.f32 0.0, %v1708
        %v1710 = vpop.f32.mrf.mxu0
        %v1711 = vadd.f32 0.0, %v1710
        %1712 = vmatmul.bf16.gmra.mxu0 %v1637
        %v1713 = vpop.f32.mrf.mxu0
        %v1714 = vadd.f32 0.0, %v1713
        %v1715 = vpop.f32.mrf.mxu0
        %v1716 = vadd.f32 0.0, %v1715
        %1717 = vmatmul.bf16.gmra.mxu0 %v1640
        %v1718 = vpop.f32.mrf.mxu0
        %v1719 = vadd.f32 0.0, %v1718
        %v1720 = vpop.f32.mrf.mxu0
        %v1721 = vadd.f32 0.0, %v1720
        %1722 = vmatmul.bf16.gmra.mxu0 %v1643
        %v1723 = vpop.f32.mrf.mxu0
        %v1724 = vadd.f32 0.0, %v1723
        %v1725 = vpop.f32.mrf.mxu0
        %v1726 = vadd.f32 0.0, %v1725
        %1727 = vmatmul.bf16.gmra.mxu0 %v1646
        %v1728 = vpop.f32.mrf.mxu0
        %v1729 = vadd.f32 0.0, %v1728
        %v1730 = vpop.f32.mrf.mxu0
        %v1731 = vadd.f32 0.0, %v1730
        %1732 = vmatmul.bf16.gmra.mxu0 %v1649
        %v1733 = vpop.f32.mrf.mxu0
        %v1734 = vadd.f32 0.0, %v1733
        %v1735 = vpop.f32.mrf.mxu0
        %v1736 = vadd.f32 0.0, %v1735
        %1737 = vmatmul.bf16.gmra.mxu0 %v1652
        %v1738 = vpop.f32.mrf.mxu0
        %v1739 = vadd.f32 0.0, %v1738
        %v1740 = vpop.f32.mrf.mxu0
        %v1741 = vadd.f32 0.0, %v1740
        %1742 = vmatmul.bf16.gmra.mxu0 %v1655
        %v1743 = vpop.f32.mrf.mxu0
        %v1744 = vadd.f32 0.0, %v1743
        %v1745 = vpop.f32.mrf.mxu0
        %v1746 = vadd.f32 0.0, %v1745
        %1747 = vmatmul.bf16.gmra.mxu0 %v1658
        %v1748 = vpop.f32.mrf.mxu0
        %v1749 = vadd.f32 0.0, %v1748
        %v1750 = vpop.f32.mrf.mxu0
        %v1751 = vadd.f32 0.0, %v1750
        %1752 = vmatmul.bf16.gmra.mxu0 %v1661
        %v1753 = vpop.f32.mrf.mxu0
        %v1754 = vadd.f32 0.0, %v1753
        %v1755 = vpop.f32.mrf.mxu0
        %v1756 = vadd.f32 0.0, %v1755
        %1757 = vmatmul.bf16.gmra.mxu0 %v1664
        %v1758 = vpop.f32.mrf.mxu0
        %v1759 = vadd.f32 0.0, %v1758
        %v1760 = vpop.f32.mrf.mxu0
        %v1761 = vadd.f32 0.0, %v1760
        %1762 = vmatmul.bf16.gmra.mxu0 %v1667
        %v1763 = vpop.f32.mrf.mxu0
        %v1764 = vadd.f32 0.0, %v1763
        %v1765 = vpop.f32.mrf.mxu0
        %v1766 = vadd.f32 0.0, %v1765
        %1767 = vdwg.mxu0
        %1768 = vmatpush.bf16.xpose.msra.mxu0 %v1661
        %1769 = vmatpush.bf16.xpose.msra.mxu0 %v1658
        %1770 = vmatpush.bf16.xpose.msra.mxu0 %v1655
        %1771 = vmatpush.bf16.xpose.msra.mxu0 %v1652
        %1772 = vmatpush.bf16.xpose.msra.mxu0 %v1649
        %1773 = vmatpush.bf16.xpose.msra.mxu0 %v1646
        %1774 = vmatpush.bf16.xpose.msra.mxu0 %v1643
        %1775 = vmatpush.bf16.xpose.msra.mxu0 %v1640
        %1776 = vmatmul.bf16.gmra.mxu0 %v1616
        %v1777 = vpop.f32.mrf.mxu0
        %v1778 = vadd.f32 0.0, %v1777
        %v1779 = vpop.f32.mrf.mxu0
        %v1780 = vadd.f32 0.0, %v1779
        %1781 = vmatmul.bf16.gmra.mxu0 %v1619
        %v1782 = vpop.f32.mrf.mxu0
        %v1783 = vadd.f32 0.0, %v1782
        %v1784 = vpop.f32.mrf.mxu0
        %v1785 = vadd.f32 0.0, %v1784
        %1786 = vmatmul.bf16.gmra.mxu0 %v1622
        %v1787 = vpop.f32.mrf.mxu0
        %v1788 = vadd.f32 0.0, %v1787
        %v1789 = vpop.f32.mrf.mxu0
        %v1790 = vadd.f32 0.0, %v1789
        %1791 = vmatmul.bf16.gmra.mxu0 %v1625
        %v1792 = vpop.f32.mrf.mxu0
        %v1793 = vadd.f32 0.0, %v1792
        %v1794 = vpop.f32.mrf.mxu0
        %v1795 = vadd.f32 0.0, %v1794
        %1796 = vmatmul.bf16.gmra.mxu0 %v1628
        %v1797 = vpop.f32.mrf.mxu0
        %v1798 = vadd.f32 0.0, %v1797
        %v1799 = vpop.f32.mrf.mxu0
        %v1800 = vadd.f32 0.0, %v1799
        %1801 = vmatmul.bf16.gmra.mxu0 %v1631
        %v1802 = vpop.f32.mrf.mxu0
        %v1803 = vadd.f32 0.0, %v1802
        %v1804 = vpop.f32.mrf.mxu0
        %v1805 = vadd.f32 0.0, %v1804
        %1806 = vmatmul.bf16.gmra.mxu0 %v1634
        %v1807 = vpop.f32.mrf.mxu0
        %v1808 = vadd.f32 0.0, %v1807
        %v1809 = vpop.f32.mrf.mxu0
        %v1810 = vadd.f32 0.0, %v1809
        %1811 = vmatmul.bf16.gmra.mxu0 %v1637
        %v1812 = vpop.f32.mrf.mxu0
        %v1813 = vadd.f32 0.0, %v1812
        %v1814 = vpop.f32.mrf.mxu0
        %v1815 = vadd.f32 0.0, %v1814
        %1816 = vmatmul.bf16.gmra.mxu0 %v1640
        %v1817 = vpop.f32.mrf.mxu0
        %v1818 = vadd.f32 0.0, %v1817
        %v1819 = vpop.f32.mrf.mxu0
        %v1820 = vadd.f32 0.0, %v1819
        %1821 = vmatmul.bf16.gmra.mxu0 %v1643
        %v1822 = vpop.f32.mrf.mxu0
        %v1823 = vadd.f32 0.0, %v1822
        %v1824 = vpop.f32.mrf.mxu0
        %v1825 = vadd.f32 0.0, %v1824
        %1826 = vmatmul.bf16.gmra.mxu0 %v1646
        %v1827 = vpop.f32.mrf.mxu0
        %v1828 = vadd.f32 0.0, %v1827
        %v1829 = vpop.f32.mrf.mxu0
        %v1830 = vadd.f32 0.0, %v1829
        %1831 = vmatmul.bf16.gmra.mxu0 %v1649
        %v1832 = vpop.f32.mrf.mxu0
        %v1833 = vadd.f32 0.0, %v1832
        %v1834 = vpop.f32.mrf.mxu0
        %v1835 = vadd.f32 0.0, %v1834
        %1836 = vmatmul.bf16.gmra.mxu0 %v1652
        %v1837 = vpop.f32.mrf.mxu0
        %v1838 = vadd.f32 0.0, %v1837
        %v1839 = vpop.f32.mrf.mxu0
        %v1840 = vadd.f32 0.0, %v1839
        %1841 = vmatmul.bf16.gmra.mxu0 %v1655
        %v1842 = vpop.f32.mrf.mxu0
        %v1843 = vadd.f32 0.0, %v1842
        %v1844 = vpop.f32.mrf.mxu0
        %v1845 = vadd.f32 0.0, %v1844
        %1846 = vmatmul.bf16.gmra.mxu0 %v1658
        %v1847 = vpop.f32.mrf.mxu0
        %v1848 = vadd.f32 0.0, %v1847
        %v1849 = vpop.f32.mrf.mxu0
        %v1850 = vadd.f32 0.0, %v1849
        %1851 = vmatmul.bf16.gmra.mxu0 %v1661
        %v1852 = vpop.f32.mrf.mxu0
        %v1853 = vadd.f32 0.0, %v1852
        %v1854 = vpop.f32.mrf.mxu0
        %v1855 = vadd.f32 0.0, %v1854
        %1856 = vmatmul.bf16.gmra.mxu0 %v1664
        %v1857 = vpop.f32.mrf.mxu0
        %v1858 = vadd.f32 0.0, %v1857
        %v1859 = vpop.f32.mrf.mxu0
        %v1860 = vadd.f32 0.0, %v1859
        %1861 = vmatmul.bf16.gmra.mxu0 %v1667
        %v1862 = vpop.f32.mrf.mxu0
        %v1863 = vadd.f32 0.0, %v1862
        %v1864 = vpop.f32.mrf.mxu0
        %v1865 = vadd.f32 0.0, %v1864
        %1866 = vdwg.mxu0
        %1867 = vmatpush.bf16.xpose.msra.mxu0 0
        %1868 = vmatpush.bf16.xpose.msra.mxu0 0
        %1869 = vmatpush.bf16.xpose.msra.mxu0 0
        %1870 = vmatpush.bf16.xpose.msra.mxu0 0
        %1871 = vmatpush.bf16.xpose.msra.mxu0 0
        %1872 = vmatpush.bf16.xpose.msra.mxu0 0
        %1873 = vmatpush.bf16.xpose.msra.mxu0 %v1667
        %1874 = vmatpush.bf16.xpose.msra.mxu0 %v1664
        %1875 = vmatmul.bf16.gmra.mxu0 %v1616
        %v1876 = vpop.f32.mrf.mxu0
        %v1877 = vadd.f32 0.0, %v1876
        %v1878 = vpop.f32.mrf.mxu0
        %v1879 = vadd.f32 0.0, %v1878
        %1880 = vmatmul.bf16.gmra.mxu0 %v1619
        %v1881 = vpop.f32.mrf.mxu0
        %v1882 = vadd.f32 0.0, %v1881
        %v1883 = vpop.f32.mrf.mxu0
        %v1884 = vadd.f32 0.0, %v1883
        %1885 = vmatmul.bf16.gmra.mxu0 %v1622
        %v1886 = vpop.f32.mrf.mxu0
        %v1887 = vadd.f32 0.0, %v1886
        %v1888 = vpop.f32.mrf.mxu0
        %v1889 = vadd.f32 0.0, %v1888
        %1890 = vmatmul.bf16.gmra.mxu0 %v1625
        %v1891 = vpop.f32.mrf.mxu0
        %v1892 = vadd.f32 0.0, %v1891
        %v1893 = vpop.f32.mrf.mxu0
        %v1894 = vadd.f32 0.0, %v1893
        %1895 = vmatmul.bf16.gmra.mxu0 %v1628
        %v1896 = vpop.f32.mrf.mxu0
        %v1897 = vadd.f32 0.0, %v1896
        %v1898 = vpop.f32.mrf.mxu0
        %v1899 = vadd.f32 0.0, %v1898
        %1900 = vmatmul.bf16.gmra.mxu0 %v1631
        %v1901 = vpop.f32.mrf.mxu0
        %v1902 = vadd.f32 0.0, %v1901
        %v1903 = vpop.f32.mrf.mxu0
        %v1904 = vadd.f32 0.0, %v1903
        %1905 = vmatmul.bf16.gmra.mxu0 %v1634
        %v1906 = vpop.f32.mrf.mxu0
        %v1907 = vadd.f32 0.0, %v1906
        %v1908 = vpop.f32.mrf.mxu0
        %v1909 = vadd.f32 0.0, %v1908
        %1910 = vmatmul.bf16.gmra.mxu0 %v1637
        %v1911 = vpop.f32.mrf.mxu0
        %v1912 = vadd.f32 0.0, %v1911
        %v1913 = vpop.f32.mrf.mxu0
        %v1914 = vadd.f32 0.0, %v1913
        %1915 = vmatmul.bf16.gmra.mxu0 %v1640
        %v1916 = vpop.f32.mrf.mxu0
        %v1917 = vadd.f32 0.0, %v1916
        %v1918 = vpop.f32.mrf.mxu0
        %v1919 = vadd.f32 0.0, %v1918
        %1920 = vmatmul.bf16.gmra.mxu0 %v1643
        %v1921 = vpop.f32.mrf.mxu0
        %v1922 = vadd.f32 0.0, %v1921
        %v1923 = vpop.f32.mrf.mxu0
        %v1924 = vadd.f32 0.0, %v1923
        %1925 = vmatmul.bf16.gmra.mxu0 %v1646
        %v1926 = vpop.f32.mrf.mxu0
        %v1927 = vadd.f32 0.0, %v1926
        %v1928 = vpop.f32.mrf.mxu0
        %v1929 = vadd.f32 0.0, %v1928
        %1930 = vmatmul.bf16.gmra.mxu0 %v1649
        %v1931 = vpop.f32.mrf.mxu0
        %v1932 = vadd.f32 0.0, %v1931
        %v1933 = vpop.f32.mrf.mxu0
        %v1934 = vadd.f32 0.0, %v1933
        %1935 = vmatmul.bf16.gmra.mxu0 %v1652
        %v1936 = vpop.f32.mrf.mxu0
        %v1937 = vadd.f32 0.0, %v1936
        %v1938 = vpop.f32.mrf.mxu0
        %v1939 = vadd.f32 0.0, %v1938
        %1940 = vmatmul.bf16.gmra.mxu0 %v1655
        %v1941 = vpop.f32.mrf.mxu0
        %v1942 = vadd.f32 0.0, %v1941
        %v1943 = vpop.f32.mrf.mxu0
        %v1944 = vadd.f32 0.0, %v1943
        %1945 = vmatmul.bf16.gmra.mxu0 %v1658
        %v1946 = vpop.f32.mrf.mxu0
        %v1947 = vadd.f32 0.0, %v1946
        %v1948 = vpop.f32.mrf.mxu0
        %v1949 = vadd.f32 0.0, %v1948
        %1950 = vmatmul.bf16.gmra.mxu0 %v1661
        %v1951 = vpop.f32.mrf.mxu0
        %v1952 = vadd.f32 0.0, %v1951
        %v1953 = vpop.f32.mrf.mxu0
        %v1954 = vadd.f32 0.0, %v1953
        %1955 = vmatmul.bf16.gmra.mxu0 %v1664
        %v1956 = vpop.f32.mrf.mxu0
        %v1957 = vadd.f32 0.0, %v1956
        %v1958 = vpop.f32.mrf.mxu0
        %v1959 = vadd.f32 0.0, %v1958
        %1960 = vmatmul.bf16.gmra.mxu0 %v1667
        %v1961 = vpop.f32.mrf.mxu0
        %v1962 = vadd.f32 0.0, %v1961
        %v1963 = vpop.f32.mrf.mxu0
        %v1964 = vadd.f32 0.0, %v1963
        %1965 = vdwg.mxu0
        %v1966 = vmul.f32 %v1679, 1.442695
        %v1967 = vpow.pop %v1966
        %v1968 = vmul.f32 %v1778, 1.442695
        %v1969 = vpow.pop %v1968
        %v1970 = vmul.f32 %v1877, 1.442695
        %v1971 = vpow.pop %v1970
        %v1972 = vmul.f32 %v1681, 1.442695
        %v1973 = vpow.pop %v1972
        %v1974 = vmul.f32 %v1780, 1.442695
        %v1975 = vpow.pop %v1974
        %v1976 = vmul.f32 %v1879, 1.442695
        %v1977 = vpow.pop %v1976
        %v1978 = vmul.f32 %v1684, 1.442695
        %v1979 = vpow.pop %v1978
        %v1980 = vmul.f32 %v1783, 1.442695
        %v1981 = vpow.pop %v1980
        %v1982 = vmul.f32 %v1882, 1.442695
        %v1983 = vpow.pop %v1982
        %v1984 = vmul.f32 %v1686, 1.442695
        %v1985 = vpow.pop %v1984
        %v1986 = vmul.f32 %v1785, 1.442695
        %v1987 = vpow.pop %v1986
        %v1988 = vmul.f32 %v1884, 1.442695
        %v1989 = vpow.pop %v1988
        %v1990 = vmul.f32 %v1689, 1.442695
        %v1991 = vpow.pop %v1990
        %v1992 = vmul.f32 %v1788, 1.442695
        %v1993 = vpow.pop %v1992
        %v1994 = vmul.f32 %v1887, 1.442695
        %v1995 = vpow.pop %v1994
        %v1996 = vmul.f32 %v1691, 1.442695
        %v1997 = vpow.pop %v1996
        %v1998 = vmul.f32 %v1790, 1.442695
        %v1999 = vpow.pop %v1998
        %v2000 = vmul.f32 %v1889, 1.442695
        %v2001 = vpow.pop %v2000
        %v2002 = vmul.f32 %v1694, 1.442695
        %v2003 = vpow.pop %v2002
        %v2004 = vmul.f32 %v1793, 1.442695
        %v2005 = vpow.pop %v2004
        %v2006 = vmul.f32 %v1892, 1.442695
        %v2007 = vpow.pop %v2006
        %v2008 = vmul.f32 %v1696, 1.442695
        %v2009 = vpow.pop %v2008
        %v2010 = vmul.f32 %v1795, 1.442695
        %v2011 = vpow.pop %v2010
        %v2012 = vmul.f32 %v1894, 1.442695
        %v2013 = vpow.pop %v2012
        %v2014 = vmul.f32 %v1699, 1.442695
        %v2015 = vpow.pop %v2014
        %v2016 = vmul.f32 %v1798, 1.442695
        %v2017 = vpow.pop %v2016
        %v2018 = vmul.f32 %v1897, 1.442695
        %v2019 = vpow.pop %v2018
        %v2020 = vmul.f32 %v1701, 1.442695
        %v2021 = vpow.pop %v2020
        %v2022 = vmul.f32 %v1800, 1.442695
        %v2023 = vpow.pop %v2022
        %v2024 = vmul.f32 %v1899, 1.442695
        %v2025 = vpow.pop %v2024
        %v2026 = vmul.f32 %v1704, 1.442695
        %v2027 = vpow.pop %v2026
        %v2028 = vmul.f32 %v1803, 1.442695
        %v2029 = vpow.pop %v2028
        %v2030 = vmul.f32 %v1902, 1.442695
        %v2031 = vpow.pop %v2030
        %v2032 = vmul.f32 %v1706, 1.442695
        %v2033 = vpow.pop %v2032
        %v2034 = vmul.f32 %v1805, 1.442695
        %v2035 = vpow.pop %v2034
        %v2036 = vmul.f32 %v1904, 1.442695
        %v2037 = vpow.pop %v2036
        %v2038 = vmul.f32 %v1709, 1.442695
        %v2039 = vpow.pop %v2038
        %v2040 = vmul.f32 %v1808, 1.442695
        %v2041 = vpow.pop %v2040
        %v2042 = vmul.f32 %v1907, 1.442695
        %v2043 = vpow.pop %v2042
        %v2044 = vmul.f32 %v1711, 1.442695
        %v2045 = vpow.pop %v2044
        %v2046 = vmul.f32 %v1810, 1.442695
        %v2047 = vpow.pop %v2046
        %v2048 = vmul.f32 %v1909, 1.442695
        %v2049 = vpow.pop %v2048
        %v2050 = vmul.f32 %v1714, 1.442695
        %v2051 = vpow.pop %v2050
        %v2052 = vmul.f32 %v1813, 1.442695
        %v2053 = vpow.pop %v2052
        %v2054 = vmul.f32 %v1912, 1.442695
        %v2055 = vpow.pop %v2054
        %v2056 = vmul.f32 %v1716, 1.442695
        %v2057 = vpow.pop %v2056
        %v2058 = vmul.f32 %v1815, 1.442695
        %v2059 = vpow.pop %v2058
        %v2060 = vmul.f32 %v1914, 1.442695
        %v2061 = vpow.pop %v2060
        %v2062 = vmul.f32 %v1719, 1.442695
        %v2063 = vpow.pop %v2062
        %v2064 = vmul.f32 %v1818, 1.442695
        %v2065 = vpow.pop %v2064
        %v2066 = vmul.f32 %v1917, 1.442695
        %v2067 = vpow.pop %v2066
        %v2068 = vmul.f32 %v1721, 1.442695
        %v2069 = vpow.pop %v2068
        %v2070 = vmul.f32 %v1820, 1.442695
        %v2071 = vpow.pop %v2070
        %v2072 = vmul.f32 %v1919, 1.442695
        %v2073 = vpow.pop %v2072
        %v2074 = vmul.f32 %v1724, 1.442695
        %v2075 = vpow.pop %v2074
        %v2076 = vmul.f32 %v1823, 1.442695
        %v2077 = vpow.pop %v2076
        %v2078 = vmul.f32 %v1922, 1.442695
        %v2079 = vpow.pop %v2078
        %v2080 = vmul.f32 %v1726, 1.442695
        %v2081 = vpow.pop %v2080
        %v2082 = vmul.f32 %v1825, 1.442695
        %v2083 = vpow.pop %v2082
        %v2084 = vmul.f32 %v1924, 1.442695
        %v2085 = vpow.pop %v2084
        %v2086 = vmul.f32 %v1729, 1.442695
        %v2087 = vpow.pop %v2086
        %v2088 = vmul.f32 %v1828, 1.442695
        %v2089 = vpow.pop %v2088
        %v2090 = vmul.f32 %v1927, 1.442695
        %v2091 = vpow.pop %v2090
        %v2092 = vmul.f32 %v1731, 1.442695
        %v2093 = vpow.pop %v2092
        %v2094 = vmul.f32 %v1830, 1.442695
        %v2095 = vpow.pop %v2094
        %v2096 = vmul.f32 %v1929, 1.442695
        %v2097 = vpow.pop %v2096
        %v2098 = vmul.f32 %v1734, 1.442695
        %v2099 = vpow.pop %v2098
        %v2100 = vmul.f32 %v1833, 1.442695
        %v2101 = vpow.pop %v2100
        %v2102 = vmul.f32 %v1932, 1.442695
        %v2103 = vpow.pop %v2102
        %v2104 = vmul.f32 %v1736, 1.442695
        %v2105 = vpow.pop %v2104
        %v2106 = vmul.f32 %v1835, 1.442695
        %v2107 = vpow.pop %v2106
        %v2108 = vmul.f32 %v1934, 1.442695
        %v2109 = vpow.pop %v2108
        %v2110 = vmul.f32 %v1739, 1.442695
        %v2111 = vpow.pop %v2110
        %v2112 = vmul.f32 %v1838, 1.442695
        %v2113 = vpow.pop %v2112
        %v2114 = vmul.f32 %v1937, 1.442695
        %v2115 = vpow.pop %v2114
        %v2116 = vmul.f32 %v1741, 1.442695
        %v2117 = vpow.pop %v2116
        %v2118 = vmul.f32 %v1840, 1.442695
        %v2119 = vpow.pop %v2118
        %v2120 = vmul.f32 %v1939, 1.442695
        %v2121 = vpow.pop %v2120
        %v2122 = vmul.f32 %v1744, 1.442695
        %v2123 = vpow.pop %v2122
        %v2124 = vmul.f32 %v1843, 1.442695
        %v2125 = vpow.pop %v2124
        %v2126 = vmul.f32 %v1942, 1.442695
        %v2127 = vpow.pop %v2126
        %v2128 = vmul.f32 %v1746, 1.442695
        %v2129 = vpow.pop %v2128
        %v2130 = vmul.f32 %v1845, 1.442695
        %v2131 = vpow.pop %v2130
        %v2132 = vmul.f32 %v1944, 1.442695
        %v2133 = vpow.pop %v2132
        %v2134 = vmul.f32 %v1749, 1.442695
        %v2135 = vpow.pop %v2134
        %v2136 = vmul.f32 %v1848, 1.442695
        %v2137 = vpow.pop %v2136
        %v2138 = vmul.f32 %v1947, 1.442695
        %v2139 = vpow.pop %v2138
        %v2140 = vmul.f32 %v1751, 1.442695
        %v2141 = vpow.pop %v2140
        %v2142 = vmul.f32 %v1850, 1.442695
        %v2143 = vpow.pop %v2142
        %v2144 = vmul.f32 %v1949, 1.442695
        %v2145 = vpow.pop %v2144
        %v2146 = vmul.f32 %v1754, 1.442695
        %v2147 = vpow.pop %v2146
        %v2148 = vmul.f32 %v1853, 1.442695
        %v2149 = vpow.pop %v2148
        %v2150 = vmul.f32 %v1952, 1.442695
        %v2151 = vpow.pop %v2150
        %v2152 = vmul.f32 %v1756, 1.442695
        %v2153 = vpow.pop %v2152
        %v2154 = vmul.f32 %v1855, 1.442695
        %v2155 = vpow.pop %v2154
        %v2156 = vmul.f32 %v1954, 1.442695
        %v2157 = vpow.pop %v2156
        %v2158 = vmul.f32 %v1759, 1.442695
        %v2159 = vpow.pop %v2158
        %v2160 = vmul.f32 %v1858, 1.442695
        %v2161 = vpow.pop %v2160
        %v2162 = vmul.f32 %v1957, 1.442695
        %v2163 = vpow.pop %v2162
        %v2164 = vmul.f32 %v1761, 1.442695
        %v2165 = vpow.pop %v2164
        %v2166 = vmul.f32 %v1860, 1.442695
        %v2167 = vpow.pop %v2166
        %v2168 = vmul.f32 %v1959, 1.442695
        %v2169 = vpow.pop %v2168
        %v2170 = vmul.f32 %v1764, 1.442695
        %v2171 = vpow.pop %v2170
        %v2172 = vmul.f32 %v1863, 1.442695
        %v2173 = vpow.pop %v2172
        %v2174 = vmul.f32 %v1962, 1.442695
        %v2175 = vpow.pop %v2174
        %v2176 = vmul.f32 %v1766, 1.442695
        %v2177 = vpow.pop %v2176
        %v2178 = vmul.f32 %v1865, 1.442695
        %v2179 = vpow.pop %v2178
        %v2180 = vmul.f32 %v1964, 1.442695
        %v2181 = vpow.pop %v2180
        %v2182 = vadd.f32 %v1967, %v1969
        %v2183 = vsel %vm480, %v1971, 0.0
        %v2184 = vadd.f32 %v2182, %v2183
        %2185 = vadd.xlane.f32.xlu0 %v2184
        %v2186 = vpop.xlane.xlu0 %2185
        %v2187 = vadd.f32 %v1973, %v1975
        %v2188 = vsel %vm480, %v1977, 0.0
        %v2189 = vadd.f32 %v2187, %v2188
        %2190 = vadd.xlane.f32.xlu0 %v2189
        %v2191 = vpop.xlane.xlu0 %2190
        %v2192 = vadd.f32 %v1979, %v1981
        %v2193 = vsel %vm480, %v1983, 0.0
        %v2194 = vadd.f32 %v2192, %v2193
        %2195 = vadd.xlane.f32.xlu0 %v2194
        %v2196 = vpop.xlane.xlu0 %2195
        %v2197 = vadd.f32 %v1985, %v1987
        %v2198 = vsel %vm480, %v1989, 0.0
        %v2199 = vadd.f32 %v2197, %v2198
        %2200 = vadd.xlane.f32.xlu0 %v2199
        %v2201 = vpop.xlane.xlu0 %2200
        %v2202 = vadd.f32 %v1991, %v1993
        %v2203 = vsel %vm480, %v1995, 0.0
        %v2204 = vadd.f32 %v2202, %v2203
        %2205 = vadd.xlane.f32.xlu0 %v2204
        %v2206 = vpop.xlane.xlu0 %2205
        %v2207 = vadd.f32 %v1997, %v1999
        %v2208 = vsel %vm480, %v2001, 0.0
        %v2209 = vadd.f32 %v2207, %v2208
        %2210 = vadd.xlane.f32.xlu0 %v2209
        %v2211 = vpop.xlane.xlu0 %2210
        %v2212 = vadd.f32 %v2003, %v2005
        %v2213 = vsel %vm480, %v2007, 0.0
        %v2214 = vadd.f32 %v2212, %v2213
        %2215 = vadd.xlane.f32.xlu0 %v2214
        %v2216 = vpop.xlane.xlu0 %2215
        %v2217 = vadd.f32 %v2009, %v2011
        %v2218 = vsel %vm480, %v2013, 0.0
        %v2219 = vadd.f32 %v2217, %v2218
        %2220 = vadd.xlane.f32.xlu0 %v2219
        %v2221 = vpop.xlane.xlu0 %2220
        %v2222 = vadd.f32 %v2015, %v2017
        %v2223 = vsel %vm480, %v2019, 0.0
        %v2224 = vadd.f32 %v2222, %v2223
        %2225 = vadd.xlane.f32.xlu0 %v2224
        %v2226 = vpop.xlane.xlu0 %2225
        %v2227 = vadd.f32 %v2021, %v2023
        %v2228 = vsel %vm480, %v2025, 0.0
        %v2229 = vadd.f32 %v2227, %v2228
        %2230 = vadd.xlane.f32.xlu0 %v2229
        %v2231 = vpop.xlane.xlu0 %2230
        %v2232 = vadd.f32 %v2027, %v2029
        %v2233 = vsel %vm480, %v2031, 0.0
        %v2234 = vadd.f32 %v2232, %v2233
        %2235 = vadd.xlane.f32.xlu0 %v2234
        %v2236 = vpop.xlane.xlu0 %2235
        %v2237 = vadd.f32 %v2033, %v2035
        %v2238 = vsel %vm480, %v2037, 0.0
        %v2239 = vadd.f32 %v2237, %v2238
        %2240 = vadd.xlane.f32.xlu0 %v2239
        %v2241 = vpop.xlane.xlu0 %2240
        %v2242 = vadd.f32 %v2039, %v2041
        %v2243 = vsel %vm480, %v2043, 0.0
        %v2244 = vadd.f32 %v2242, %v2243
        %2245 = vadd.xlane.f32.xlu0 %v2244
        %v2246 = vpop.xlane.xlu0 %2245
        %v2247 = vadd.f32 %v2045, %v2047
        %v2248 = vsel %vm480, %v2049, 0.0
        %v2249 = vadd.f32 %v2247, %v2248
        %2250 = vadd.xlane.f32.xlu0 %v2249
        %v2251 = vpop.xlane.xlu0 %2250
        %v2252 = vadd.f32 %v2051, %v2053
        %v2253 = vsel %vm480, %v2055, 0.0
        %v2254 = vadd.f32 %v2252, %v2253
        %2255 = vadd.xlane.f32.xlu0 %v2254
        %v2256 = vpop.xlane.xlu0 %2255
        %v2257 = vadd.f32 %v2057, %v2059
        %v2258 = vsel %vm480, %v2061, 0.0
        %v2259 = vadd.f32 %v2257, %v2258
        %2260 = vadd.xlane.f32.xlu0 %v2259
        %v2261 = vpop.xlane.xlu0 %2260
        %v2262 = vadd.f32 %v2063, %v2065
        %v2263 = vsel %vm480, %v2067, 0.0
        %v2264 = vadd.f32 %v2262, %v2263
        %2265 = vadd.xlane.f32.xlu0 %v2264
        %v2266 = vpop.xlane.xlu0 %2265
        %v2267 = vadd.f32 %v2069, %v2071
        %v2268 = vsel %vm480, %v2073, 0.0
        %v2269 = vadd.f32 %v2267, %v2268
        %2270 = vadd.xlane.f32.xlu0 %v2269
        %v2271 = vpop.xlane.xlu0 %2270
        %v2272 = vadd.f32 %v2075, %v2077
        %v2273 = vsel %vm480, %v2079, 0.0
        %v2274 = vadd.f32 %v2272, %v2273
        %2275 = vadd.xlane.f32.xlu0 %v2274
        %v2276 = vpop.xlane.xlu0 %2275
        %v2277 = vadd.f32 %v2081, %v2083
        %v2278 = vsel %vm480, %v2085, 0.0
        %v2279 = vadd.f32 %v2277, %v2278
        %2280 = vadd.xlane.f32.xlu0 %v2279
        %v2281 = vpop.xlane.xlu0 %2280
        %v2282 = vadd.f32 %v2087, %v2089
        %v2283 = vsel %vm480, %v2091, 0.0
        %v2284 = vadd.f32 %v2282, %v2283
        %2285 = vadd.xlane.f32.xlu0 %v2284
        %v2286 = vpop.xlane.xlu0 %2285
        %v2287 = vadd.f32 %v2093, %v2095
        %v2288 = vsel %vm480, %v2097, 0.0
        %v2289 = vadd.f32 %v2287, %v2288
        %2290 = vadd.xlane.f32.xlu0 %v2289
        %v2291 = vpop.xlane.xlu0 %2290
        %v2292 = vadd.f32 %v2099, %v2101
        %v2293 = vsel %vm480, %v2103, 0.0
        %v2294 = vadd.f32 %v2292, %v2293
        %2295 = vadd.xlane.f32.xlu0 %v2294
        %v2296 = vpop.xlane.xlu0 %2295
        %v2297 = vadd.f32 %v2105, %v2107
        %v2298 = vsel %vm480, %v2109, 0.0
        %v2299 = vadd.f32 %v2297, %v2298
        %2300 = vadd.xlane.f32.xlu0 %v2299
        %v2301 = vpop.xlane.xlu0 %2300
        %v2302 = vadd.f32 %v2111, %v2113
        %v2303 = vsel %vm480, %v2115, 0.0
        %v2304 = vadd.f32 %v2302, %v2303
        %2305 = vadd.xlane.f32.xlu0 %v2304
        %v2306 = vpop.xlane.xlu0 %2305
        %v2307 = vadd.f32 %v2117, %v2119
        %v2308 = vsel %vm480, %v2121, 0.0
        %v2309 = vadd.f32 %v2307, %v2308
        %2310 = vadd.xlane.f32.xlu0 %v2309
        %v2311 = vpop.xlane.xlu0 %2310
        %v2312 = vadd.f32 %v2123, %v2125
        %v2313 = vsel %vm480, %v2127, 0.0
        %v2314 = vadd.f32 %v2312, %v2313
        %2315 = vadd.xlane.f32.xlu0 %v2314
        %v2316 = vpop.xlane.xlu0 %2315
        %v2317 = vadd.f32 %v2129, %v2131
        %v2318 = vsel %vm480, %v2133, 0.0
        %v2319 = vadd.f32 %v2317, %v2318
        %2320 = vadd.xlane.f32.xlu0 %v2319
        %v2321 = vpop.xlane.xlu0 %2320
        %v2322 = vadd.f32 %v2135, %v2137
        %v2323 = vsel %vm480, %v2139, 0.0
        %v2324 = vadd.f32 %v2322, %v2323
        %2325 = vadd.xlane.f32.xlu0 %v2324
        %v2326 = vpop.xlane.xlu0 %2325
        %v2327 = vadd.f32 %v2141, %v2143
        %v2328 = vsel %vm480, %v2145, 0.0
        %v2329 = vadd.f32 %v2327, %v2328
        %2330 = vadd.xlane.f32.xlu0 %v2329
        %v2331 = vpop.xlane.xlu0 %2330
        %v2332 = vadd.f32 %v2147, %v2149
        %v2333 = vsel %vm480, %v2151, 0.0
        %v2334 = vadd.f32 %v2332, %v2333
        %2335 = vadd.xlane.f32.xlu0 %v2334
        %v2336 = vpop.xlane.xlu0 %2335
        %v2337 = vadd.f32 %v2153, %v2155
        %v2338 = vsel %vm480, %v2157, 0.0
        %v2339 = vadd.f32 %v2337, %v2338
        %2340 = vadd.xlane.f32.xlu0 %v2339
        %v2341 = vpop.xlane.xlu0 %2340
        %v2342 = vadd.f32 %v2159, %v2161
        %v2343 = vsel %vm480, %v2163, 0.0
        %v2344 = vadd.f32 %v2342, %v2343
        %2345 = vadd.xlane.f32.xlu0 %v2344
        %v2346 = vpop.xlane.xlu0 %2345
        %v2347 = vadd.f32 %v2165, %v2167
        %v2348 = vsel %vm480, %v2169, 0.0
        %v2349 = vadd.f32 %v2347, %v2348
        %2350 = vadd.xlane.f32.xlu0 %v2349
        %v2351 = vpop.xlane.xlu0 %2350
        %v2352 = vadd.f32 %v2171, %v2173
        %v2353 = vsel %vm480, %v2175, 0.0
        %v2354 = vadd.f32 %v2352, %v2353
        %2355 = vadd.xlane.f32.xlu0 %v2354
        %v2356 = vpop.xlane.xlu0 %2355
        %v2357 = vadd.f32 %v2177, %v2179
        %v2358 = vsel %vm480, %v2181, 0.0
        %v2359 = vadd.f32 %v2357, %v2358
        %2360 = vadd.xlane.f32.xlu0 %v2359
        %v2361 = vpop.xlane.xlu0 %2360
        %v2362 = vrcp.pop %v2186
        %v2363 = vrcp.pop %v2191
        %v2364 = vrcp.pop %v2196
        %v2365 = vrcp.pop %v2201
        %v2366 = vrcp.pop %v2206
        %v2367 = vrcp.pop %v2211
        %v2368 = vrcp.pop %v2216
        %v2369 = vrcp.pop %v2221
        %v2370 = vrcp.pop %v2226
        %v2371 = vrcp.pop %v2231
        %v2372 = vrcp.pop %v2236
        %v2373 = vrcp.pop %v2241
        %v2374 = vrcp.pop %v2246
        %v2375 = vrcp.pop %v2251
        %v2376 = vrcp.pop %v2256
        %v2377 = vrcp.pop %v2261
        %v2378 = vrcp.pop %v2266
        %v2379 = vrcp.pop %v2271
        %v2380 = vrcp.pop %v2276
        %v2381 = vrcp.pop %v2281
        %v2382 = vrcp.pop %v2286
        %v2383 = vrcp.pop %v2291
        %v2384 = vrcp.pop %v2296
        %v2385 = vrcp.pop %v2301
        %v2386 = vrcp.pop %v2306
        %v2387 = vrcp.pop %v2311
        %v2388 = vrcp.pop %v2316
        %v2389 = vrcp.pop %v2321
        %v2390 = vrcp.pop %v2326
        %v2391 = vrcp.pop %v2331
        %v2392 = vrcp.pop %v2336
        %v2393 = vrcp.pop %v2341
        %v2394 = vrcp.pop %v2346
        %v2395 = vrcp.pop %v2351
        %v2396 = vrcp.pop %v2356
        %v2397 = vrcp.pop %v2361
        %v2398 = vpack.c.bf16 %v1973, %v1967
        %v2399 = vpack.c.bf16 %v1975, %v1969
        %v2400 = vpack.c.bf16 %v1977, %v1971
        %v2401 = vpack.c.bf16 %v1985, %v1979
        %v2402 = vpack.c.bf16 %v1987, %v1981
        %v2403 = vpack.c.bf16 %v1989, %v1983
        %v2404 = vpack.c.bf16 %v1997, %v1991
        %v2405 = vpack.c.bf16 %v1999, %v1993
        %v2406 = vpack.c.bf16 %v2001, %v1995
        %v2407 = vpack.c.bf16 %v2009, %v2003
        %v2408 = vpack.c.bf16 %v2011, %v2005
        %v2409 = vpack.c.bf16 %v2013, %v2007
        %v2410 = vpack.c.bf16 %v2021, %v2015
        %v2411 = vpack.c.bf16 %v2023, %v2017
        %v2412 = vpack.c.bf16 %v2025, %v2019
        %v2413 = vpack.c.bf16 %v2033, %v2027
        %v2414 = vpack.c.bf16 %v2035, %v2029
        %v2415 = vpack.c.bf16 %v2037, %v2031
        %v2416 = vpack.c.bf16 %v2045, %v2039
        %v2417 = vpack.c.bf16 %v2047, %v2041
        %v2418 = vpack.c.bf16 %v2049, %v2043
        %v2419 = vpack.c.bf16 %v2057, %v2051
        %v2420 = vpack.c.bf16 %v2059, %v2053
        %v2421 = vpack.c.bf16 %v2061, %v2055
        %v2422 = vpack.c.bf16 %v2069, %v2063
        %v2423 = vpack.c.bf16 %v2071, %v2065
        %v2424 = vpack.c.bf16 %v2073, %v2067
        %v2425 = vpack.c.bf16 %v2081, %v2075
        %v2426 = vpack.c.bf16 %v2083, %v2077
        %v2427 = vpack.c.bf16 %v2085, %v2079
        %v2428 = vpack.c.bf16 %v2093, %v2087
        %v2429 = vpack.c.bf16 %v2095, %v2089
        %v2430 = vpack.c.bf16 %v2097, %v2091
        %v2431 = vpack.c.bf16 %v2105, %v2099
        %v2432 = vpack.c.bf16 %v2107, %v2101
        %v2433 = vpack.c.bf16 %v2109, %v2103
        %v2434 = vpack.c.bf16 %v2117, %v2111
        %v2435 = vpack.c.bf16 %v2119, %v2113
        %v2436 = vpack.c.bf16 %v2121, %v2115
        %v2437 = vpack.c.bf16 %v2129, %v2123
        %v2438 = vpack.c.bf16 %v2131, %v2125
        %v2439 = vpack.c.bf16 %v2133, %v2127
        %v2440 = vpack.c.bf16 %v2141, %v2135
        %v2441 = vpack.c.bf16 %v2143, %v2137
        %v2442 = vpack.c.bf16 %v2145, %v2139
        %v2443 = vpack.c.bf16 %v2153, %v2147
        %v2444 = vpack.c.bf16 %v2155, %v2149
        %v2445 = vpack.c.bf16 %v2157, %v2151
        %v2446 = vpack.c.bf16 %v2165, %v2159
        %v2447 = vpack.c.bf16 %v2167, %v2161
        %v2448 = vpack.c.bf16 %v2169, %v2163
        %v2449 = vpack.c.bf16 %v2177, %v2171
        %v2450 = vpack.c.bf16 %v2179, %v2173
        %v2451 = vpack.c.bf16 %v2181, %v2175
        %v2452 = vpack.c.bf16 %v404, %v403
        %v2453 = vpack.c.bf16 %v406, %v405
        %v2454 = vpack.c.bf16 %v408, %v407
        %v2455 = vpack.c.bf16 %v410, %v409
        %v2456 = vpack.c.bf16 %v412, %v411
        %v2457 = vpack.c.bf16 %v414, %v413
        %v2458 = vpack.c.bf16 %v416, %v415
        %v2459 = vpack.c.bf16 %v418, %v417
        %v2460 = vpack.c.bf16 %v420, %v419
        %v2461 = vpack.c.bf16 %v422, %v421
        %v2462 = vpack.c.bf16 %v424, %v423
        %v2463 = vpack.c.bf16 %v426, %v425
        %v2464 = vpack.c.bf16 %v428, %v427
        %v2465 = vpack.c.bf16 %v430, %v429
        %v2466 = vpack.c.bf16 %v432, %v431
        %v2467 = vpack.c.bf16 %v434, %v433
        %v2468 = vpack.c.bf16 %v436, %v435
        %v2469 = vpack.c.bf16 %v438, %v437
        %v2471 = vsel %vm480, %v2400, 0
        %v2474 = vsel %vm480, %v2403, 0
        %v2477 = vsel %vm480, %v2406, 0
        %v2480 = vsel %vm480, %v2409, 0
        %v2483 = vsel %vm480, %v2412, 0
        %v2486 = vsel %vm480, %v2415, 0
        %v2489 = vsel %vm480, %v2418, 0
        %v2492 = vsel %vm480, %v2421, 0
        %v2495 = vsel %vm480, %v2424, 0
        %v2498 = vsel %vm480, %v2427, 0
        %v2501 = vsel %vm480, %v2430, 0
        %v2504 = vsel %vm480, %v2433, 0
        %v2507 = vsel %vm480, %v2436, 0
        %v2510 = vsel %vm480, %v2439, 0
        %v2513 = vsel %vm480, %v2442, 0
        %v2516 = vsel %vm480, %v2445, 0
        %v2519 = vsel %vm480, %v2448, 0
        %v2522 = vsel %vm480, %v2451, 0
        %2524 = vmatpush.bf16.msra.mxu0 %v2459
        %2525 = vmatpush.bf16.msra.mxu0 %v2458
        %2526 = vmatpush.bf16.msra.mxu0 %v2457
        %2527 = vmatpush.bf16.msra.mxu0 %v2456
        %2528 = vmatpush.bf16.msra.mxu0 %v2455
        %2529 = vmatpush.bf16.msra.mxu0 %v2454
        %2530 = vmatpush.bf16.msra.mxu0 %v2453
        %2531 = vmatpush.bf16.msra.mxu0 %v2452
        %2532 = vmatmul.bf16.gmra.mxu0 %v2398
        %v2533 = vpop.f32.mrf.mxu0
        %v2534 = vadd.f32 0.0, %v2533
        %v2535 = vpop.f32.mrf.mxu0
        %v2536 = vadd.f32 0.0, %v2535
        %2537 = vmatmul.bf16.gmra.mxu0 %v2401
        %v2538 = vpop.f32.mrf.mxu0
        %v2539 = vadd.f32 0.0, %v2538
        %v2540 = vpop.f32.mrf.mxu0
        %v2541 = vadd.f32 0.0, %v2540
        %2542 = vmatmul.bf16.gmra.mxu0 %v2404
        %v2543 = vpop.f32.mrf.mxu0
        %v2544 = vadd.f32 0.0, %v2543
        %v2545 = vpop.f32.mrf.mxu0
        %v2546 = vadd.f32 0.0, %v2545
        %2547 = vmatmul.bf16.gmra.mxu0 %v2407
        %v2548 = vpop.f32.mrf.mxu0
        %v2549 = vadd.f32 0.0, %v2548
        %v2550 = vpop.f32.mrf.mxu0
        %v2551 = vadd.f32 0.0, %v2550
        %2552 = vmatmul.bf16.gmra.mxu0 %v2410
        %v2553 = vpop.f32.mrf.mxu0
        %v2554 = vadd.f32 0.0, %v2553
        %v2555 = vpop.f32.mrf.mxu0
        %v2556 = vadd.f32 0.0, %v2555
        %2557 = vmatmul.bf16.gmra.mxu0 %v2413
        %v2558 = vpop.f32.mrf.mxu0
        %v2559 = vadd.f32 0.0, %v2558
        %v2560 = vpop.f32.mrf.mxu0
        %v2561 = vadd.f32 0.0, %v2560
        %2562 = vmatmul.bf16.gmra.mxu0 %v2416
        %v2563 = vpop.f32.mrf.mxu0
        %v2564 = vadd.f32 0.0, %v2563
        %v2565 = vpop.f32.mrf.mxu0
        %v2566 = vadd.f32 0.0, %v2565
        %2567 = vmatmul.bf16.gmra.mxu0 %v2419
        %v2568 = vpop.f32.mrf.mxu0
        %v2569 = vadd.f32 0.0, %v2568
        %v2570 = vpop.f32.mrf.mxu0
        %v2571 = vadd.f32 0.0, %v2570
        %2572 = vmatmul.bf16.gmra.mxu0 %v2422
        %v2573 = vpop.f32.mrf.mxu0
        %v2574 = vadd.f32 0.0, %v2573
        %v2575 = vpop.f32.mrf.mxu0
        %v2576 = vadd.f32 0.0, %v2575
        %2577 = vmatmul.bf16.gmra.mxu0 %v2425
        %v2578 = vpop.f32.mrf.mxu0
        %v2579 = vadd.f32 0.0, %v2578
        %v2580 = vpop.f32.mrf.mxu0
        %v2581 = vadd.f32 0.0, %v2580
        %2582 = vmatmul.bf16.gmra.mxu0 %v2428
        %v2583 = vpop.f32.mrf.mxu0
        %v2584 = vadd.f32 0.0, %v2583
        %v2585 = vpop.f32.mrf.mxu0
        %v2586 = vadd.f32 0.0, %v2585
        %2587 = vmatmul.bf16.gmra.mxu0 %v2431
        %v2588 = vpop.f32.mrf.mxu0
        %v2589 = vadd.f32 0.0, %v2588
        %v2590 = vpop.f32.mrf.mxu0
        %v2591 = vadd.f32 0.0, %v2590
        %2592 = vmatmul.bf16.gmra.mxu0 %v2434
        %v2593 = vpop.f32.mrf.mxu0
        %v2594 = vadd.f32 0.0, %v2593
        %v2595 = vpop.f32.mrf.mxu0
        %v2596 = vadd.f32 0.0, %v2595
        %2597 = vmatmul.bf16.gmra.mxu0 %v2437
        %v2598 = vpop.f32.mrf.mxu0
        %v2599 = vadd.f32 0.0, %v2598
        %v2600 = vpop.f32.mrf.mxu0
        %v2601 = vadd.f32 0.0, %v2600
        %2602 = vmatmul.bf16.gmra.mxu0 %v2440
        %v2603 = vpop.f32.mrf.mxu0
        %v2604 = vadd.f32 0.0, %v2603
        %v2605 = vpop.f32.mrf.mxu0
        %v2606 = vadd.f32 0.0, %v2605
        %2607 = vmatmul.bf16.gmra.mxu0 %v2443
        %v2608 = vpop.f32.mrf.mxu0
        %v2609 = vadd.f32 0.0, %v2608
        %v2610 = vpop.f32.mrf.mxu0
        %v2611 = vadd.f32 0.0, %v2610
        %2612 = vmatmul.bf16.gmra.mxu0 %v2446
        %v2613 = vpop.f32.mrf.mxu0
        %v2614 = vadd.f32 0.0, %v2613
        %v2615 = vpop.f32.mrf.mxu0
        %v2616 = vadd.f32 0.0, %v2615
        %2617 = vmatmul.bf16.gmra.mxu0 %v2449
        %v2618 = vpop.f32.mrf.mxu0
        %v2619 = vadd.f32 0.0, %v2618
        %v2620 = vpop.f32.mrf.mxu0
        %v2621 = vadd.f32 0.0, %v2620
        %2622 = vdwg.mxu0
        %2623 = vmatpush.bf16.msra.mxu0 %v2467
        %2624 = vmatpush.bf16.msra.mxu0 %v2466
        %2625 = vmatpush.bf16.msra.mxu0 %v2465
        %2626 = vmatpush.bf16.msra.mxu0 %v2464
        %2627 = vmatpush.bf16.msra.mxu0 %v2463
        %2628 = vmatpush.bf16.msra.mxu0 %v2462
        %2629 = vmatpush.bf16.msra.mxu0 %v2461
        %2630 = vmatpush.bf16.msra.mxu0 %v2460
        %2631 = vmatmul.bf16.gmra.mxu0 %v2399
        %v2632 = vpop.f32.mrf.mxu0
        %v2633 = vadd.f32 %v2534, %v2632
        %v2634 = vpop.f32.mrf.mxu0
        %v2635 = vadd.f32 %v2536, %v2634
        %2636 = vmatmul.bf16.gmra.mxu0 %v2402
        %v2637 = vpop.f32.mrf.mxu0
        %v2638 = vadd.f32 %v2539, %v2637
        %v2639 = vpop.f32.mrf.mxu0
        %v2640 = vadd.f32 %v2541, %v2639
        %2641 = vmatmul.bf16.gmra.mxu0 %v2405
        %v2642 = vpop.f32.mrf.mxu0
        %v2643 = vadd.f32 %v2544, %v2642
        %v2644 = vpop.f32.mrf.mxu0
        %v2645 = vadd.f32 %v2546, %v2644
        %2646 = vmatmul.bf16.gmra.mxu0 %v2408
        %v2647 = vpop.f32.mrf.mxu0
        %v2648 = vadd.f32 %v2549, %v2647
        %v2649 = vpop.f32.mrf.mxu0
        %v2650 = vadd.f32 %v2551, %v2649
        %2651 = vmatmul.bf16.gmra.mxu0 %v2411
        %v2652 = vpop.f32.mrf.mxu0
        %v2653 = vadd.f32 %v2554, %v2652
        %v2654 = vpop.f32.mrf.mxu0
        %v2655 = vadd.f32 %v2556, %v2654
        %2656 = vmatmul.bf16.gmra.mxu0 %v2414
        %v2657 = vpop.f32.mrf.mxu0
        %v2658 = vadd.f32 %v2559, %v2657
        %v2659 = vpop.f32.mrf.mxu0
        %v2660 = vadd.f32 %v2561, %v2659
        %2661 = vmatmul.bf16.gmra.mxu0 %v2417
        %v2662 = vpop.f32.mrf.mxu0
        %v2663 = vadd.f32 %v2564, %v2662
        %v2664 = vpop.f32.mrf.mxu0
        %v2665 = vadd.f32 %v2566, %v2664
        %2666 = vmatmul.bf16.gmra.mxu0 %v2420
        %v2667 = vpop.f32.mrf.mxu0
        %v2668 = vadd.f32 %v2569, %v2667
        %v2669 = vpop.f32.mrf.mxu0
        %v2670 = vadd.f32 %v2571, %v2669
        %2671 = vmatmul.bf16.gmra.mxu0 %v2423
        %v2672 = vpop.f32.mrf.mxu0
        %v2673 = vadd.f32 %v2574, %v2672
        %v2674 = vpop.f32.mrf.mxu0
        %v2675 = vadd.f32 %v2576, %v2674
        %2676 = vmatmul.bf16.gmra.mxu0 %v2426
        %v2677 = vpop.f32.mrf.mxu0
        %v2678 = vadd.f32 %v2579, %v2677
        %v2679 = vpop.f32.mrf.mxu0
        %v2680 = vadd.f32 %v2581, %v2679
        %2681 = vmatmul.bf16.gmra.mxu0 %v2429
        %v2682 = vpop.f32.mrf.mxu0
        %v2683 = vadd.f32 %v2584, %v2682
        %v2684 = vpop.f32.mrf.mxu0
        %v2685 = vadd.f32 %v2586, %v2684
        %2686 = vmatmul.bf16.gmra.mxu0 %v2432
        %v2687 = vpop.f32.mrf.mxu0
        %v2688 = vadd.f32 %v2589, %v2687
        %v2689 = vpop.f32.mrf.mxu0
        %v2690 = vadd.f32 %v2591, %v2689
        %2691 = vmatmul.bf16.gmra.mxu0 %v2435
        %v2692 = vpop.f32.mrf.mxu0
        %v2693 = vadd.f32 %v2594, %v2692
        %v2694 = vpop.f32.mrf.mxu0
        %v2695 = vadd.f32 %v2596, %v2694
        %2696 = vmatmul.bf16.gmra.mxu0 %v2438
        %v2697 = vpop.f32.mrf.mxu0
        %v2698 = vadd.f32 %v2599, %v2697
        %v2699 = vpop.f32.mrf.mxu0
        %v2700 = vadd.f32 %v2601, %v2699
        %2701 = vmatmul.bf16.gmra.mxu0 %v2441
        %v2702 = vpop.f32.mrf.mxu0
        %v2703 = vadd.f32 %v2604, %v2702
        %v2704 = vpop.f32.mrf.mxu0
        %v2705 = vadd.f32 %v2606, %v2704
        %2706 = vmatmul.bf16.gmra.mxu0 %v2444
        %v2707 = vpop.f32.mrf.mxu0
        %v2708 = vadd.f32 %v2609, %v2707
        %v2709 = vpop.f32.mrf.mxu0
        %v2710 = vadd.f32 %v2611, %v2709
        %2711 = vmatmul.bf16.gmra.mxu0 %v2447
        %v2712 = vpop.f32.mrf.mxu0
        %v2713 = vadd.f32 %v2614, %v2712
        %v2714 = vpop.f32.mrf.mxu0
        %v2715 = vadd.f32 %v2616, %v2714
        %2716 = vmatmul.bf16.gmra.mxu0 %v2450
        %v2717 = vpop.f32.mrf.mxu0
        %v2718 = vadd.f32 %v2619, %v2717
        %v2719 = vpop.f32.mrf.mxu0
        %v2720 = vadd.f32 %v2621, %v2719
        %2721 = vdwg.mxu0
        %2722 = vmatpush.bf16.msra.mxu0 0
        %2723 = vmatpush.bf16.msra.mxu0 0
        %2724 = vmatpush.bf16.msra.mxu0 0
        %2725 = vmatpush.bf16.msra.mxu0 0
        %2726 = vmatpush.bf16.msra.mxu0 0
        %2727 = vmatpush.bf16.msra.mxu0 0
        %2728 = vmatpush.bf16.msra.mxu0 %v2469
        %2729 = vmatpush.bf16.msra.mxu0 %v2468
        %2730 = vmatmul.bf16.gmra.mxu0 %v2471
        %v2731 = vpop.f32.mrf.mxu0
        %v2732 = vadd.f32 %v2633, %v2731
        %v2733 = vpop.f32.mrf.mxu0
        %v2734 = vadd.f32 %v2635, %v2733
        %2735 = vmatmul.bf16.gmra.mxu0 %v2474
        %v2736 = vpop.f32.mrf.mxu0
        %v2737 = vadd.f32 %v2638, %v2736
        %v2738 = vpop.f32.mrf.mxu0
        %v2739 = vadd.f32 %v2640, %v2738
        %2740 = vmatmul.bf16.gmra.mxu0 %v2477
        %v2741 = vpop.f32.mrf.mxu0
        %v2742 = vadd.f32 %v2643, %v2741
        %v2743 = vpop.f32.mrf.mxu0
        %v2744 = vadd.f32 %v2645, %v2743
        %2745 = vmatmul.bf16.gmra.mxu0 %v2480
        %v2746 = vpop.f32.mrf.mxu0
        %v2747 = vadd.f32 %v2648, %v2746
        %v2748 = vpop.f32.mrf.mxu0
        %v2749 = vadd.f32 %v2650, %v2748
        %2750 = vmatmul.bf16.gmra.mxu0 %v2483
        %v2751 = vpop.f32.mrf.mxu0
        %v2752 = vadd.f32 %v2653, %v2751
        %v2753 = vpop.f32.mrf.mxu0
        %v2754 = vadd.f32 %v2655, %v2753
        %2755 = vmatmul.bf16.gmra.mxu0 %v2486
        %v2756 = vpop.f32.mrf.mxu0
        %v2757 = vadd.f32 %v2658, %v2756
        %v2758 = vpop.f32.mrf.mxu0
        %v2759 = vadd.f32 %v2660, %v2758
        %2760 = vmatmul.bf16.gmra.mxu0 %v2489
        %v2761 = vpop.f32.mrf.mxu0
        %v2762 = vadd.f32 %v2663, %v2761
        %v2763 = vpop.f32.mrf.mxu0
        %v2764 = vadd.f32 %v2665, %v2763
        %2765 = vmatmul.bf16.gmra.mxu0 %v2492
        %v2766 = vpop.f32.mrf.mxu0
        %v2767 = vadd.f32 %v2668, %v2766
        %v2768 = vpop.f32.mrf.mxu0
        %v2769 = vadd.f32 %v2670, %v2768
        %2770 = vmatmul.bf16.gmra.mxu0 %v2495
        %v2771 = vpop.f32.mrf.mxu0
        %v2772 = vadd.f32 %v2673, %v2771
        %v2773 = vpop.f32.mrf.mxu0
        %v2774 = vadd.f32 %v2675, %v2773
        %2775 = vmatmul.bf16.gmra.mxu0 %v2498
        %v2776 = vpop.f32.mrf.mxu0
        %v2777 = vadd.f32 %v2678, %v2776
        %v2778 = vpop.f32.mrf.mxu0
        %v2779 = vadd.f32 %v2680, %v2778
        %2780 = vmatmul.bf16.gmra.mxu0 %v2501
        %v2781 = vpop.f32.mrf.mxu0
        %v2782 = vadd.f32 %v2683, %v2781
        %v2783 = vpop.f32.mrf.mxu0
        %v2784 = vadd.f32 %v2685, %v2783
        %2785 = vmatmul.bf16.gmra.mxu0 %v2504
        %v2786 = vpop.f32.mrf.mxu0
        %v2787 = vadd.f32 %v2688, %v2786
        %v2788 = vpop.f32.mrf.mxu0
        %v2789 = vadd.f32 %v2690, %v2788
        %2790 = vmatmul.bf16.gmra.mxu0 %v2507
        %v2791 = vpop.f32.mrf.mxu0
        %v2792 = vadd.f32 %v2693, %v2791
        %v2793 = vpop.f32.mrf.mxu0
        %v2794 = vadd.f32 %v2695, %v2793
        %2795 = vmatmul.bf16.gmra.mxu0 %v2510
        %v2796 = vpop.f32.mrf.mxu0
        %v2797 = vadd.f32 %v2698, %v2796
        %v2798 = vpop.f32.mrf.mxu0
        %v2799 = vadd.f32 %v2700, %v2798
        %2800 = vmatmul.bf16.gmra.mxu0 %v2513
        %v2801 = vpop.f32.mrf.mxu0
        %v2802 = vadd.f32 %v2703, %v2801
        %v2803 = vpop.f32.mrf.mxu0
        %v2804 = vadd.f32 %v2705, %v2803
        %2805 = vmatmul.bf16.gmra.mxu0 %v2516
        %v2806 = vpop.f32.mrf.mxu0
        %v2807 = vadd.f32 %v2708, %v2806
        %v2808 = vpop.f32.mrf.mxu0
        %v2809 = vadd.f32 %v2710, %v2808
        %2810 = vmatmul.bf16.gmra.mxu0 %v2519
        %v2811 = vpop.f32.mrf.mxu0
        %v2812 = vadd.f32 %v2713, %v2811
        %v2813 = vpop.f32.mrf.mxu0
        %v2814 = vadd.f32 %v2715, %v2813
        %2815 = vmatmul.bf16.gmra.mxu0 %v2522
        %v2816 = vpop.f32.mrf.mxu0
        %v2817 = vadd.f32 %v2718, %v2816
        %v2818 = vpop.f32.mrf.mxu0
        %v2819 = vadd.f32 %v2720, %v2818
        %2820 = vdwg.mxu0
        %v2821 = vmul.f32 %v2732, %v2362
        %v2822 = vmul.f32 %v2734, %v2363
        %v2823 = vmul.f32 %v2737, %v2364
        %v2824 = vmul.f32 %v2739, %v2365
        %v2825 = vmul.f32 %v2742, %v2366
        %v2826 = vmul.f32 %v2744, %v2367
        %v2827 = vmul.f32 %v2747, %v2368
        %v2828 = vmul.f32 %v2749, %v2369
        %v2829 = vmul.f32 %v2752, %v2370
        %v2830 = vmul.f32 %v2754, %v2371
        %v2831 = vmul.f32 %v2757, %v2372
        %v2832 = vmul.f32 %v2759, %v2373
        %v2833 = vmul.f32 %v2762, %v2374
        %v2834 = vmul.f32 %v2764, %v2375
        %v2835 = vmul.f32 %v2767, %v2376
        %v2836 = vmul.f32 %v2769, %v2377
        %v2837 = vmul.f32 %v2772, %v2378
        %v2838 = vmul.f32 %v2774, %v2379
        %v2839 = vmul.f32 %v2777, %v2380
        %v2840 = vmul.f32 %v2779, %v2381
        %v2841 = vmul.f32 %v2782, %v2382
        %v2842 = vmul.f32 %v2784, %v2383
        %v2843 = vmul.f32 %v2787, %v2384
        %v2844 = vmul.f32 %v2789, %v2385
        %v2845 = vmul.f32 %v2792, %v2386
        %v2846 = vmul.f32 %v2794, %v2387
        %v2847 = vmul.f32 %v2797, %v2388
        %v2848 = vmul.f32 %v2799, %v2389
        %v2849 = vmul.f32 %v2802, %v2390
        %v2850 = vmul.f32 %v2804, %v2391
        %v2851 = vmul.f32 %v2807, %v2392
        %v2852 = vmul.f32 %v2809, %v2393
        %v2853 = vmul.f32 %v2812, %v2394
        %v2854 = vmul.f32 %v2814, %v2395
        %v2855 = vmul.f32 %v2817, %v2396
        %v2856 = vmul.f32 %v2819, %v2397
        %v2857 = vpack.c.bf16 %v2821, %v2821
        %v2858 = vpack.c.bf16 %v2822, %v2822
        %v2859 = vpack.c.bf16 %v2823, %v2823
        %v2860 = vpack.c.bf16 %v2824, %v2824
        %v2861 = vpack.c.bf16 %v2825, %v2825
        %v2862 = vpack.c.bf16 %v2826, %v2826
        %v2863 = vpack.c.bf16 %v2827, %v2827
        %v2864 = vpack.c.bf16 %v2828, %v2828
        %v2865 = vpack.c.bf16 %v2829, %v2829
        %v2866 = vpack.c.bf16 %v2830, %v2830
        %v2867 = vpack.c.bf16 %v2831, %v2831
        %v2868 = vpack.c.bf16 %v2832, %v2832
        %v2869 = vpack.c.bf16 %v2833, %v2833
        %v2870 = vpack.c.bf16 %v2834, %v2834
        %v2871 = vpack.c.bf16 %v2835, %v2835
        %v2872 = vpack.c.bf16 %v2836, %v2836
        %v2873 = vpack.c.bf16 %v2837, %v2837
        %v2874 = vpack.c.bf16 %v2838, %v2838
        %v2875 = vpack.c.bf16 %v2839, %v2839
        %v2876 = vpack.c.bf16 %v2840, %v2840
        %v2877 = vpack.c.bf16 %v2841, %v2841
        %v2878 = vpack.c.bf16 %v2842, %v2842
        %v2879 = vpack.c.bf16 %v2843, %v2843
        %v2880 = vpack.c.bf16 %v2844, %v2844
        %v2881 = vpack.c.bf16 %v2845, %v2845
        %v2882 = vpack.c.bf16 %v2846, %v2846
        %v2883 = vpack.c.bf16 %v2847, %v2847
        %v2884 = vpack.c.bf16 %v2848, %v2848
        %v2885 = vpack.c.bf16 %v2849, %v2849
        %v2886 = vpack.c.bf16 %v2850, %v2850
        %v2887 = vpack.c.bf16 %v2851, %v2851
        %v2888 = vpack.c.bf16 %v2852, %v2852
        %v2889 = vpack.c.bf16 %v2853, %v2853
        %v2890 = vpack.c.bf16 %v2854, %v2854
        %v2891 = vpack.c.bf16 %v2855, %v2855
        %v2892 = vpack.c.bf16 %v2856, %v2856
        %v2893 = vld [vmem:[%s0] sm:$0xff]
        %v2894 = vpack.c.bf16 %v2893, %v2893
        %v2899 = vunpack.c.l.b16 %v440
        %v2900 = vunpack.c.l.b16 %v441
        %v2901 = vunpack.c.l.b16 %v442
        %v2902 = vunpack.c.l.b16 %v443
        %v2903 = vpack.c.b16 %v2900, %v2899
        %v2904 = vpack.c.b16 %v2902, %v2901
        %v2908 = vsel %vm480, %v2894, 0
        %2910 = vmatpush.bf16.msra.mxu0 0
        %2911 = vmatpush.bf16.msra.mxu0 0
        %2912 = vmatpush.bf16.msra.mxu0 0
        %2913 = vmatpush.bf16.msra.mxu0 0
        %2914 = vmatpush.bf16.msra.mxu0 0
        %2915 = vmatpush.bf16.msra.mxu0 0
        %2916 = vmatpush.bf16.msra.mxu0 %v2904
        %2917 = vmatpush.bf16.msra.mxu0 %v2903
        %2918 = vmatmul.bf16.gmra.mxu0 %v2908
        %v2919 = vpop.f32.mrf.mxu0
        %v2920 = vadd.f32 0.0, %v2919
        %v2921 = vpop.f32.mrf.mxu0
        %2922 = vdwg.mxu0
        %v2923 = vpack.c.bf16 %v2920, %v2920
        %v2925 = vperm.slane %v439, 0
        %v2927 = vmul.f32 %v2920, %v2925
        %v2928 = vsel %vm480, %v2927, 0.0
        %2929 = vadd.xlane.f32.xlu0 %v2928
        %v2930 = vpop.xlane.xlu0 %2929
        %v2967 = vunpack.c.l.b16 %v2857
        %v2968 = vunpack.c.l.b16 %v2858
        %v2969 = vunpack.c.l.b16 %v2859
        %v2970 = vunpack.c.l.b16 %v2860
        %v2971 = vunpack.c.l.b16 %v2861
        %v2972 = vunpack.c.l.b16 %v2862
        %v2973 = vunpack.c.l.b16 %v2863
        %v2974 = vunpack.c.l.b16 %v2864
        %v2975 = vunpack.c.l.b16 %v2865
        %v2976 = vunpack.c.l.b16 %v2866
        %v2977 = vunpack.c.l.b16 %v2867
        %v2978 = vunpack.c.l.b16 %v2868
        %v2979 = vunpack.c.l.b16 %v2869
        %v2980 = vunpack.c.l.b16 %v2870
        %v2981 = vunpack.c.l.b16 %v2871
        %v2982 = vunpack.c.l.b16 %v2872
        %v2983 = vunpack.c.l.b16 %v2873
        %v2984 = vunpack.c.l.b16 %v2874
        %v2985 = vunpack.c.l.b16 %v2875
        %v2986 = vunpack.c.l.b16 %v2876
        %v2987 = vunpack.c.l.b16 %v2877
        %v2988 = vunpack.c.l.b16 %v2878
        %v2989 = vunpack.c.l.b16 %v2879
        %v2990 = vunpack.c.l.b16 %v2880
        %v2991 = vunpack.c.l.b16 %v2881
        %v2992 = vunpack.c.l.b16 %v2882
        %v2993 = vunpack.c.l.b16 %v2883
        %v2994 = vunpack.c.l.b16 %v2884
        %v2995 = vunpack.c.l.b16 %v2885
        %v2996 = vunpack.c.l.b16 %v2886
        %v2997 = vunpack.c.l.b16 %v2887
        %v2998 = vunpack.c.l.b16 %v2888
        %v2999 = vunpack.c.l.b16 %v2889
        %v3000 = vunpack.c.l.b16 %v2890
        %v3001 = vunpack.c.l.b16 %v2891
        %v3002 = vunpack.c.l.b16 %v2892
        %v3003 = vpack.c.b16 %v2968, %v2967
        %v3004 = vpack.c.b16 %v2970, %v2969
        %v3005 = vpack.c.b16 %v2972, %v2971
        %v3006 = vpack.c.b16 %v2974, %v2973
        %v3007 = vpack.c.b16 %v2976, %v2975
        %v3008 = vpack.c.b16 %v2978, %v2977
        %v3009 = vpack.c.b16 %v2980, %v2979
        %v3010 = vpack.c.b16 %v2982, %v2981
        %v3011 = vpack.c.b16 %v2984, %v2983
        %v3012 = vpack.c.b16 %v2986, %v2985
        %v3013 = vpack.c.b16 %v2988, %v2987
        %v3014 = vpack.c.b16 %v2990, %v2989
        %v3015 = vpack.c.b16 %v2992, %v2991
        %v3016 = vpack.c.b16 %v2994, %v2993
        %v3017 = vpack.c.b16 %v2996, %v2995
        %v3018 = vpack.c.b16 %v2998, %v2997
        %v3019 = vpack.c.b16 %v3000, %v2999
        %v3020 = vpack.c.b16 %v3002, %v3001
        %v3022 = vsel %vm480, %v2923, 0
        %v3025 = vsel %vm480, %v3003, 0
        %v3028 = vsel %vm480, %v3004, 0
        %v3031 = vsel %vm480, %v3005, 0
        %v3034 = vsel %vm480, %v3006, 0
        %v3037 = vsel %vm480, %v3007, 0
        %v3040 = vsel %vm480, %v3008, 0
        %v3043 = vsel %vm480, %v3009, 0
        %v3046 = vsel %vm480, %v3010, 0
        %v3049 = vsel %vm480, %v3011, 0
        %v3052 = vsel %vm480, %v3012, 0
        %v3055 = vsel %vm480, %v3013, 0
        %v3058 = vsel %vm480, %v3014, 0
        %v3061 = vsel %vm480, %v3015, 0
        %v3064 = vsel %vm480, %v3016, 0
        %v3067 = vsel %vm480, %v3017, 0
        %v3070 = vsel %vm480, %v3018, 0
        %v3073 = vsel %vm480, %v3019, 0
        %v3076 = vsel %vm480, %v3020, 0
        %3078 = vmatpush.bf16.xpose.msra.mxu0 %v3046
        %3079 = vmatpush.bf16.xpose.msra.mxu0 %v3043
        %3080 = vmatpush.bf16.xpose.msra.mxu0 %v3040
        %3081 = vmatpush.bf16.xpose.msra.mxu0 %v3037
        %3082 = vmatpush.bf16.xpose.msra.mxu0 %v3034
        %3083 = vmatpush.bf16.xpose.msra.mxu0 %v3031
        %3084 = vmatpush.bf16.xpose.msra.mxu0 %v3028
        %3085 = vmatpush.bf16.xpose.msra.mxu0 %v3025
        %3086 = vmatmul.bf16.gmra.mxu0 %v3022
        %v3087 = vpop.f32.mrf.mxu0
        %v3088 = vadd.f32 %v2930, %v3087
        %v3089 = vpop.f32.mrf.mxu0
        %3090 = vdwg.mxu0
        %3091 = vmatpush.bf16.xpose.msra.mxu0 %v3070
        %3092 = vmatpush.bf16.xpose.msra.mxu0 %v3067
        %3093 = vmatpush.bf16.xpose.msra.mxu0 %v3064
        %3094 = vmatpush.bf16.xpose.msra.mxu0 %v3061
        %3095 = vmatpush.bf16.xpose.msra.mxu0 %v3058
        %3096 = vmatpush.bf16.xpose.msra.mxu0 %v3055
        %3097 = vmatpush.bf16.xpose.msra.mxu0 %v3052
        %3098 = vmatpush.bf16.xpose.msra.mxu0 %v3049
        %3099 = vmatmul.bf16.gmra.mxu0 %v3022
        %v3100 = vpop.f32.mrf.mxu0
        %v3101 = vadd.f32 %v2930, %v3100
        %v3102 = vpop.f32.mrf.mxu0
        %3103 = vdwg.mxu0
        %3104 = vmatpush.bf16.xpose.msra.mxu0 0
        %3105 = vmatpush.bf16.xpose.msra.mxu0 0
        %3106 = vmatpush.bf16.xpose.msra.mxu0 0
        %3107 = vmatpush.bf16.xpose.msra.mxu0 0
        %3108 = vmatpush.bf16.xpose.msra.mxu0 0
        %3109 = vmatpush.bf16.xpose.msra.mxu0 0
        %3110 = vmatpush.bf16.xpose.msra.mxu0 %v3076
        %3111 = vmatpush.bf16.xpose.msra.mxu0 %v3073
        %3112 = vmatmul.bf16.gmra.mxu0 %v3022
        %v3113 = vpop.f32.mrf.mxu0
        %v3114 = vadd.f32 %v2930, %v3113
        %v3115 = vpop.f32.mrf.mxu0
        %3116 = vdwg.mxu0
        %v3117 = vsel %vm480, %v3114, -inf
        %v3118 = vmax.f32 %v3088, %v3101
        %v3119 = vmax.f32 %v3118, %v3117
        %3120 = vmax.xlane.f32.xlu0 %v3119
        %v3121 = vpop.xlane.xlu0 %3120
        %v3122 = vsub.f32 %v3088, %v3121
        %v3123 = vsub.f32 %v3101, %v3121
        %v3124 = vsub.f32 %v3114, %v3121
        %v3125 = vmul.f32 %v3122, 1.442695
        %v3126 = vpow.pop %v3125
        %v3127 = vmul.f32 %v3123, 1.442695
        %v3128 = vpow.pop %v3127
        %v3129 = vmul.f32 %v3124, 1.442695
        %v3130 = vpow.pop %v3129
        %v3131 = vadd.f32 %v3126, %v3128
        %v3132 = vsel %vm480, %v3130, 0.0
        %v3133 = vadd.f32 %v3131, %v3132
        %3134 = vadd.xlane.f32.xlu0 %v3133
        %v3135 = vpop.xlane.xlu0 %3134
        %v3136 = vrcp.pop %v3135
        %v3137 = vmul.f32 %v3126, %v3136
        %v3138 = vmul.f32 %v3128, %v3136
        %v3139 = vmul.f32 %v3130, %v3136
        %v3140 = vpack.c.bf16 %v3137, %v3137
        %v3141 = vpack.c.bf16 %v3138, %v3138
        %v3142 = vpack.c.bf16 %v3139, %v3139
        %v3162 = vsel %vm480, %v3142, 0
        %3164 = vmatpush.bf16.msra.mxu0 %v3010
        %3165 = vmatpush.bf16.msra.mxu0 %v3009
        %3166 = vmatpush.bf16.msra.mxu0 %v3008
        %3167 = vmatpush.bf16.msra.mxu0 %v3007
        %3168 = vmatpush.bf16.msra.mxu0 %v3006
        %3169 = vmatpush.bf16.msra.mxu0 %v3005
        %3170 = vmatpush.bf16.msra.mxu0 %v3004
        %3171 = vmatpush.bf16.msra.mxu0 %v3003
        %3172 = vmatmul.bf16.gmra.mxu0 %v3140
        %v3173 = vpop.f32.mrf.mxu0
        %v3174 = vadd.f32 0.0, %v3173
        %v3175 = vpop.f32.mrf.mxu0
        %3176 = vdwg.mxu0
        %3177 = vmatpush.bf16.msra.mxu0 %v3018
        %3178 = vmatpush.bf16.msra.mxu0 %v3017
        %3179 = vmatpush.bf16.msra.mxu0 %v3016
        %3180 = vmatpush.bf16.msra.mxu0 %v3015
        %3181 = vmatpush.bf16.msra.mxu0 %v3014
        %3182 = vmatpush.bf16.msra.mxu0 %v3013
        %3183 = vmatpush.bf16.msra.mxu0 %v3012
        %3184 = vmatpush.bf16.msra.mxu0 %v3011
        %3185 = vmatmul.bf16.gmra.mxu0 %v3141
        %v3186 = vpop.f32.mrf.mxu0
        %v3187 = vadd.f32 %v3174, %v3186
        %v3188 = vpop.f32.mrf.mxu0
        %3189 = vdwg.mxu0
        %3190 = vmatpush.bf16.msra.mxu0 0
        %3191 = vmatpush.bf16.msra.mxu0 0
        %3192 = vmatpush.bf16.msra.mxu0 0
        %3193 = vmatpush.bf16.msra.mxu0 0
        %3194 = vmatpush.bf16.msra.mxu0 0
        %3195 = vmatpush.bf16.msra.mxu0 0
        %3196 = vmatpush.bf16.msra.mxu0 %v3020
        %3197 = vmatpush.bf16.msra.mxu0 %v3019
        %3198 = vmatmul.bf16.gmra.mxu0 %v3162
        %v3199 = vpop.f32.mrf.mxu0
        %v3200 = vadd.f32 %v3187, %v3199
        %v3201 = vpop.f32.mrf.mxu0
        %3202 = vdwg.mxu0
        %3203 = vst.msk [vmem:[%s367] sm:$0xff] %vm480, %v3200
        %v3204 = vld [vmem:[%s3] sm:$0xff]
        %v3205 = vld [vmem:[%s3 + $0x8] sm:$0xff]
        %v3206 = vld [vmem:[%s3 + $0x10] sm:$0xff]
        %v3207 = vld [vmem:[%s3 + $0x18] sm:$0xff]
        %v3208 = vld [vmem:[%s3 + $0x20] sm:$0xff]
        %v3209 = vld [vmem:[%s3 + $0x28] sm:$0xff]
        %v3210 = vld [vmem:[%s3 + $0x30] sm:$0xff]
        %v3211 = vld [vmem:[%s3 + $0x38] sm:$0xff]
        %v3212 = vld [vmem:[%s3 + $0x40] sm:$0xff]
        %v3213 = vld [vmem:[%s3 + $0x48] sm:$0xff]
        %v3214 = vld [vmem:[%s3 + $0x50] sm:$0xff]
        %v3215 = vld [vmem:[%s3 + $0x58] sm:$0xff]
        %v3216 = vld [vmem:[%s3 + $0x60] sm:$0xff]
        %v3217 = vld [vmem:[%s3 + $0x68] sm:$0xff]
        %v3218 = vld [vmem:[%s3 + $0x70] sm:$0xff]
        %v3219 = vld [vmem:[%s3 + $0x78] sm:$0xff]
        %v3220 = vld [vmem:[%s3 + $0x80] sm:$0xff]
        %v3221 = vld [vmem:[%s3 + $0x88] sm:$0xff]
        %v3222 = vld [vmem:[%s3 + $0x90] sm:$0xff]
        %v3223 = vld [vmem:[%s3 + $0x98] sm:$0xff]
        %v3224 = vld [vmem:[%s3 + $0xa0] sm:$0xff]
        %v3225 = vld [vmem:[%s3 + $0xa8] sm:$0xff]
        %v3226 = vld [vmem:[%s3 + $0xb0] sm:$0xff]
        %v3227 = vld [vmem:[%s3 + $0xb8] sm:$0xff]
        %v3228 = vld [vmem:[%s3 + $0xc0] sm:$0xff]
        %v3229 = vld [vmem:[%s3 + $0xc8] sm:$0xff]
        %v3230 = vld [vmem:[%s3 + $0xd0] sm:$0xff]
        %v3231 = vld [vmem:[%s3 + $0xd8] sm:$0xff]
        %v3232 = vld [vmem:[%s3 + $0xe0] sm:$0xff]
        %v3233 = vld [vmem:[%s3 + $0xe8] sm:$0xff]
        %v3234 = vld [vmem:[%s3 + $0xf0] sm:$0xff]
        %v3235 = vld [vmem:[%s3 + $0xf8] sm:$0xff]
        %v3236 = vld [vmem:[%s3 + $0x100] sm:$0xff]
        %v3237 = vld [vmem:[%s3 + $0x108] sm:$0xff]
        %v3238 = vld [vmem:[%s3 + $0x110] sm:$0xff]
        %v3239 = vld [vmem:[%s3 + $0x118] sm:$0xff]
        %v3240 = vld [vmem:[%s3 + $0x120] sm:$0xff]
        %v3241 = vld [vmem:[%s3 + $0x128] sm:$0xff]
        %v3242 = vld [vmem:[%s3 + $0x130] sm:$0xff]
        %v3243 = vld [vmem:[%s3 + $0x138] sm:$0xff]
        %v3244 = vld [vmem:[%s3 + $0x140] sm:$0xff]
        %v3245 = vld [vmem:[%s3 + $0x148] sm:$0xff]
        %v3246 = vld [vmem:[%s3 + $0x150] sm:$0xff]
        %v3247 = vld [vmem:[%s3 + $0x158] sm:$0xff]
        %v3248 = vld [vmem:[%s3 + $0x160] sm:$0xff]
        %v3249 = vld [vmem:[%s3 + $0x168] sm:$0xff]
        %v3250 = vld [vmem:[%s3 + $0x170] sm:$0xff]
        %v3251 = vld [vmem:[%s3 + $0x178] sm:$0xff]
        %v3252 = vld [vmem:[%s3 + $0x180] sm:$0xff]
        %v3253 = vld [vmem:[%s3 + $0x188] sm:$0xff]
        %v3254 = vld [vmem:[%s3 + $0x190] sm:$0xff]
        %v3255 = vld [vmem:[%s3 + $0x198] sm:$0xff]
        %v3256 = vld [vmem:[%s3 + $0x1a0] sm:$0xff]
        %v3257 = vld [vmem:[%s3 + $0x1a8] sm:$0xff]
        %v3258 = vld [vmem:[%s3 + $0x1b0] sm:$0xff]
        %v3259 = vld [vmem:[%s3 + $0x1b8] sm:$0xff]
        %v3260 = vld [vmem:[%s3 + $0x1c0] sm:$0xff]
        %v3261 = vld [vmem:[%s3 + $0x1c8] sm:$0xff]
        %v3262 = vld [vmem:[%s3 + $0x1d0] sm:$0xff]
        %v3263 = vld [vmem:[%s3 + $0x1d8] sm:$0xff]
        %v3264 = vld [vmem:[%s3 + $0x1e0] sm:$0xff]
        %v3265 = vld [vmem:[%s3 + $0x1e8] sm:$0xff]
        %v3266 = vld [vmem:[%s3 + $0x1f0] sm:$0xff]
        %v3267 = vld [vmem:[%s3 + $0x1f8] sm:$0xff]
        %v3268 = vld [vmem:[%s4] sm:$0xff]
        %v3269 = vld [vmem:[%s4 + $0x8] sm:$0xff]
        %v3270 = vsel %vm480, %v3200, 0.0
        %v3271 = vrot.slane %v3270, 4
        %v3272 = vadd.f32 %v3270, %v3271
        %v3273 = vrot.slane %v3272, 2
        %v3274 = vadd.f32 %v3272, %v3273
        %v3275 = vrot.slane %v3274, 1
        %v3276 = vadd.f32 %v3274, %v3275
        %v3277 = vrcp.pop 8.0
        %v3278 = vmul.f32 8.0, %v3277
        %v3279 = vsub.f32 1.0, %v3278
        %v3280 = vmul.f32 %v3277, %v3279
        %v3281 = vadd.f32 %v3277, %v3280
        %vm3282 = vweird.f32 %v3277
        %v3283 = vsel %vm3282, %v3277, %v3281
        %v3284 = vmul.f32 %v3276, %v3283
        %v3285 = vsel %vm480, %v3284, 0.0
        %3286 = vadd.xlane.f32.xlu0 %v3285
        %v3287 = vpop.xlane.xlu0 %3286
        %v3288 = vrcp.pop 32.0
        %v3289 = vmul.f32 32.0, %v3288
        %v3290 = vsub.f32 1.0, %v3289
        %v3291 = vmul.f32 %v3288, %v3290
        %v3292 = vadd.f32 %v3288, %v3291
        %vm3293 = vweird.f32 %v3288
        %v3294 = vsel %vm3293, %v3288, %v3292
        %v3295 = vmul.f32 %v3287, %v3294
        %v3296 = vsub.f32 %v3284, %v3295
        %v3298 = vsel %vm480, %v3296, 0
        %3300 = vmatpush.msra.mxu0 0.0
        %3301 = vmatpush.msra.mxu0 0.0
        %3302 = vmatpush.msra.mxu0 0.0
        %3303 = vmatpush.msra.mxu0 0.0
        %3304 = vmatpush.msra.mxu0 0.0
        %3305 = vmatpush.msra.mxu0 0.0
        %3306 = vmatpush.msra.mxu0 0.0
        %3307 = vmatpush.msra.mxu0 0.0
        %3308 = vmatpush.msra.mxu0 0.0
        %3309 = vmatpush.msra.mxu0 0.0
        %3310 = vmatpush.msra.mxu0 0.0
        %3311 = vmatpush.msra.mxu0 0.0
        %3312 = vmatpush.msra.mxu0 %v3252
        %3313 = vmatpush.msra.mxu0 %v3236
        %3314 = vmatpush.msra.mxu0 %v3220
        %3315 = vmatpush.msra.mxu0 %v3204
        %3316 = vmatmul.f32.gmra.mxu0 %v3298
        %v3317 = vpop.f32.mrf.mxu0
        %v3318 = vadd.f32 0.0, %v3317
        %3319 = vdwg.mxu0
        %3320 = vmatpush.msra.mxu0 0.0
        %3321 = vmatpush.msra.mxu0 0.0
        %3322 = vmatpush.msra.mxu0 0.0
        %3323 = vmatpush.msra.mxu0 0.0
        %3324 = vmatpush.msra.mxu0 0.0
        %3325 = vmatpush.msra.mxu0 0.0
        %3326 = vmatpush.msra.mxu0 0.0
        %3327 = vmatpush.msra.mxu0 0.0
        %3328 = vmatpush.msra.mxu0 0.0
        %3329 = vmatpush.msra.mxu0 0.0
        %3330 = vmatpush.msra.mxu0 0.0
        %3331 = vmatpush.msra.mxu0 0.0
        %3332 = vmatpush.msra.mxu0 %v3253
        %3333 = vmatpush.msra.mxu0 %v3237
        %3334 = vmatpush.msra.mxu0 %v3221
        %3335 = vmatpush.msra.mxu0 %v3205
        %3336 = vmatmul.f32.gmra.mxu0 %v3298
        %v3337 = vpop.f32.mrf.mxu0
        %v3338 = vadd.f32 0.0, %v3337
        %3339 = vdwg.mxu0
        %3340 = vmatpush.msra.mxu0 0.0
        %3341 = vmatpush.msra.mxu0 0.0
        %3342 = vmatpush.msra.mxu0 0.0
        %3343 = vmatpush.msra.mxu0 0.0
        %3344 = vmatpush.msra.mxu0 0.0
        %3345 = vmatpush.msra.mxu0 0.0
        %3346 = vmatpush.msra.mxu0 0.0
        %3347 = vmatpush.msra.mxu0 0.0
        %3348 = vmatpush.msra.mxu0 0.0
        %3349 = vmatpush.msra.mxu0 0.0
        %3350 = vmatpush.msra.mxu0 0.0
        %3351 = vmatpush.msra.mxu0 0.0
        %3352 = vmatpush.msra.mxu0 %v3254
        %3353 = vmatpush.msra.mxu0 %v3238
        %3354 = vmatpush.msra.mxu0 %v3222
        %3355 = vmatpush.msra.mxu0 %v3206
        %3356 = vmatmul.f32.gmra.mxu0 %v3298
        %v3357 = vpop.f32.mrf.mxu0
        %v3358 = vadd.f32 0.0, %v3357
        %3359 = vdwg.mxu0
        %3360 = vmatpush.msra.mxu0 0.0
        %3361 = vmatpush.msra.mxu0 0.0
        %3362 = vmatpush.msra.mxu0 0.0
        %3363 = vmatpush.msra.mxu0 0.0
        %3364 = vmatpush.msra.mxu0 0.0
        %3365 = vmatpush.msra.mxu0 0.0
        %3366 = vmatpush.msra.mxu0 0.0
        %3367 = vmatpush.msra.mxu0 0.0
        %3368 = vmatpush.msra.mxu0 0.0
        %3369 = vmatpush.msra.mxu0 0.0
        %3370 = vmatpush.msra.mxu0 0.0
        %3371 = vmatpush.msra.mxu0 0.0
        %3372 = vmatpush.msra.mxu0 %v3255
        %3373 = vmatpush.msra.mxu0 %v3239
        %3374 = vmatpush.msra.mxu0 %v3223
        %3375 = vmatpush.msra.mxu0 %v3207
        %3376 = vmatmul.f32.gmra.mxu0 %v3298
        %v3377 = vpop.f32.mrf.mxu0
        %v3378 = vadd.f32 0.0, %v3377
        %3379 = vdwg.mxu0
        %3380 = vmatpush.msra.mxu0 0.0
        %3381 = vmatpush.msra.mxu0 0.0
        %3382 = vmatpush.msra.mxu0 0.0
        %3383 = vmatpush.msra.mxu0 0.0
        %3384 = vmatpush.msra.mxu0 0.0
        %3385 = vmatpush.msra.mxu0 0.0
        %3386 = vmatpush.msra.mxu0 0.0
        %3387 = vmatpush.msra.mxu0 0.0
        %3388 = vmatpush.msra.mxu0 0.0
        %3389 = vmatpush.msra.mxu0 0.0
        %3390 = vmatpush.msra.mxu0 0.0
        %3391 = vmatpush.msra.mxu0 0.0
        %3392 = vmatpush.msra.mxu0 %v3256
        %3393 = vmatpush.msra.mxu0 %v3240
        %3394 = vmatpush.msra.mxu0 %v3224
        %3395 = vmatpush.msra.mxu0 %v3208
        %3396 = vmatmul.f32.gmra.mxu0 %v3298
        %v3397 = vpop.f32.mrf.mxu0
        %v3398 = vadd.f32 0.0, %v3397
        %3399 = vdwg.mxu0
        %3400 = vmatpush.msra.mxu0 0.0
        %3401 = vmatpush.msra.mxu0 0.0
        %3402 = vmatpush.msra.mxu0 0.0
        %3403 = vmatpush.msra.mxu0 0.0
        %3404 = vmatpush.msra.mxu0 0.0
        %3405 = vmatpush.msra.mxu0 0.0
        %3406 = vmatpush.msra.mxu0 0.0
        %3407 = vmatpush.msra.mxu0 0.0
        %3408 = vmatpush.msra.mxu0 0.0
        %3409 = vmatpush.msra.mxu0 0.0
        %3410 = vmatpush.msra.mxu0 0.0
        %3411 = vmatpush.msra.mxu0 0.0
        %3412 = vmatpush.msra.mxu0 %v3257
        %3413 = vmatpush.msra.mxu0 %v3241
        %3414 = vmatpush.msra.mxu0 %v3225
        %3415 = vmatpush.msra.mxu0 %v3209
        %3416 = vmatmul.f32.gmra.mxu0 %v3298
        %v3417 = vpop.f32.mrf.mxu0
        %v3418 = vadd.f32 0.0, %v3417
        %3419 = vdwg.mxu0
        %3420 = vmatpush.msra.mxu0 0.0
        %3421 = vmatpush.msra.mxu0 0.0
        %3422 = vmatpush.msra.mxu0 0.0
        %3423 = vmatpush.msra.mxu0 0.0
        %3424 = vmatpush.msra.mxu0 0.0
        %3425 = vmatpush.msra.mxu0 0.0
        %3426 = vmatpush.msra.mxu0 0.0
        %3427 = vmatpush.msra.mxu0 0.0
        %3428 = vmatpush.msra.mxu0 0.0
        %3429 = vmatpush.msra.mxu0 0.0
        %3430 = vmatpush.msra.mxu0 0.0
        %3431 = vmatpush.msra.mxu0 0.0
        %3432 = vmatpush.msra.mxu0 %v3258
        %3433 = vmatpush.msra.mxu0 %v3242
        %3434 = vmatpush.msra.mxu0 %v3226
        %3435 = vmatpush.msra.mxu0 %v3210
        %3436 = vmatmul.f32.gmra.mxu0 %v3298
        %v3437 = vpop.f32.mrf.mxu0
        %v3438 = vadd.f32 0.0, %v3437
        %3439 = vdwg.mxu0
        %3440 = vmatpush.msra.mxu0 0.0
        %3441 = vmatpush.msra.mxu0 0.0
        %3442 = vmatpush.msra.mxu0 0.0
        %3443 = vmatpush.msra.mxu0 0.0
        %3444 = vmatpush.msra.mxu0 0.0
        %3445 = vmatpush.msra.mxu0 0.0
        %3446 = vmatpush.msra.mxu0 0.0
        %3447 = vmatpush.msra.mxu0 0.0
        %3448 = vmatpush.msra.mxu0 0.0
        %3449 = vmatpush.msra.mxu0 0.0
        %3450 = vmatpush.msra.mxu0 0.0
        %3451 = vmatpush.msra.mxu0 0.0
        %3452 = vmatpush.msra.mxu0 %v3259
        %3453 = vmatpush.msra.mxu0 %v3243
        %3454 = vmatpush.msra.mxu0 %v3227
        %3455 = vmatpush.msra.mxu0 %v3211
        %3456 = vmatmul.f32.gmra.mxu0 %v3298
        %v3457 = vpop.f32.mrf.mxu0
        %v3458 = vadd.f32 0.0, %v3457
        %3459 = vdwg.mxu0
        %3460 = vmatpush.msra.mxu0 0.0
        %3461 = vmatpush.msra.mxu0 0.0
        %3462 = vmatpush.msra.mxu0 0.0
        %3463 = vmatpush.msra.mxu0 0.0
        %3464 = vmatpush.msra.mxu0 0.0
        %3465 = vmatpush.msra.mxu0 0.0
        %3466 = vmatpush.msra.mxu0 0.0
        %3467 = vmatpush.msra.mxu0 0.0
        %3468 = vmatpush.msra.mxu0 0.0
        %3469 = vmatpush.msra.mxu0 0.0
        %3470 = vmatpush.msra.mxu0 0.0
        %3471 = vmatpush.msra.mxu0 0.0
        %3472 = vmatpush.msra.mxu0 %v3260
        %3473 = vmatpush.msra.mxu0 %v3244
        %3474 = vmatpush.msra.mxu0 %v3228
        %3475 = vmatpush.msra.mxu0 %v3212
        %3476 = vmatmul.f32.gmra.mxu0 %v3298
        %v3477 = vpop.f32.mrf.mxu0
        %v3478 = vadd.f32 0.0, %v3477
        %3479 = vdwg.mxu0
        %3480 = vmatpush.msra.mxu0 0.0
        %3481 = vmatpush.msra.mxu0 0.0
        %3482 = vmatpush.msra.mxu0 0.0
        %3483 = vmatpush.msra.mxu0 0.0
        %3484 = vmatpush.msra.mxu0 0.0
        %3485 = vmatpush.msra.mxu0 0.0
        %3486 = vmatpush.msra.mxu0 0.0
        %3487 = vmatpush.msra.mxu0 0.0
        %3488 = vmatpush.msra.mxu0 0.0
        %3489 = vmatpush.msra.mxu0 0.0
        %3490 = vmatpush.msra.mxu0 0.0
        %3491 = vmatpush.msra.mxu0 0.0
        %3492 = vmatpush.msra.mxu0 %v3261
        %3493 = vmatpush.msra.mxu0 %v3245
        %3494 = vmatpush.msra.mxu0 %v3229
        %3495 = vmatpush.msra.mxu0 %v3213
        %3496 = vmatmul.f32.gmra.mxu0 %v3298
        %v3497 = vpop.f32.mrf.mxu0
        %v3498 = vadd.f32 0.0, %v3497
        %3499 = vdwg.mxu0
        %3500 = vmatpush.msra.mxu0 0.0
        %3501 = vmatpush.msra.mxu0 0.0
        %3502 = vmatpush.msra.mxu0 0.0
        %3503 = vmatpush.msra.mxu0 0.0
        %3504 = vmatpush.msra.mxu0 0.0
        %3505 = vmatpush.msra.mxu0 0.0
        %3506 = vmatpush.msra.mxu0 0.0
        %3507 = vmatpush.msra.mxu0 0.0
        %3508 = vmatpush.msra.mxu0 0.0
        %3509 = vmatpush.msra.mxu0 0.0
        %3510 = vmatpush.msra.mxu0 0.0
        %3511 = vmatpush.msra.mxu0 0.0
        %3512 = vmatpush.msra.mxu0 %v3262
        %3513 = vmatpush.msra.mxu0 %v3246
        %3514 = vmatpush.msra.mxu0 %v3230
        %3515 = vmatpush.msra.mxu0 %v3214
        %3516 = vmatmul.f32.gmra.mxu0 %v3298
        %v3517 = vpop.f32.mrf.mxu0
        %v3518 = vadd.f32 0.0, %v3517
        %3519 = vdwg.mxu0
        %3520 = vmatpush.msra.mxu0 0.0
        %3521 = vmatpush.msra.mxu0 0.0
        %3522 = vmatpush.msra.mxu0 0.0
        %3523 = vmatpush.msra.mxu0 0.0
        %3524 = vmatpush.msra.mxu0 0.0
        %3525 = vmatpush.msra.mxu0 0.0
        %3526 = vmatpush.msra.mxu0 0.0
        %3527 = vmatpush.msra.mxu0 0.0
        %3528 = vmatpush.msra.mxu0 0.0
        %3529 = vmatpush.msra.mxu0 0.0
        %3530 = vmatpush.msra.mxu0 0.0
        %3531 = vmatpush.msra.mxu0 0.0
        %3532 = vmatpush.msra.mxu0 %v3263
        %3533 = vmatpush.msra.mxu0 %v3247
        %3534 = vmatpush.msra.mxu0 %v3231
        %3535 = vmatpush.msra.mxu0 %v3215
        %3536 = vmatmul.f32.gmra.mxu0 %v3298
        %v3537 = vpop.f32.mrf.mxu0
        %v3538 = vadd.f32 0.0, %v3537
        %3539 = vdwg.mxu0
        %3540 = vmatpush.msra.mxu0 0.0
        %3541 = vmatpush.msra.mxu0 0.0
        %3542 = vmatpush.msra.mxu0 0.0
        %3543 = vmatpush.msra.mxu0 0.0
        %3544 = vmatpush.msra.mxu0 0.0
        %3545 = vmatpush.msra.mxu0 0.0
        %3546 = vmatpush.msra.mxu0 0.0
        %3547 = vmatpush.msra.mxu0 0.0
        %3548 = vmatpush.msra.mxu0 0.0
        %3549 = vmatpush.msra.mxu0 0.0
        %3550 = vmatpush.msra.mxu0 0.0
        %3551 = vmatpush.msra.mxu0 0.0
        %3552 = vmatpush.msra.mxu0 %v3264
        %3553 = vmatpush.msra.mxu0 %v3248
        %3554 = vmatpush.msra.mxu0 %v3232
        %3555 = vmatpush.msra.mxu0 %v3216
        %3556 = vmatmul.f32.gmra.mxu0 %v3298
        %v3557 = vpop.f32.mrf.mxu0
        %v3558 = vadd.f32 0.0, %v3557
        %3559 = vdwg.mxu0
        %3560 = vmatpush.msra.mxu0 0.0
        %3561 = vmatpush.msra.mxu0 0.0
        %3562 = vmatpush.msra.mxu0 0.0
        %3563 = vmatpush.msra.mxu0 0.0
        %3564 = vmatpush.msra.mxu0 0.0
        %3565 = vmatpush.msra.mxu0 0.0
        %3566 = vmatpush.msra.mxu0 0.0
        %3567 = vmatpush.msra.mxu0 0.0
        %3568 = vmatpush.msra.mxu0 0.0
        %3569 = vmatpush.msra.mxu0 0.0
        %3570 = vmatpush.msra.mxu0 0.0
        %3571 = vmatpush.msra.mxu0 0.0
        %3572 = vmatpush.msra.mxu0 %v3265
        %3573 = vmatpush.msra.mxu0 %v3249
        %3574 = vmatpush.msra.mxu0 %v3233
        %3575 = vmatpush.msra.mxu0 %v3217
        %3576 = vmatmul.f32.gmra.mxu0 %v3298
        %v3577 = vpop.f32.mrf.mxu0
        %v3578 = vadd.f32 0.0, %v3577
        %3579 = vdwg.mxu0
        %3580 = vmatpush.msra.mxu0 0.0
        %3581 = vmatpush.msra.mxu0 0.0
        %3582 = vmatpush.msra.mxu0 0.0
        %3583 = vmatpush.msra.mxu0 0.0
        %3584 = vmatpush.msra.mxu0 0.0
        %3585 = vmatpush.msra.mxu0 0.0
        %3586 = vmatpush.msra.mxu0 0.0
        %3587 = vmatpush.msra.mxu0 0.0
        %3588 = vmatpush.msra.mxu0 0.0
        %3589 = vmatpush.msra.mxu0 0.0
        %3590 = vmatpush.msra.mxu0 0.0
        %3591 = vmatpush.msra.mxu0 0.0
        %3592 = vmatpush.msra.mxu0 %v3266
        %3593 = vmatpush.msra.mxu0 %v3250
        %3594 = vmatpush.msra.mxu0 %v3234
        %3595 = vmatpush.msra.mxu0 %v3218
        %3596 = vmatmul.f32.gmra.mxu0 %v3298
        %v3597 = vpop.f32.mrf.mxu0
        %v3598 = vadd.f32 0.0, %v3597
        %3599 = vdwg.mxu0
        %3600 = vmatpush.msra.mxu0 0.0
        %3601 = vmatpush.msra.mxu0 0.0
        %3602 = vmatpush.msra.mxu0 0.0
        %3603 = vmatpush.msra.mxu0 0.0
        %3604 = vmatpush.msra.mxu0 0.0
        %3605 = vmatpush.msra.mxu0 0.0
        %3606 = vmatpush.msra.mxu0 0.0
        %3607 = vmatpush.msra.mxu0 0.0
        %3608 = vmatpush.msra.mxu0 0.0
        %3609 = vmatpush.msra.mxu0 0.0
        %3610 = vmatpush.msra.mxu0 0.0
        %3611 = vmatpush.msra.mxu0 0.0
        %3612 = vmatpush.msra.mxu0 %v3267
        %3613 = vmatpush.msra.mxu0 %v3251
        %3614 = vmatpush.msra.mxu0 %v3235
        %3615 = vmatpush.msra.mxu0 %v3219
        %3616 = vmatmul.f32.gmra.mxu0 %v3298
        %v3617 = vpop.f32.mrf.mxu0
        %v3618 = vadd.f32 0.0, %v3617
        %3619 = vdwg.mxu0
        %v3620 = vmul.f32 %v3318, 0.0625
        %v3621 = vmul.f32 %v3338, 0.0625
        %v3622 = vmul.f32 %v3358, 0.0625
        %v3623 = vmul.f32 %v3378, 0.0625
        %v3624 = vmul.f32 %v3398, 0.0625
        %v3625 = vmul.f32 %v3418, 0.0625
        %v3626 = vmul.f32 %v3438, 0.0625
        %v3627 = vmul.f32 %v3458, 0.0625
        %v3628 = vmul.f32 %v3478, 0.0625
        %v3629 = vmul.f32 %v3498, 0.0625
        %v3630 = vmul.f32 %v3518, 0.0625
        %v3631 = vmul.f32 %v3538, 0.0625
        %v3632 = vmul.f32 %v3558, 0.0625
        %v3633 = vmul.f32 %v3578, 0.0625
        %v3634 = vmul.f32 %v3598, 0.0625
        %v3635 = vmul.f32 %v3618, 0.0625
        %v3638 = vperm.slane %v3268, 0
        %v3639 = vperm.slane %v3268, 1
        %v3640 = vperm.slane %v3268, 2
        %v3641 = vperm.slane %v3268, 3
        %v3642 = vperm.slane %v3268, 4
        %v3643 = vperm.slane %v3268, 5
        %v3644 = vperm.slane %v3268, 6
        %v3645 = vperm.slane %v3268, 7
        %v3646 = vperm.slane %v3269, 0
        %v3647 = vperm.slane %v3269, 1
        %v3648 = vperm.slane %v3269, 2
        %v3649 = vperm.slane %v3269, 3
        %v3650 = vperm.slane %v3269, 4
        %v3651 = vperm.slane %v3269, 5
        %v3652 = vperm.slane %v3269, 6
        %v3653 = vperm.slane %v3269, 7
        %v3670 = vsub.f32 %v3638, %v3620
        %v3671 = vsub.f32 %v3639, %v3621
        %v3672 = vsub.f32 %v3640, %v3622
        %v3673 = vsub.f32 %v3641, %v3623
        %v3674 = vsub.f32 %v3642, %v3624
        %v3675 = vsub.f32 %v3643, %v3625
        %v3676 = vsub.f32 %v3644, %v3626
        %v3677 = vsub.f32 %v3645, %v3627
        %v3678 = vsub.f32 %v3646, %v3628
        %v3679 = vsub.f32 %v3647, %v3629
        %v3680 = vsub.f32 %v3648, %v3630
        %v3681 = vsub.f32 %v3649, %v3631
        %v3682 = vsub.f32 %v3650, %v3632
        %v3683 = vsub.f32 %v3651, %v3633
        %v3684 = vsub.f32 %v3652, %v3634
        %v3685 = vsub.f32 %v3653, %v3635
        %v3686 = vmul.f32 %v3296, %v3296
        %v3687 = vsel %vm480, %v3686, 0.0
        %3688 = vadd.xlane.f32.xlu0 %v3687
        %v3689 = vpop.xlane.xlu0 %3688
        %v3690 = vmul.f32 %v3689, %v3294
        %v3691 = vadd.f32 %v3670, %v3690
        %v3692 = vadd.f32 %v3671, %v3690
        %v3693 = vadd.f32 %v3672, %v3690
        %v3694 = vadd.f32 %v3673, %v3690
        %v3695 = vadd.f32 %v3674, %v3690
        %v3696 = vadd.f32 %v3675, %v3690
        %v3697 = vadd.f32 %v3676, %v3690
        %v3698 = vadd.f32 %v3677, %v3690
        %v3699 = vadd.f32 %v3678, %v3690
        %v3700 = vadd.f32 %v3679, %v3690
        %v3701 = vadd.f32 %v3680, %v3690
        %v3702 = vadd.f32 %v3681, %v3690
        %v3703 = vadd.f32 %v3682, %v3690
        %v3704 = vadd.f32 %v3683, %v3690
        %v3705 = vadd.f32 %v3684, %v3690
        %v3706 = vadd.f32 %v3685, %v3690
        %v3707 = vadd.f32 %v3691, 1e-05
        %v3708 = vadd.f32 %v3692, 1e-05
        %v3709 = vadd.f32 %v3693, 1e-05
        %v3710 = vadd.f32 %v3694, 1e-05
        %v3711 = vadd.f32 %v3695, 1e-05
        %v3712 = vadd.f32 %v3696, 1e-05
        %v3713 = vadd.f32 %v3697, 1e-05
        %v3714 = vadd.f32 %v3698, 1e-05
        %v3715 = vadd.f32 %v3699, 1e-05
        %v3716 = vadd.f32 %v3700, 1e-05
        %v3717 = vadd.f32 %v3701, 1e-05
        %v3718 = vadd.f32 %v3702, 1e-05
        %v3719 = vadd.f32 %v3703, 1e-05
        %v3720 = vadd.f32 %v3704, 1e-05
        %v3721 = vadd.f32 %v3705, 1e-05
        %v3722 = vadd.f32 %v3706, 1e-05
        %v3723 = vrsqrt.pop %v3707
        %v3724 = vmul.f32 %v3723, %v3707
        %v3725 = vmul.f32 %v3724, %v3723
        %v3726 = vmul.f32 0.5, %v3725
        %v3727 = vsub.f32 1.5, %v3726
        %v3728 = vmul.f32 %v3723, %v3727
        %vm3729 = vweird.f32 %v3707
        %vm3730 = vweird.f32 %v3723
        %vm3731 = vmor %vm3729, %vm3730
        %v3732 = vsel %vm3731, %v3723, %v3728
        %v3733 = vrsqrt.pop %v3708
        %v3734 = vmul.f32 %v3733, %v3708
        %v3735 = vmul.f32 %v3734, %v3733
        %v3736 = vmul.f32 0.5, %v3735
        %v3737 = vsub.f32 1.5, %v3736
        %v3738 = vmul.f32 %v3733, %v3737
        %vm3739 = vweird.f32 %v3708
        %vm3740 = vweird.f32 %v3733
        %vm3741 = vmor %vm3739, %vm3740
        %v3742 = vsel %vm3741, %v3733, %v3738
        %v3743 = vrsqrt.pop %v3709
        %v3744 = vmul.f32 %v3743, %v3709
        %v3745 = vmul.f32 %v3744, %v3743
        %v3746 = vmul.f32 0.5, %v3745
        %v3747 = vsub.f32 1.5, %v3746
        %v3748 = vmul.f32 %v3743, %v3747
        %vm3749 = vweird.f32 %v3709
        %vm3750 = vweird.f32 %v3743
        %vm3751 = vmor %vm3749, %vm3750
        %v3752 = vsel %vm3751, %v3743, %v3748
        %v3753 = vrsqrt.pop %v3710
        %v3754 = vmul.f32 %v3753, %v3710
        %v3755 = vmul.f32 %v3754, %v3753
        %v3756 = vmul.f32 0.5, %v3755
        %v3757 = vsub.f32 1.5, %v3756
        %v3758 = vmul.f32 %v3753, %v3757
        %vm3759 = vweird.f32 %v3710
        %vm3760 = vweird.f32 %v3753
        %vm3761 = vmor %vm3759, %vm3760
        %v3762 = vsel %vm3761, %v3753, %v3758
        %v3763 = vrsqrt.pop %v3711
        %v3764 = vmul.f32 %v3763, %v3711
        %v3765 = vmul.f32 %v3764, %v3763
        %v3766 = vmul.f32 0.5, %v3765
        %v3767 = vsub.f32 1.5, %v3766
        %v3768 = vmul.f32 %v3763, %v3767
        %vm3769 = vweird.f32 %v3711
        %vm3770 = vweird.f32 %v3763
        %vm3771 = vmor %vm3769, %vm3770
        %v3772 = vsel %vm3771, %v3763, %v3768
        %v3773 = vrsqrt.pop %v3712
        %v3774 = vmul.f32 %v3773, %v3712
        %v3775 = vmul.f32 %v3774, %v3773
        %v3776 = vmul.f32 0.5, %v3775
        %v3777 = vsub.f32 1.5, %v3776
        %v3778 = vmul.f32 %v3773, %v3777
        %vm3779 = vweird.f32 %v3712
        %vm3780 = vweird.f32 %v3773
        %vm3781 = vmor %vm3779, %vm3780
        %v3782 = vsel %vm3781, %v3773, %v3778
        %v3783 = vrsqrt.pop %v3713
        %v3784 = vmul.f32 %v3783, %v3713
        %v3785 = vmul.f32 %v3784, %v3783
        %v3786 = vmul.f32 0.5, %v3785
        %v3787 = vsub.f32 1.5, %v3786
        %v3788 = vmul.f32 %v3783, %v3787
        %vm3789 = vweird.f32 %v3713
        %vm3790 = vweird.f32 %v3783
        %vm3791 = vmor %vm3789, %vm3790
        %v3792 = vsel %vm3791, %v3783, %v3788
        %v3793 = vrsqrt.pop %v3714
        %v3794 = vmul.f32 %v3793, %v3714
        %v3795 = vmul.f32 %v3794, %v3793
        %v3796 = vmul.f32 0.5, %v3795
        %v3797 = vsub.f32 1.5, %v3796
        %v3798 = vmul.f32 %v3793, %v3797
        %vm3799 = vweird.f32 %v3714
        %vm3800 = vweird.f32 %v3793
        %vm3801 = vmor %vm3799, %vm3800
        %v3802 = vsel %vm3801, %v3793, %v3798
        %v3803 = vrsqrt.pop %v3715
        %v3804 = vmul.f32 %v3803, %v3715
        %v3805 = vmul.f32 %v3804, %v3803
        %v3806 = vmul.f32 0.5, %v3805
        %v3807 = vsub.f32 1.5, %v3806
        %v3808 = vmul.f32 %v3803, %v3807
        %vm3809 = vweird.f32 %v3715
        %vm3810 = vweird.f32 %v3803
        %vm3811 = vmor %vm3809, %vm3810
        %v3812 = vsel %vm3811, %v3803, %v3808
        %v3813 = vrsqrt.pop %v3716
        %v3814 = vmul.f32 %v3813, %v3716
        %v3815 = vmul.f32 %v3814, %v3813
        %v3816 = vmul.f32 0.5, %v3815
        %v3817 = vsub.f32 1.5, %v3816
        %v3818 = vmul.f32 %v3813, %v3817
        %vm3819 = vweird.f32 %v3716
        %vm3820 = vweird.f32 %v3813
        %vm3821 = vmor %vm3819, %vm3820
        %v3822 = vsel %vm3821, %v3813, %v3818
        %v3823 = vrsqrt.pop %v3717
        %v3824 = vmul.f32 %v3823, %v3717
        %v3825 = vmul.f32 %v3824, %v3823
        %v3826 = vmul.f32 0.5, %v3825
        %v3827 = vsub.f32 1.5, %v3826
        %v3828 = vmul.f32 %v3823, %v3827
        %vm3829 = vweird.f32 %v3717
        %vm3830 = vweird.f32 %v3823
        %vm3831 = vmor %vm3829, %vm3830
        %v3832 = vsel %vm3831, %v3823, %v3828
        %v3833 = vrsqrt.pop %v3718
        %v3834 = vmul.f32 %v3833, %v3718
        %v3835 = vmul.f32 %v3834, %v3833
        %v3836 = vmul.f32 0.5, %v3835
        %v3837 = vsub.f32 1.5, %v3836
        %v3838 = vmul.f32 %v3833, %v3837
        %vm3839 = vweird.f32 %v3718
        %vm3840 = vweird.f32 %v3833
        %vm3841 = vmor %vm3839, %vm3840
        %v3842 = vsel %vm3841, %v3833, %v3838
        %v3843 = vrsqrt.pop %v3719
        %v3844 = vmul.f32 %v3843, %v3719
        %v3845 = vmul.f32 %v3844, %v3843
        %v3846 = vmul.f32 0.5, %v3845
        %v3847 = vsub.f32 1.5, %v3846
        %v3848 = vmul.f32 %v3843, %v3847
        %vm3849 = vweird.f32 %v3719
        %vm3850 = vweird.f32 %v3843
        %vm3851 = vmor %vm3849, %vm3850
        %v3852 = vsel %vm3851, %v3843, %v3848
        %v3853 = vrsqrt.pop %v3720
        %v3854 = vmul.f32 %v3853, %v3720
        %v3855 = vmul.f32 %v3854, %v3853
        %v3856 = vmul.f32 0.5, %v3855
        %v3857 = vsub.f32 1.5, %v3856
        %v3858 = vmul.f32 %v3853, %v3857
        %vm3859 = vweird.f32 %v3720
        %vm3860 = vweird.f32 %v3853
        %vm3861 = vmor %vm3859, %vm3860
        %v3862 = vsel %vm3861, %v3853, %v3858
        %v3863 = vrsqrt.pop %v3721
        %v3864 = vmul.f32 %v3863, %v3721
        %v3865 = vmul.f32 %v3864, %v3863
        %v3866 = vmul.f32 0.5, %v3865
        %v3867 = vsub.f32 1.5, %v3866
        %v3868 = vmul.f32 %v3863, %v3867
        %vm3869 = vweird.f32 %v3721
        %vm3870 = vweird.f32 %v3863
        %vm3871 = vmor %vm3869, %vm3870
        %v3872 = vsel %vm3871, %v3863, %v3868
        %v3873 = vrsqrt.pop %v3722
        %v3874 = vmul.f32 %v3873, %v3722
        %v3875 = vmul.f32 %v3874, %v3873
        %v3876 = vmul.f32 0.5, %v3875
        %v3877 = vsub.f32 1.5, %v3876
        %v3878 = vmul.f32 %v3873, %v3877
        %vm3879 = vweird.f32 %v3722
        %vm3880 = vweird.f32 %v3873
        %vm3881 = vmor %vm3879, %vm3880
        %v3882 = vsel %vm3881, %v3873, %v3878
        %v3883 = vpack.c.bf16 %v3220, %v3204
        %v3884 = vpack.c.bf16 %v3221, %v3205
        %v3885 = vpack.c.bf16 %v3222, %v3206
        %v3886 = vpack.c.bf16 %v3223, %v3207
        %v3887 = vpack.c.bf16 %v3224, %v3208
        %v3888 = vpack.c.bf16 %v3225, %v3209
        %v3889 = vpack.c.bf16 %v3226, %v3210
        %v3890 = vpack.c.bf16 %v3227, %v3211
        %v3891 = vpack.c.bf16 %v3228, %v3212
        %v3892 = vpack.c.bf16 %v3229, %v3213
        %v3893 = vpack.c.bf16 %v3230, %v3214
        %v3894 = vpack.c.bf16 %v3231, %v3215
        %v3895 = vpack.c.bf16 %v3232, %v3216
        %v3896 = vpack.c.bf16 %v3233, %v3217
        %v3897 = vpack.c.bf16 %v3234, %v3218
        %v3898 = vpack.c.bf16 %v3235, %v3219
        %v3899 = vpack.c.bf16 %v3252, %v3236
        %v3900 = vpack.c.bf16 %v3253, %v3237
        %v3901 = vpack.c.bf16 %v3254, %v3238
        %v3902 = vpack.c.bf16 %v3255, %v3239
        %v3903 = vpack.c.bf16 %v3256, %v3240
        %v3904 = vpack.c.bf16 %v3257, %v3241
        %v3905 = vpack.c.bf16 %v3258, %v3242
        %v3906 = vpack.c.bf16 %v3259, %v3243
        %v3907 = vpack.c.bf16 %v3260, %v3244
        %v3908 = vpack.c.bf16 %v3261, %v3245
        %v3909 = vpack.c.bf16 %v3262, %v3246
        %v3910 = vpack.c.bf16 %v3263, %v3247
        %v3911 = vpack.c.bf16 %v3264, %v3248
        %v3912 = vpack.c.bf16 %v3265, %v3249
        %v3913 = vpack.c.bf16 %v3266, %v3250
        %v3914 = vpack.c.bf16 %v3267, %v3251
        %3915 = vadd.xlane.f32.xlu0 %v3270
        %v3916 = vpop.xlane.xlu0 %3915
        %v3917 = vmul.f32 %v3916, %v3294
        %v3918 = vsub.f32 %v3200, %v3917
        %v3919 = vmul.f32 %v3918, %v3918
        %v3920 = vsel %vm480, %v3919, 0.0
        %3921 = vadd.xlane.f32.xlu0 %v3920
        %v3922 = vpop.xlane.xlu0 %3921
        %v3923 = vmul.f32 %v3922, %v3294
        %v3924 = vadd.f32 %v3923, 1e-05
        %v3925 = vrsqrt.pop %v3924
        %v3926 = vmul.f32 %v3925, %v3924
        %v3927 = vmul.f32 %v3926, %v3925
        %v3928 = vmul.f32 0.5, %v3927
        %v3929 = vsub.f32 1.5, %v3928
        %v3930 = vmul.f32 %v3925, %v3929
        %vm3931 = vweird.f32 %v3924
        %vm3932 = vweird.f32 %v3925
        %vm3933 = vmor %vm3931, %vm3932
        %v3934 = vsel %vm3933, %v3925, %v3930
        %v3935 = vmul.f32 %v3918, %v3934
        %v3936 = vld [vmem:[%s6] sm:$0xf]
        %v3937 = vld [vmem:[%s6 + $0x4] sm:$0xf]
        %v3938 = vld [vmem:[%s6 + $0x8] sm:$0xf]
        %v3939 = vld [vmem:[%s6 + $0xc] sm:$0xf]
        %v3940 = vpack.c.bf16 %v3935, %v3935
        %v3945 = vunpack.c.l.b16 %v3936
        %v3946 = vunpack.c.l.b16 %v3937
        %v3947 = vunpack.c.l.b16 %v3938
        %v3948 = vunpack.c.l.b16 %v3939
        %v3949 = vpack.c.b16 %v3946, %v3945
        %v3950 = vpack.c.b16 %v3948, %v3947
        %v3954 = vsel %vm480, %v3940, 0
        %3956 = vmatpush.bf16.msra.mxu0 0
        %3957 = vmatpush.bf16.msra.mxu0 0
        %3958 = vmatpush.bf16.msra.mxu0 0
        %3959 = vmatpush.bf16.msra.mxu0 0
        %3960 = vmatpush.bf16.msra.mxu0 0
        %3961 = vmatpush.bf16.msra.mxu0 0
        %3962 = vmatpush.bf16.msra.mxu0 %v3950
        %3963 = vmatpush.bf16.msra.mxu0 %v3949
        %3964 = vmatmul.bf16.gmra.mxu0 %v3954
        %v3965 = vpop.f32.mrf.mxu0
        %v3966 = vadd.f32 0.0, %v3965
        %v3967 = vpop.f32.mrf.mxu0
        %3968 = vdwg.mxu0
        %v3969 = vpack.c.bf16 %v3966, %v3966
        %v3971 = vsel %vm480, %v3969, 0
        %3973 = vmatpush.bf16.msra.mxu0 0
        %3974 = vmatpush.bf16.msra.mxu0 0
        %3975 = vmatpush.bf16.msra.mxu0 0
        %3976 = vmatpush.bf16.msra.mxu0 0
        %3977 = vmatpush.bf16.msra.mxu0 0
        %3978 = vmatpush.bf16.msra.mxu0 0
        %3979 = vmatpush.bf16.msra.mxu0 %v3899
        %3980 = vmatpush.bf16.msra.mxu0 %v3883
        %3981 = vmatmul.bf16.gmra.mxu0 %v3971
        %v3982 = vpop.f32.mrf.mxu0
        %v3983 = vadd.f32 0.0, %v3982
        %v3984 = vpop.f32.mrf.mxu0
        %3985 = vdwg.mxu0
        %3986 = vmatpush.bf16.msra.mxu0 0
        %3987 = vmatpush.bf16.msra.mxu0 0
        %3988 = vmatpush.bf16.msra.mxu0 0
        %3989 = vmatpush.bf16.msra.mxu0 0
        %3990 = vmatpush.bf16.msra.mxu0 0
        %3991 = vmatpush.bf16.msra.mxu0 0
        %3992 = vmatpush.bf16.msra.mxu0 %v3900
        %3993 = vmatpush.bf16.msra.mxu0 %v3884
        %3994 = vmatmul.bf16.gmra.mxu0 %v3971
        %v3995 = vpop.f32.mrf.mxu0
        %v3996 = vadd.f32 0.0, %v3995
        %v3997 = vpop.f32.mrf.mxu0
        %3998 = vdwg.mxu0
        %3999 = vmatpush.bf16.msra.mxu0 0
        %4000 = vmatpush.bf16.msra.mxu0 0
        %4001 = vmatpush.bf16.msra.mxu0 0
        %4002 = vmatpush.bf16.msra.mxu0 0
        %4003 = vmatpush.bf16.msra.mxu0 0
        %4004 = vmatpush.bf16.msra.mxu0 0
        %4005 = vmatpush.bf16.msra.mxu0 %v3901
        %4006 = vmatpush.bf16.msra.mxu0 %v3885
        %4007 = vmatmul.bf16.gmra.mxu0 %v3971
        %v4008 = vpop.f32.mrf.mxu0
        %v4009 = vadd.f32 0.0, %v4008
        %v4010 = vpop.f32.mrf.mxu0
        %4011 = vdwg.mxu0
        %4012 = vmatpush.bf16.msra.mxu0 0
        %4013 = vmatpush.bf16.msra.mxu0 0
        %4014 = vmatpush.bf16.msra.mxu0 0
        %4015 = vmatpush.bf16.msra.mxu0 0
        %4016 = vmatpush.bf16.msra.mxu0 0
        %4017 = vmatpush.bf16.msra.mxu0 0
        %4018 = vmatpush.bf16.msra.mxu0 %v3902
        %4019 = vmatpush.bf16.msra.mxu0 %v3886
        %4020 = vmatmul.bf16.gmra.mxu0 %v3971
        %v4021 = vpop.f32.mrf.mxu0
        %v4022 = vadd.f32 0.0, %v4021
        %v4023 = vpop.f32.mrf.mxu0
        %4024 = vdwg.mxu0
        %4025 = vmatpush.bf16.msra.mxu0 0
        %4026 = vmatpush.bf16.msra.mxu0 0
        %4027 = vmatpush.bf16.msra.mxu0 0
        %4028 = vmatpush.bf16.msra.mxu0 0
        %4029 = vmatpush.bf16.msra.mxu0 0
        %4030 = vmatpush.bf16.msra.mxu0 0
        %4031 = vmatpush.bf16.msra.mxu0 %v3903
        %4032 = vmatpush.bf16.msra.mxu0 %v3887
        %4033 = vmatmul.bf16.gmra.mxu0 %v3971
        %v4034 = vpop.f32.mrf.mxu0
        %v4035 = vadd.f32 0.0, %v4034
        %v4036 = vpop.f32.mrf.mxu0
        %4037 = vdwg.mxu0
        %4038 = vmatpush.bf16.msra.mxu0 0
        %4039 = vmatpush.bf16.msra.mxu0 0
        %4040 = vmatpush.bf16.msra.mxu0 0
        %4041 = vmatpush.bf16.msra.mxu0 0
        %4042 = vmatpush.bf16.msra.mxu0 0
        %4043 = vmatpush.bf16.msra.mxu0 0
        %4044 = vmatpush.bf16.msra.mxu0 %v3904
        %4045 = vmatpush.bf16.msra.mxu0 %v3888
        %4046 = vmatmul.bf16.gmra.mxu0 %v3971
        %v4047 = vpop.f32.mrf.mxu0
        %v4048 = vadd.f32 0.0, %v4047
        %v4049 = vpop.f32.mrf.mxu0
        %4050 = vdwg.mxu0
        %4051 = vmatpush.bf16.msra.mxu0 0
        %4052 = vmatpush.bf16.msra.mxu0 0
        %4053 = vmatpush.bf16.msra.mxu0 0
        %4054 = vmatpush.bf16.msra.mxu0 0
        %4055 = vmatpush.bf16.msra.mxu0 0
        %4056 = vmatpush.bf16.msra.mxu0 0
        %4057 = vmatpush.bf16.msra.mxu0 %v3905
        %4058 = vmatpush.bf16.msra.mxu0 %v3889
        %4059 = vmatmul.bf16.gmra.mxu0 %v3971
        %v4060 = vpop.f32.mrf.mxu0
        %v4061 = vadd.f32 0.0, %v4060
        %v4062 = vpop.f32.mrf.mxu0
        %4063 = vdwg.mxu0
        %4064 = vmatpush.bf16.msra.mxu0 0
        %4065 = vmatpush.bf16.msra.mxu0 0
        %4066 = vmatpush.bf16.msra.mxu0 0
        %4067 = vmatpush.bf16.msra.mxu0 0
        %4068 = vmatpush.bf16.msra.mxu0 0
        %4069 = vmatpush.bf16.msra.mxu0 0
        %4070 = vmatpush.bf16.msra.mxu0 %v3906
        %4071 = vmatpush.bf16.msra.mxu0 %v3890
        %4072 = vmatmul.bf16.gmra.mxu0 %v3971
        %v4073 = vpop.f32.mrf.mxu0
        %v4074 = vadd.f32 0.0, %v4073
        %v4075 = vpop.f32.mrf.mxu0
        %4076 = vdwg.mxu0
        %4077 = vmatpush.bf16.msra.mxu0 0
        %4078 = vmatpush.bf16.msra.mxu0 0
        %4079 = vmatpush.bf16.msra.mxu0 0
        %4080 = vmatpush.bf16.msra.mxu0 0
        %4081 = vmatpush.bf16.msra.mxu0 0
        %4082 = vmatpush.bf16.msra.mxu0 0
        %4083 = vmatpush.bf16.msra.mxu0 %v3907
        %4084 = vmatpush.bf16.msra.mxu0 %v3891
        %4085 = vmatmul.bf16.gmra.mxu0 %v3971
        %v4086 = vpop.f32.mrf.mxu0
        %v4087 = vadd.f32 0.0, %v4086
        %v4088 = vpop.f32.mrf.mxu0
        %4089 = vdwg.mxu0
        %4090 = vmatpush.bf16.msra.mxu0 0
        %4091 = vmatpush.bf16.msra.mxu0 0
        %4092 = vmatpush.bf16.msra.mxu0 0
        %4093 = vmatpush.bf16.msra.mxu0 0
        %4094 = vmatpush.bf16.msra.mxu0 0
        %4095 = vmatpush.bf16.msra.mxu0 0
        %4096 = vmatpush.bf16.msra.mxu0 %v3908
        %4097 = vmatpush.bf16.msra.mxu0 %v3892
        %4098 = vmatmul.bf16.gmra.mxu0 %v3971
        %v4099 = vpop.f32.mrf.mxu0
        %v4100 = vadd.f32 0.0, %v4099
        %v4101 = vpop.f32.mrf.mxu0
        %4102 = vdwg.mxu0
        %4103 = vmatpush.bf16.msra.mxu0 0
        %4104 = vmatpush.bf16.msra.mxu0 0
        %4105 = vmatpush.bf16.msra.mxu0 0
        %4106 = vmatpush.bf16.msra.mxu0 0
        %4107 = vmatpush.bf16.msra.mxu0 0
        %4108 = vmatpush.bf16.msra.mxu0 0
        %4109 = vmatpush.bf16.msra.mxu0 %v3909
        %4110 = vmatpush.bf16.msra.mxu0 %v3893
        %4111 = vmatmul.bf16.gmra.mxu0 %v3971
        %v4112 = vpop.f32.mrf.mxu0
        %v4113 = vadd.f32 0.0, %v4112
        %v4114 = vpop.f32.mrf.mxu0
        %4115 = vdwg.mxu0
        %4116 = vmatpush.bf16.msra.mxu0 0
        %4117 = vmatpush.bf16.msra.mxu0 0
        %4118 = vmatpush.bf16.msra.mxu0 0
        %4119 = vmatpush.bf16.msra.mxu0 0
        %4120 = vmatpush.bf16.msra.mxu0 0
        %4121 = vmatpush.bf16.msra.mxu0 0
        %4122 = vmatpush.bf16.msra.mxu0 %v3910
        %4123 = vmatpush.bf16.msra.mxu0 %v3894
        %4124 = vmatmul.bf16.gmra.mxu0 %v3971
        %v4125 = vpop.f32.mrf.mxu0
        %v4126 = vadd.f32 0.0, %v4125
        %v4127 = vpop.f32.mrf.mxu0
        %4128 = vdwg.mxu0
        %4129 = vmatpush.bf16.msra.mxu0 0
        %4130 = vmatpush.bf16.msra.mxu0 0
        %4131 = vmatpush.bf16.msra.mxu0 0
        %4132 = vmatpush.bf16.msra.mxu0 0
        %4133 = vmatpush.bf16.msra.mxu0 0
        %4134 = vmatpush.bf16.msra.mxu0 0
        %4135 = vmatpush.bf16.msra.mxu0 %v3911
        %4136 = vmatpush.bf16.msra.mxu0 %v3895
        %4137 = vmatmul.bf16.gmra.mxu0 %v3971
        %v4138 = vpop.f32.mrf.mxu0
        %v4139 = vadd.f32 0.0, %v4138
        %v4140 = vpop.f32.mrf.mxu0
        %4141 = vdwg.mxu0
        %4142 = vmatpush.bf16.msra.mxu0 0
        %4143 = vmatpush.bf16.msra.mxu0 0
        %4144 = vmatpush.bf16.msra.mxu0 0
        %4145 = vmatpush.bf16.msra.mxu0 0
        %4146 = vmatpush.bf16.msra.mxu0 0
        %4147 = vmatpush.bf16.msra.mxu0 0
        %4148 = vmatpush.bf16.msra.mxu0 %v3912
        %4149 = vmatpush.bf16.msra.mxu0 %v3896
        %4150 = vmatmul.bf16.gmra.mxu0 %v3971
        %v4151 = vpop.f32.mrf.mxu0
        %v4152 = vadd.f32 0.0, %v4151
        %v4153 = vpop.f32.mrf.mxu0
        %4154 = vdwg.mxu0
        %4155 = vmatpush.bf16.msra.mxu0 0
        %4156 = vmatpush.bf16.msra.mxu0 0
        %4157 = vmatpush.bf16.msra.mxu0 0
        %4158 = vmatpush.bf16.msra.mxu0 0
        %4159 = vmatpush.bf16.msra.mxu0 0
        %4160 = vmatpush.bf16.msra.mxu0 0
        %4161 = vmatpush.bf16.msra.mxu0 %v3913
        %4162 = vmatpush.bf16.msra.mxu0 %v3897
        %4163 = vmatmul.bf16.gmra.mxu0 %v3971
        %v4164 = vpop.f32.mrf.mxu0
        %v4165 = vadd.f32 0.0, %v4164
        %v4166 = vpop.f32.mrf.mxu0
        %4167 = vdwg.mxu0
        %4168 = vmatpush.bf16.msra.mxu0 0
        %4169 = vmatpush.bf16.msra.mxu0 0
        %4170 = vmatpush.bf16.msra.mxu0 0
        %4171 = vmatpush.bf16.msra.mxu0 0
        %4172 = vmatpush.bf16.msra.mxu0 0
        %4173 = vmatpush.bf16.msra.mxu0 0
        %4174 = vmatpush.bf16.msra.mxu0 %v3914
        %4175 = vmatpush.bf16.msra.mxu0 %v3898
        %4176 = vmatmul.bf16.gmra.mxu0 %v3971
        %v4177 = vpop.f32.mrf.mxu0
        %v4178 = vadd.f32 0.0, %v4177
        %v4179 = vpop.f32.mrf.mxu0
        %4180 = vdwg.mxu0
        %v4181 = vmul.f32 %v3966, %v3296
        %v4182 = vsel %vm480, %v4181, 0.0
        %4183 = vadd.xlane.f32.xlu0 %v4182
        %v4184 = vpop.xlane.xlu0 %4183
        %v4185 = vsub.f32 %v3983, %v4184
        %v4186 = vsub.f32 %v3996, %v4184
        %v4187 = vsub.f32 %v4009, %v4184
        %v4188 = vsub.f32 %v4022, %v4184
        %v4189 = vsub.f32 %v4035, %v4184
        %v4190 = vsub.f32 %v4048, %v4184
        %v4191 = vsub.f32 %v4061, %v4184
        %v4192 = vsub.f32 %v4074, %v4184
        %v4193 = vsub.f32 %v4087, %v4184
        %v4194 = vsub.f32 %v4100, %v4184
        %v4195 = vsub.f32 %v4113, %v4184
        %v4196 = vsub.f32 %v4126, %v4184
        %v4197 = vsub.f32 %v4139, %v4184
        %v4198 = vsub.f32 %v4152, %v4184
        %v4199 = vsub.f32 %v4165, %v4184
        %v4200 = vsub.f32 %v4178, %v4184
        %v4201 = vmul.f32 %v4185, %v3732
        %v4202 = vmul.f32 %v4186, %v3742
        %v4203 = vmul.f32 %v4187, %v3752
        %v4204 = vmul.f32 %v4188, %v3762
        %v4205 = vmul.f32 %v4189, %v3772
        %v4206 = vmul.f32 %v4190, %v3782
        %v4207 = vmul.f32 %v4191, %v3792
        %v4208 = vmul.f32 %v4192, %v3802
        %v4209 = vmul.f32 %v4193, %v3812
        %v4210 = vmul.f32 %v4194, %v3822
        %v4211 = vmul.f32 %v4195, %v3832
        %v4212 = vmul.f32 %v4196, %v3842
        %v4213 = vmul.f32 %v4197, %v3852
        %v4214 = vmul.f32 %v4198, %v3862
        %v4215 = vmul.f32 %v4199, %v3872
        %v4216 = vmul.f32 %v4200, %v3882
        %v4217 = vmax.f32 %v4201, %v4205
        %v4218 = vmax.f32 %v4202, %v4206
        %v4219 = vmax.f32 %v4203, %v4207
        %v4220 = vmax.f32 %v4204, %v4208
        %v4221 = vmax.f32 %v4217, %v4209
        %v4222 = vmax.f32 %v4218, %v4210
        %v4223 = vmax.f32 %v4219, %v4211
        %v4224 = vmax.f32 %v4220, %v4212
        %v4225 = vmax.f32 %v4221, %v4213
        %v4226 = vmax.f32 %v4222, %v4214
        %v4227 = vmax.f32 %v4223, %v4215
        %v4228 = vmax.f32 %v4224, %v4216
        %v4229 = vmax.f32 %v4225, %v4226
        %v4230 = vmax.f32 %v4227, %v4228
        %v4231 = vmax.f32 %v4229, %v4230
        %4232 = vmax.xlane.f32.xlu0 %v4231
        %v4233 = vpop.xlane.xlu0 %4232
        %v4234 = vsub.f32 %v4201, %v4233
        %v4235 = vsub.f32 %v4202, %v4233
        %v4236 = vsub.f32 %v4203, %v4233
        %v4237 = vsub.f32 %v4204, %v4233
        %v4238 = vsub.f32 %v4205, %v4233
        %v4239 = vsub.f32 %v4206, %v4233
        %v4240 = vsub.f32 %v4207, %v4233
        %v4241 = vsub.f32 %v4208, %v4233
        %v4242 = vsub.f32 %v4209, %v4233
        %v4243 = vsub.f32 %v4210, %v4233
        %v4244 = vsub.f32 %v4211, %v4233
        %v4245 = vsub.f32 %v4212, %v4233
        %v4246 = vsub.f32 %v4213, %v4233
        %v4247 = vsub.f32 %v4214, %v4233
        %v4248 = vsub.f32 %v4215, %v4233
        %v4249 = vsub.f32 %v4216, %v4233
        %v4250 = vmul.f32 %v4234, 1.442695
        %v4251 = vpow.pop %v4250
        %v4252 = vmul.f32 %v4235, 1.442695
        %v4253 = vpow.pop %v4252
        %v4254 = vmul.f32 %v4236, 1.442695
        %v4255 = vpow.pop %v4254
        %v4256 = vmul.f32 %v4237, 1.442695
        %v4257 = vpow.pop %v4256
        %v4258 = vmul.f32 %v4238, 1.442695
        %v4259 = vpow.pop %v4258
        %v4260 = vmul.f32 %v4239, 1.442695
        %v4261 = vpow.pop %v4260
        %v4262 = vmul.f32 %v4240, 1.442695
        %v4263 = vpow.pop %v4262
        %v4264 = vmul.f32 %v4241, 1.442695
        %v4265 = vpow.pop %v4264
        %v4266 = vmul.f32 %v4242, 1.442695
        %v4267 = vpow.pop %v4266
        %v4268 = vmul.f32 %v4243, 1.442695
        %v4269 = vpow.pop %v4268
        %v4270 = vmul.f32 %v4244, 1.442695
        %v4271 = vpow.pop %v4270
        %v4272 = vmul.f32 %v4245, 1.442695
        %v4273 = vpow.pop %v4272
        %v4274 = vmul.f32 %v4246, 1.442695
        %v4275 = vpow.pop %v4274
        %v4276 = vmul.f32 %v4247, 1.442695
        %v4277 = vpow.pop %v4276
        %v4278 = vmul.f32 %v4248, 1.442695
        %v4279 = vpow.pop %v4278
        %v4280 = vmul.f32 %v4249, 1.442695
        %v4281 = vpow.pop %v4280
        %v4282 = vadd.f32 %v4251, %v4253
        %v4283 = vadd.f32 %v4282, %v4255
        %v4284 = vadd.f32 %v4283, %v4257
        %v4285 = vadd.f32 %v4284, %v4259
        %v4286 = vadd.f32 %v4285, %v4261
        %v4287 = vadd.f32 %v4286, %v4263
        %v4288 = vadd.f32 %v4287, %v4265
        %v4289 = vadd.f32 %v4288, %v4267
        %v4290 = vadd.f32 %v4289, %v4269
        %v4291 = vadd.f32 %v4290, %v4271
        %v4292 = vadd.f32 %v4291, %v4273
        %v4293 = vadd.f32 %v4292, %v4275
        %v4294 = vadd.f32 %v4293, %v4277
        %v4295 = vadd.f32 %v4294, %v4279
        %v4296 = vadd.f32 %v4295, %v4281
        %4297 = vadd.xlane.f32.xlu0 %v4296
        %v4298 = vpop.xlane.xlu0 %4297
        %v4299 = vrcp.pop %v4298
        %v4300 = vmul.f32 %v4251, %v4299
        %v4301 = vmul.f32 %v4253, %v4299
        %v4302 = vmul.f32 %v4255, %v4299
        %v4303 = vmul.f32 %v4257, %v4299
        %v4304 = vmul.f32 %v4259, %v4299
        %v4305 = vmul.f32 %v4261, %v4299
        %v4306 = vmul.f32 %v4263, %v4299
        %v4307 = vmul.f32 %v4265, %v4299
        %v4308 = vmul.f32 %v4267, %v4299
        %v4309 = vmul.f32 %v4269, %v4299
        %v4310 = vmul.f32 %v4271, %v4299
        %v4311 = vmul.f32 %v4273, %v4299
        %v4312 = vmul.f32 %v4275, %v4299
        %v4313 = vmul.f32 %v4277, %v4299
        %v4314 = vmul.f32 %v4279, %v4299
        %v4315 = vmul.f32 %v4281, %v4299
        %v4316 = vmul.f32 %v4300, %v3732
        %v4317 = vmul.f32 %v4301, %v3742
        %v4318 = vmul.f32 %v4302, %v3752
        %v4319 = vmul.f32 %v4303, %v3762
        %v4320 = vmul.f32 %v4304, %v3772
        %v4321 = vmul.f32 %v4305, %v3782
        %v4322 = vmul.f32 %v4306, %v3792
        %v4323 = vmul.f32 %v4307, %v3802
        %v4324 = vmul.f32 %v4308, %v3812
        %v4325 = vmul.f32 %v4309, %v3822
        %v4326 = vmul.f32 %v4310, %v3832
        %v4327 = vmul.f32 %v4311, %v3842
        %v4328 = vmul.f32 %v4312, %v3852
        %v4329 = vmul.f32 %v4313, %v3862
        %v4330 = vmul.f32 %v4314, %v3872
        %v4331 = vmul.f32 %v4315, %v3882
        %v4332 = vpack.c.bf16 %v4316, %v4316
        %v4333 = vpack.c.bf16 %v4317, %v4317
        %v4334 = vpack.c.bf16 %v4318, %v4318
        %v4335 = vpack.c.bf16 %v4319, %v4319
        %v4336 = vpack.c.bf16 %v4320, %v4320
        %v4337 = vpack.c.bf16 %v4321, %v4321
        %v4338 = vpack.c.bf16 %v4322, %v4322
        %v4339 = vpack.c.bf16 %v4323, %v4323
        %v4340 = vpack.c.bf16 %v4324, %v4324
        %v4341 = vpack.c.bf16 %v4325, %v4325
        %v4342 = vpack.c.bf16 %v4326, %v4326
        %v4343 = vpack.c.bf16 %v4327, %v4327
        %v4344 = vpack.c.bf16 %v4328, %v4328
        %v4345 = vpack.c.bf16 %v4329, %v4329
        %v4346 = vpack.c.bf16 %v4330, %v4330
        %v4347 = vpack.c.bf16 %v4331, %v4331
        %4348 = vmatpush.bf16.xpose.msra.mxu0 0
        %4349 = vmatpush.bf16.xpose.msra.mxu0 0
        %4350 = vmatpush.bf16.xpose.msra.mxu0 0
        %4351 = vmatpush.bf16.xpose.msra.mxu0 0
        %4352 = vmatpush.bf16.xpose.msra.mxu0 0
        %4353 = vmatpush.bf16.xpose.msra.mxu0 0
        %4354 = vmatpush.bf16.xpose.msra.mxu0 %v3899
        %4355 = vmatpush.bf16.xpose.msra.mxu0 %v3883
        %4356 = vmatmul.bf16.gmra.mxu0 %v4332
        %v4357 = vpop.f32.mrf.mxu0
        %v4358 = vadd.f32 0.0, %v4357
        %v4359 = vpop.f32.mrf.mxu0
        %4360 = vdwg.mxu0
        %4361 = vmatpush.bf16.xpose.msra.mxu0 0
        %4362 = vmatpush.bf16.xpose.msra.mxu0 0
        %4363 = vmatpush.bf16.xpose.msra.mxu0 0
        %4364 = vmatpush.bf16.xpose.msra.mxu0 0
        %4365 = vmatpush.bf16.xpose.msra.mxu0 0
        %4366 = vmatpush.bf16.xpose.msra.mxu0 0
        %4367 = vmatpush.bf16.xpose.msra.mxu0 %v3900
        %4368 = vmatpush.bf16.xpose.msra.mxu0 %v3884
        %4369 = vmatmul.bf16.gmra.mxu0 %v4333
        %v4370 = vpop.f32.mrf.mxu0
        %v4371 = vadd.f32 %v4358, %v4370
        %v4372 = vpop.f32.mrf.mxu0
        %4373 = vdwg.mxu0
        %4374 = vmatpush.bf16.xpose.msra.mxu0 0
        %4375 = vmatpush.bf16.xpose.msra.mxu0 0
        %4376 = vmatpush.bf16.xpose.msra.mxu0 0
        %4377 = vmatpush.bf16.xpose.msra.mxu0 0
        %4378 = vmatpush.bf16.xpose.msra.mxu0 0
        %4379 = vmatpush.bf16.xpose.msra.mxu0 0
        %4380 = vmatpush.bf16.xpose.msra.mxu0 %v3901
        %4381 = vmatpush.bf16.xpose.msra.mxu0 %v3885
        %4382 = vmatmul.bf16.gmra.mxu0 %v4334
        %v4383 = vpop.f32.mrf.mxu0
        %v4384 = vadd.f32 %v4371, %v4383
        %v4385 = vpop.f32.mrf.mxu0
        %4386 = vdwg.mxu0
        %4387 = vmatpush.bf16.xpose.msra.mxu0 0
        %4388 = vmatpush.bf16.xpose.msra.mxu0 0
        %4389 = vmatpush.bf16.xpose.msra.mxu0 0
        %4390 = vmatpush.bf16.xpose.msra.mxu0 0
        %4391 = vmatpush.bf16.xpose.msra.mxu0 0
        %4392 = vmatpush.bf16.xpose.msra.mxu0 0
        %4393 = vmatpush.bf16.xpose.msra.mxu0 %v3902
        %4394 = vmatpush.bf16.xpose.msra.mxu0 %v3886
        %4395 = vmatmul.bf16.gmra.mxu0 %v4335
        %v4396 = vpop.f32.mrf.mxu0
        %v4397 = vadd.f32 %v4384, %v4396
        %v4398 = vpop.f32.mrf.mxu0
        %4399 = vdwg.mxu0
        %4400 = vmatpush.bf16.xpose.msra.mxu0 0
        %4401 = vmatpush.bf16.xpose.msra.mxu0 0
        %4402 = vmatpush.bf16.xpose.msra.mxu0 0
        %4403 = vmatpush.bf16.xpose.msra.mxu0 0
        %4404 = vmatpush.bf16.xpose.msra.mxu0 0
        %4405 = vmatpush.bf16.xpose.msra.mxu0 0
        %4406 = vmatpush.bf16.xpose.msra.mxu0 %v3903
        %4407 = vmatpush.bf16.xpose.msra.mxu0 %v3887
        %4408 = vmatmul.bf16.gmra.mxu0 %v4336
        %v4409 = vpop.f32.mrf.mxu0
        %v4410 = vadd.f32 %v4397, %v4409
        %v4411 = vpop.f32.mrf.mxu0
        %4412 = vdwg.mxu0
        %4413 = vmatpush.bf16.xpose.msra.mxu0 0
        %4414 = vmatpush.bf16.xpose.msra.mxu0 0
        %4415 = vmatpush.bf16.xpose.msra.mxu0 0
        %4416 = vmatpush.bf16.xpose.msra.mxu0 0
        %4417 = vmatpush.bf16.xpose.msra.mxu0 0
        %4418 = vmatpush.bf16.xpose.msra.mxu0 0
        %4419 = vmatpush.bf16.xpose.msra.mxu0 %v3904
        %4420 = vmatpush.bf16.xpose.msra.mxu0 %v3888
        %4421 = vmatmul.bf16.gmra.mxu0 %v4337
        %v4422 = vpop.f32.mrf.mxu0
        %v4423 = vadd.f32 %v4410, %v4422
        %v4424 = vpop.f32.mrf.mxu0
        %4425 = vdwg.mxu0
        %4426 = vmatpush.bf16.xpose.msra.mxu0 0
        %4427 = vmatpush.bf16.xpose.msra.mxu0 0
        %4428 = vmatpush.bf16.xpose.msra.mxu0 0
        %4429 = vmatpush.bf16.xpose.msra.mxu0 0
        %4430 = vmatpush.bf16.xpose.msra.mxu0 0
        %4431 = vmatpush.bf16.xpose.msra.mxu0 0
        %4432 = vmatpush.bf16.xpose.msra.mxu0 %v3905
        %4433 = vmatpush.bf16.xpose.msra.mxu0 %v3889
        %4434 = vmatmul.bf16.gmra.mxu0 %v4338
        %v4435 = vpop.f32.mrf.mxu0
        %v4436 = vadd.f32 %v4423, %v4435
        %v4437 = vpop.f32.mrf.mxu0
        %4438 = vdwg.mxu0
        %4439 = vmatpush.bf16.xpose.msra.mxu0 0
        %4440 = vmatpush.bf16.xpose.msra.mxu0 0
        %4441 = vmatpush.bf16.xpose.msra.mxu0 0
        %4442 = vmatpush.bf16.xpose.msra.mxu0 0
        %4443 = vmatpush.bf16.xpose.msra.mxu0 0
        %4444 = vmatpush.bf16.xpose.msra.mxu0 0
        %4445 = vmatpush.bf16.xpose.msra.mxu0 %v3906
        %4446 = vmatpush.bf16.xpose.msra.mxu0 %v3890
        %4447 = vmatmul.bf16.gmra.mxu0 %v4339
        %v4448 = vpop.f32.mrf.mxu0
        %v4449 = vadd.f32 %v4436, %v4448
        %v4450 = vpop.f32.mrf.mxu0
        %4451 = vdwg.mxu0
        %4452 = vmatpush.bf16.xpose.msra.mxu0 0
        %4453 = vmatpush.bf16.xpose.msra.mxu0 0
        %4454 = vmatpush.bf16.xpose.msra.mxu0 0
        %4455 = vmatpush.bf16.xpose.msra.mxu0 0
        %4456 = vmatpush.bf16.xpose.msra.mxu0 0
        %4457 = vmatpush.bf16.xpose.msra.mxu0 0
        %4458 = vmatpush.bf16.xpose.msra.mxu0 %v3907
        %4459 = vmatpush.bf16.xpose.msra.mxu0 %v3891
        %4460 = vmatmul.bf16.gmra.mxu0 %v4340
        %v4461 = vpop.f32.mrf.mxu0
        %v4462 = vadd.f32 %v4449, %v4461
        %v4463 = vpop.f32.mrf.mxu0
        %4464 = vdwg.mxu0
        %4465 = vmatpush.bf16.xpose.msra.mxu0 0
        %4466 = vmatpush.bf16.xpose.msra.mxu0 0
        %4467 = vmatpush.bf16.xpose.msra.mxu0 0
        %4468 = vmatpush.bf16.xpose.msra.mxu0 0
        %4469 = vmatpush.bf16.xpose.msra.mxu0 0
        %4470 = vmatpush.bf16.xpose.msra.mxu0 0
        %4471 = vmatpush.bf16.xpose.msra.mxu0 %v3908
        %4472 = vmatpush.bf16.xpose.msra.mxu0 %v3892
        %4473 = vmatmul.bf16.gmra.mxu0 %v4341
        %v4474 = vpop.f32.mrf.mxu0
        %v4475 = vadd.f32 %v4462, %v4474
        %v4476 = vpop.f32.mrf.mxu0
        %4477 = vdwg.mxu0
        %4478 = vmatpush.bf16.xpose.msra.mxu0 0
        %4479 = vmatpush.bf16.xpose.msra.mxu0 0
        %4480 = vmatpush.bf16.xpose.msra.mxu0 0
        %4481 = vmatpush.bf16.xpose.msra.mxu0 0
        %4482 = vmatpush.bf16.xpose.msra.mxu0 0
        %4483 = vmatpush.bf16.xpose.msra.mxu0 0
        %4484 = vmatpush.bf16.xpose.msra.mxu0 %v3909
        %4485 = vmatpush.bf16.xpose.msra.mxu0 %v3893
        %4486 = vmatmul.bf16.gmra.mxu0 %v4342
        %v4487 = vpop.f32.mrf.mxu0
        %v4488 = vadd.f32 %v4475, %v4487
        %v4489 = vpop.f32.mrf.mxu0
        %4490 = vdwg.mxu0
        %4491 = vmatpush.bf16.xpose.msra.mxu0 0
        %4492 = vmatpush.bf16.xpose.msra.mxu0 0
        %4493 = vmatpush.bf16.xpose.msra.mxu0 0
        %4494 = vmatpush.bf16.xpose.msra.mxu0 0
        %4495 = vmatpush.bf16.xpose.msra.mxu0 0
        %4496 = vmatpush.bf16.xpose.msra.mxu0 0
        %4497 = vmatpush.bf16.xpose.msra.mxu0 %v3910
        %4498 = vmatpush.bf16.xpose.msra.mxu0 %v3894
        %4499 = vmatmul.bf16.gmra.mxu0 %v4343
        %v4500 = vpop.f32.mrf.mxu0
        %v4501 = vadd.f32 %v4488, %v4500
        %v4502 = vpop.f32.mrf.mxu0
        %4503 = vdwg.mxu0
        %4504 = vmatpush.bf16.xpose.msra.mxu0 0
        %4505 = vmatpush.bf16.xpose.msra.mxu0 0
        %4506 = vmatpush.bf16.xpose.msra.mxu0 0
        %4507 = vmatpush.bf16.xpose.msra.mxu0 0
        %4508 = vmatpush.bf16.xpose.msra.mxu0 0
        %4509 = vmatpush.bf16.xpose.msra.mxu0 0
        %4510 = vmatpush.bf16.xpose.msra.mxu0 %v3911
        %4511 = vmatpush.bf16.xpose.msra.mxu0 %v3895
        %4512 = vmatmul.bf16.gmra.mxu0 %v4344
        %v4513 = vpop.f32.mrf.mxu0
        %v4514 = vadd.f32 %v4501, %v4513
        %v4515 = vpop.f32.mrf.mxu0
        %4516 = vdwg.mxu0
        %4517 = vmatpush.bf16.xpose.msra.mxu0 0
        %4518 = vmatpush.bf16.xpose.msra.mxu0 0
        %4519 = vmatpush.bf16.xpose.msra.mxu0 0
        %4520 = vmatpush.bf16.xpose.msra.mxu0 0
        %4521 = vmatpush.bf16.xpose.msra.mxu0 0
        %4522 = vmatpush.bf16.xpose.msra.mxu0 0
        %4523 = vmatpush.bf16.xpose.msra.mxu0 %v3912
        %4524 = vmatpush.bf16.xpose.msra.mxu0 %v3896
        %4525 = vmatmul.bf16.gmra.mxu0 %v4345
        %v4526 = vpop.f32.mrf.mxu0
        %v4527 = vadd.f32 %v4514, %v4526
        %v4528 = vpop.f32.mrf.mxu0
        %4529 = vdwg.mxu0
        %4530 = vmatpush.bf16.xpose.msra.mxu0 0
        %4531 = vmatpush.bf16.xpose.msra.mxu0 0
        %4532 = vmatpush.bf16.xpose.msra.mxu0 0
        %4533 = vmatpush.bf16.xpose.msra.mxu0 0
        %4534 = vmatpush.bf16.xpose.msra.mxu0 0
        %4535 = vmatpush.bf16.xpose.msra.mxu0 0
        %4536 = vmatpush.bf16.xpose.msra.mxu0 %v3913
        %4537 = vmatpush.bf16.xpose.msra.mxu0 %v3897
        %4538 = vmatmul.bf16.gmra.mxu0 %v4346
        %v4539 = vpop.f32.mrf.mxu0
        %v4540 = vadd.f32 %v4527, %v4539
        %v4541 = vpop.f32.mrf.mxu0
        %4542 = vdwg.mxu0
        %4543 = vmatpush.bf16.xpose.msra.mxu0 0
        %4544 = vmatpush.bf16.xpose.msra.mxu0 0
        %4545 = vmatpush.bf16.xpose.msra.mxu0 0
        %4546 = vmatpush.bf16.xpose.msra.mxu0 0
        %4547 = vmatpush.bf16.xpose.msra.mxu0 0
        %4548 = vmatpush.bf16.xpose.msra.mxu0 0
        %4549 = vmatpush.bf16.xpose.msra.mxu0 %v3914
        %4550 = vmatpush.bf16.xpose.msra.mxu0 %v3898
        %4551 = vmatmul.bf16.gmra.mxu0 %v4347
        %v4552 = vpop.f32.mrf.mxu0
        %v4553 = vadd.f32 %v4540, %v4552
        %v4554 = vpop.f32.mrf.mxu0
        %4555 = vdwg.mxu0
        %v4556 = vadd.f32 %v3200, %v4553
        %v4557 = vadd.f32 %v4316, %v4317
        %v4558 = vadd.f32 %v4557, %v4318
        %v4559 = vadd.f32 %v4558, %v4319
        %v4560 = vadd.f32 %v4559, %v4320
        %v4561 = vadd.f32 %v4560, %v4321
        %v4562 = vadd.f32 %v4561, %v4322
        %v4563 = vadd.f32 %v4562, %v4323
        %v4564 = vadd.f32 %v4563, %v4324
        %v4565 = vadd.f32 %v4564, %v4325
        %v4566 = vadd.f32 %v4565, %v4326
        %v4567 = vadd.f32 %v4566, %v4327
        %v4568 = vadd.f32 %v4567, %v4328
        %v4569 = vadd.f32 %v4568, %v4329
        %v4570 = vadd.f32 %v4569, %v4330
        %v4571 = vadd.f32 %v4570, %v4331
        %4572 = vadd.xlane.f32.xlu0 %v4571
        %v4573 = vpop.xlane.xlu0 %4572
        %v4574 = vmul.f32 %v4573, %v3296
        %v4575 = vsub.f32 %v4556, %v4574
        %4576 = vst.msk [vmem:[%s374] sm:$0xff] %vm480, %v4575
        %v4577 = vpack.c.bf16 %v4575, %v4575
        %v4579 = vsel %vm480, %v4577, 0
        %4581 = vmatpush.bf16.msra.mxu0 0
        %4582 = vmatpush.bf16.msra.mxu0 0
        %4583 = vmatpush.bf16.msra.mxu0 0
        %4584 = vmatpush.bf16.msra.mxu0 0
        %4585 = vmatpush.bf16.msra.mxu0 0
        %4586 = vmatpush.bf16.msra.mxu0 0
        %4587 = vmatpush.bf16.msra.mxu0 %v2904
        %4588 = vmatpush.bf16.msra.mxu0 %v2903
        %4589 = vmatmul.bf16.gmra.mxu0 %v4579
        %v4590 = vpop.f32.mrf.mxu0
        %v4591 = vadd.f32 0.0, %v4590
        %v4592 = vpop.f32.mrf.mxu0
        %4593 = vdwg.mxu0
        %v4594 = vpack.c.bf16 %v4591, %v4591
        %v4595 = vmul.f32 %v4591, %v2925
        %v4596 = vsel %vm480, %v4595, 0.0
        %4597 = vadd.xlane.f32.xlu0 %v4596
        %v4598 = vpop.xlane.xlu0 %4597
        %v4600 = vsel %vm480, %v4594, 0
        %4602 = vmatpush.bf16.xpose.msra.mxu0 %v3046
        %4603 = vmatpush.bf16.xpose.msra.mxu0 %v3043
        %4604 = vmatpush.bf16.xpose.msra.mxu0 %v3040
        %4605 = vmatpush.bf16.xpose.msra.mxu0 %v3037
        %4606 = vmatpush.bf16.xpose.msra.mxu0 %v3034
        %4607 = vmatpush.bf16.xpose.msra.mxu0 %v3031
        %4608 = vmatpush.bf16.xpose.msra.mxu0 %v3028
        %4609 = vmatpush.bf16.xpose.msra.mxu0 %v3025
        %4610 = vmatmul.bf16.gmra.mxu0 %v4600
        %v4611 = vpop.f32.mrf.mxu0
        %v4612 = vadd.f32 %v4598, %v4611
        %v4613 = vpop.f32.mrf.mxu0
        %4614 = vdwg.mxu0
        %4615 = vmatpush.bf16.xpose.msra.mxu0 %v3070
        %4616 = vmatpush.bf16.xpose.msra.mxu0 %v3067
        %4617 = vmatpush.bf16.xpose.msra.mxu0 %v3064
        %4618 = vmatpush.bf16.xpose.msra.mxu0 %v3061
        %4619 = vmatpush.bf16.xpose.msra.mxu0 %v3058
        %4620 = vmatpush.bf16.xpose.msra.mxu0 %v3055
        %4621 = vmatpush.bf16.xpose.msra.mxu0 %v3052
        %4622 = vmatpush.bf16.xpose.msra.mxu0 %v3049
        %4623 = vmatmul.bf16.gmra.mxu0 %v4600
        %v4624 = vpop.f32.mrf.mxu0
        %v4625 = vadd.f32 %v4598, %v4624
        %v4626 = vpop.f32.mrf.mxu0
        %4627 = vdwg.mxu0
        %4628 = vmatpush.bf16.xpose.msra.mxu0 0
        %4629 = vmatpush.bf16.xpose.msra.mxu0 0
        %4630 = vmatpush.bf16.xpose.msra.mxu0 0
        %4631 = vmatpush.bf16.xpose.msra.mxu0 0
        %4632 = vmatpush.bf16.xpose.msra.mxu0 0
        %4633 = vmatpush.bf16.xpose.msra.mxu0 0
        %4634 = vmatpush.bf16.xpose.msra.mxu0 %v3076
        %4635 = vmatpush.bf16.xpose.msra.mxu0 %v3073
        %4636 = vmatmul.bf16.gmra.mxu0 %v4600
        %v4637 = vpop.f32.mrf.mxu0
        %v4638 = vadd.f32 %v4598, %v4637
        %v4639 = vpop.f32.mrf.mxu0
        %4640 = vdwg.mxu0
        %v4641 = vsel %vm480, %v4638, -inf
        %v4642 = vmax.f32 %v4612, %v4625
        %v4643 = vmax.f32 %v4642, %v4641
        %4644 = vmax.xlane.f32.xlu0 %v4643
        %v4645 = vpop.xlane.xlu0 %4644
        %v4646 = vsub.f32 %v4612, %v4645
        %v4647 = vsub.f32 %v4625, %v4645
        %v4648 = vsub.f32 %v4638, %v4645
        %v4649 = vmul.f32 %v4646, 1.442695
        %v4650 = vpow.pop %v4649
        %v4651 = vmul.f32 %v4647, 1.442695
        %v4652 = vpow.pop %v4651
        %v4653 = vmul.f32 %v4648, 1.442695
        %v4654 = vpow.pop %v4653
        %v4655 = vadd.f32 %v4650, %v4652
        %v4656 = vsel %vm480, %v4654, 0.0
        %v4657 = vadd.f32 %v4655, %v4656
        %4658 = vadd.xlane.f32.xlu0 %v4657
        %v4659 = vpop.xlane.xlu0 %4658
        %v4660 = vrcp.pop %v4659
        %v4661 = vmul.f32 %v4650, %v4660
        %v4662 = vmul.f32 %v4652, %v4660
        %v4663 = vmul.f32 %v4654, %v4660
        %v4664 = vpack.c.bf16 %v4661, %v4661
        %v4665 = vpack.c.bf16 %v4662, %v4662
        %v4666 = vpack.c.bf16 %v4663, %v4663
        %v4668 = vsel %vm480, %v4666, 0
        %4670 = vmatpush.bf16.msra.mxu0 %v3010
        %4671 = vmatpush.bf16.msra.mxu0 %v3009
        %4672 = vmatpush.bf16.msra.mxu0 %v3008
        %4673 = vmatpush.bf16.msra.mxu0 %v3007
        %4674 = vmatpush.bf16.msra.mxu0 %v3006
        %4675 = vmatpush.bf16.msra.mxu0 %v3005
        %4676 = vmatpush.bf16.msra.mxu0 %v3004
        %4677 = vmatpush.bf16.msra.mxu0 %v3003
        %4678 = vmatmul.bf16.gmra.mxu0 %v4664
        %v4679 = vpop.f32.mrf.mxu0
        %v4680 = vadd.f32 0.0, %v4679
        %v4681 = vpop.f32.mrf.mxu0
        %4682 = vdwg.mxu0
        %4683 = vmatpush.bf16.msra.mxu0 %v3018
        %4684 = vmatpush.bf16.msra.mxu0 %v3017
        %4685 = vmatpush.bf16.msra.mxu0 %v3016
        %4686 = vmatpush.bf16.msra.mxu0 %v3015
        %4687 = vmatpush.bf16.msra.mxu0 %v3014
        %4688 = vmatpush.bf16.msra.mxu0 %v3013
        %4689 = vmatpush.bf16.msra.mxu0 %v3012
        %4690 = vmatpush.bf16.msra.mxu0 %v3011
        %4691 = vmatmul.bf16.gmra.mxu0 %v4665
        %v4692 = vpop.f32.mrf.mxu0
        %v4693 = vadd.f32 %v4680, %v4692
        %v4694 = vpop.f32.mrf.mxu0
        %4695 = vdwg.mxu0
        %4696 = vmatpush.bf16.msra.mxu0 0
        %4697 = vmatpush.bf16.msra.mxu0 0
        %4698 = vmatpush.bf16.msra.mxu0 0
        %4699 = vmatpush.bf16.msra.mxu0 0
        %4700 = vmatpush.bf16.msra.mxu0 0
        %4701 = vmatpush.bf16.msra.mxu0 0
        %4702 = vmatpush.bf16.msra.mxu0 %v3020
        %4703 = vmatpush.bf16.msra.mxu0 %v3019
        %4704 = vmatmul.bf16.gmra.mxu0 %v4668
        %v4705 = vpop.f32.mrf.mxu0
        %v4706 = vadd.f32 %v4693, %v4705
        %v4707 = vpop.f32.mrf.mxu0
        %4708 = vdwg.mxu0
        %4709 = vst.msk [vmem:[%s381] sm:$0xff] %vm480, %v4706
        %vm4710 = vcmask 257024
        %4711 = vst.msk [vmem:[%s401] sm:$0xf] %vm4710, %v2857
        %4712 = vst.msk [vmem:[%s401 + $0x4] sm:$0xf] %vm4710, %v2858
        %4713 = vst.msk [vmem:[%s401 + $0x8] sm:$0xf] %vm4710, %v2859
        %4714 = vst.msk [vmem:[%s401 + $0xc] sm:$0xf] %vm4710, %v2860
        %4715 = vst.msk [vmem:[%s401 + $0x10] sm:$0xf] %vm4710, %v2861
        %4716 = vst.msk [vmem:[%s401 + $0x14] sm:$0xf] %vm4710, %v2862
        %4717 = vst.msk [vmem:[%s401 + $0x18] sm:$0xf] %vm4710, %v2863
        %4718 = vst.msk [vmem:[%s401 + $0x1c] sm:$0xf] %vm4710, %v2864
        %4719 = vst.msk [vmem:[%s401 + $0x20] sm:$0xf] %vm4710, %v2865
        %4720 = vst.msk [vmem:[%s401 + $0x24] sm:$0xf] %vm4710, %v2866
        %4721 = vst.msk [vmem:[%s401 + $0x28] sm:$0xf] %vm4710, %v2867
        %4722 = vst.msk [vmem:[%s401 + $0x2c] sm:$0xf] %vm4710, %v2868
        %4723 = vst.msk [vmem:[%s401 + $0x30] sm:$0xf] %vm4710, %v2869
        %4724 = vst.msk [vmem:[%s401 + $0x34] sm:$0xf] %vm4710, %v2870
        %4725 = vst.msk [vmem:[%s401 + $0x38] sm:$0xf] %vm4710, %v2871
        %4726 = vst.msk [vmem:[%s401 + $0x3c] sm:$0xf] %vm4710, %v2872
        %4727 = vst.msk [vmem:[%s401 + $0x40] sm:$0xf] %vm4710, %v2873
        %4728 = vst.msk [vmem:[%s401 + $0x44] sm:$0xf] %vm4710, %v2874
        %4729 = vst.msk [vmem:[%s401 + $0x48] sm:$0xf] %vm4710, %v2875
        %4730 = vst.msk [vmem:[%s401 + $0x4c] sm:$0xf] %vm4710, %v2876
        %4731 = vst.msk [vmem:[%s401 + $0x50] sm:$0xf] %vm4710, %v2877
        %4732 = vst.msk [vmem:[%s401 + $0x54] sm:$0xf] %vm4710, %v2878
        %4733 = vst.msk [vmem:[%s401 + $0x58] sm:$0xf] %vm4710, %v2879
        %4734 = vst.msk [vmem:[%s401 + $0x5c] sm:$0xf] %vm4710, %v2880
        %4735 = vst.msk [vmem:[%s401 + $0x60] sm:$0xf] %vm4710, %v2881
        %4736 = vst.msk [vmem:[%s401 + $0x64] sm:$0xf] %vm4710, %v2882
        %4737 = vst.msk [vmem:[%s401 + $0x68] sm:$0xf] %vm4710, %v2883
        %4738 = vst.msk [vmem:[%s401 + $0x6c] sm:$0xf] %vm4710, %v2884
        %4739 = vst.msk [vmem:[%s401 + $0x70] sm:$0xf] %vm4710, %v2885
        %4740 = vst.msk [vmem:[%s401 + $0x74] sm:$0xf] %vm4710, %v2886
        %4741 = vst.msk [vmem:[%s401 + $0x78] sm:$0xf] %vm4710, %v2887
        %4742 = vst.msk [vmem:[%s401 + $0x7c] sm:$0xf] %vm4710, %v2888
        %4743 = vst.msk [vmem:[%s401 + $0x80] sm:$0xf] %vm4710, %v2889
        %4744 = vst.msk [vmem:[%s401 + $0x84] sm:$0xf] %vm4710, %v2890
        %4745 = vst.msk [vmem:[%s401 + $0x88] sm:$0xf] %vm4710, %v2891
        %4746 = vst.msk [vmem:[%s401 + $0x8c] sm:$0xf] %vm4710, %v2892
        %s4747 = sand.u32 %s193, 1
        %s4748 = scalar_lea.sflag [#allocation3], %s4747
        %s4749 = sand.u32 %s193, 1
        %s4750 = smul.addr %s4749, 8
        %s4751 = scalar_lea.vmem [#allocation2], %s4750
        %s4752 = sand.u32 %s28, 1
        %s4753 = scalar_lea.sflag [#allocation5], %s4752
        %s4754 = sand.u32 %s219, 1
        %s4755 = smul.addr %s4754, 8
        %s4756 = scalar_lea.vmem [#allocation4], %s4755
        %s4757 = sand.u32 %s28, 1
        %s4758 = scalar_lea.sflag [#allocation5], %s4757
        %s4759 = sand.u32 %s245, 1
        %s4760 = smul.addr %s4759, 8
        %s4761 = scalar_lea.vmem [#allocation6], %s4760
        %p4762 = scmp.lt.s32.totalorder %s28, 3
        %s4763 = scalar_select %p4762, %s28, 3
        %s4764 = smul.addr %s4763, 36
        %s4765 = smul.addr %s4764, 4
        %s4766 = scalar_lea.vmem %s10, %s4765
        // Predicated region
        $region49: #{tpu_custom_call.1} parent=47 // pred_check
          %p4767 = pneg %p203
        $region50: #{tpu_custom_call.1} parent=47 // pred_check_branch
          %4769 = sbr.rel (%p4767) target = $region52
        $region51: #{tpu_custom_call.1} parent=47 // pred_region
          %4771 = vsyncadd %s4748, 0
          %s4772 = smul.addr %s28, 8
          %s4773 = scalar_lea.hbm %s7, %s4772
          %s4775 = sshll.u32 %s4751, 4
          %s4776 = int_to_ptr.vmem [resolvable:$true] %s4775
          %s4777 = sshll.u32 %s4773, 4
          %s4778 = int_to_ptr.hbm [resolvable:$true] %s4777
          %4780 = dma.vmem_to_hbm [thread:$0]  %s4776, 128, %s4778, %s4748
        $region52: #{tpu_custom_call.1} parent=47 // pred_fallthru
          _
        // Predicated region
        $region53: #{tpu_custom_call.1} parent=47 // pred_check
          %p4781 = pneg %p229
        $region54: #{tpu_custom_call.1} parent=47 // pred_check_branch
          %4783 = sbr.rel (%p4781) target = $region56
        $region55: #{tpu_custom_call.1} parent=47 // pred_region
          %4785 = vsyncadd %s4753, 0
          %s4786 = smul.addr %s28, 8
          %s4787 = scalar_lea.hbm %s8, %s4786
          %s4789 = sshll.u32 %s4756, 4
          %s4790 = int_to_ptr.vmem [resolvable:$true] %s4789
          %s4791 = sshll.u32 %s4787, 4
          %s4792 = int_to_ptr.hbm [resolvable:$true] %s4791
          %4794 = dma.vmem_to_hbm [thread:$0]  %s4790, 128, %s4792, %s4753
        $region56: #{tpu_custom_call.1} parent=47 // pred_fallthru
          _
        // Predicated region
        $region57: #{tpu_custom_call.1} parent=47 // pred_check
          %p4795 = pneg %p255
        $region58: #{tpu_custom_call.1} parent=47 // pred_check_branch
          %4797 = sbr.rel (%p4795) target = $region60
        $region59: #{tpu_custom_call.1} parent=47 // pred_region
          %4799 = vsyncadd %s4758, 0
          %s4800 = smul.addr %s28, 8
          %s4801 = scalar_lea.hbm %s9, %s4800
          %s4803 = sshll.u32 %s4761, 4
          %s4804 = int_to_ptr.vmem [resolvable:$true] %s4803
          %s4805 = sshll.u32 %s4801, 4
          %s4806 = int_to_ptr.hbm [resolvable:$true] %s4805
          %4808 = dma.vmem_to_hbm [thread:$0]  %s4804, 128, %s4806, %s4758
        $region60: #{tpu_custom_call.1} parent=47 // pred_fallthru
          _
        // Predicated region
        $region61: #{tpu_custom_call.1} parent=47 // pred_check
          %p4809 = pneg %p281
        $region62: #{tpu_custom_call.1} parent=47 // pred_check_branch
          %4811 = sbr.rel (%p4809) target = $region64
        $region63: #{tpu_custom_call.1} parent=47 // pred_region
          _
        $region64: #{tpu_custom_call.1} parent=47 // pred_fallthru
          _
      $region48: #{tpu_custom_call.1} parent=5 // pred_fallthru
        _
      %p4812 = scmp.le.s32.totalorder 2, %s23
      // Predicated region
      $region65: #{tpu_custom_call.1} parent=5 // pred_check
        %p4813 = pneg %p4812
      $region66: #{tpu_custom_call.1} parent=5 // pred_check_branch
        %4815 = sbr.rel (%p4813) target = $region68
      $region67: #{tpu_custom_call.1} parent=5 // pred_region
        %s4816 = ssub.s32 %s23, 2
        // Predicated region
        $region69: #{tpu_custom_call.1} parent=67 // pred_check
          %p4817 = pneg %p209
        $region70: #{tpu_custom_call.1} parent=67 // pred_check_branch
          %4819 = sbr.rel (%p4817) target = $region72
        $region71: #{tpu_custom_call.1} parent=67 // pred_region
          %s4820 = sand.u32 %s194, 1
          %s4821 = scalar_lea.sflag [#allocation3], %s4820
          %s4822 = sand.u32 %s194, 1
          %s4823 = smul.addr %s4822, 8
          %s4824 = scalar_lea.vmem [#allocation2], %s4823
          %4826 = dma.done %s4821, 128
        $region72: #{tpu_custom_call.1} parent=67 // pred_fallthru
          _
        // Predicated region
        $region73: #{tpu_custom_call.1} parent=67 // pred_check
          %p4827 = pneg %p235
        $region74: #{tpu_custom_call.1} parent=67 // pred_check_branch
          %4829 = sbr.rel (%p4827) target = $region76
        $region75: #{tpu_custom_call.1} parent=67 // pred_region
          %s4830 = sand.u32 %s29, 1
          %s4831 = scalar_lea.sflag [#allocation5], %s4830
          %s4832 = sand.u32 %s220, 1
          %s4833 = smul.addr %s4832, 8
          %s4834 = scalar_lea.vmem [#allocation4], %s4833
          %4836 = dma.done %s4831, 128
        $region76: #{tpu_custom_call.1} parent=67 // pred_fallthru
          _
        // Predicated region
        $region77: #{tpu_custom_call.1} parent=67 // pred_check
          %p4837 = pneg %p261
        $region78: #{tpu_custom_call.1} parent=67 // pred_check_branch
          %4839 = sbr.rel (%p4837) target = $region80
        $region79: #{tpu_custom_call.1} parent=67 // pred_region
          %s4840 = sand.u32 %s29, 1
          %s4841 = scalar_lea.sflag [#allocation5], %s4840
          %s4842 = sand.u32 %s246, 1
          %s4843 = smul.addr %s4842, 8
          %s4844 = scalar_lea.vmem [#allocation6], %s4843
          %4846 = dma.done %s4841, 128
        $region80: #{tpu_custom_call.1} parent=67 // pred_fallthru
          _
        // Predicated region
        $region81: #{tpu_custom_call.1} parent=67 // pred_check
          %p4847 = pneg %p287
        $region82: #{tpu_custom_call.1} parent=67 // pred_check_branch
          %4849 = sbr.rel (%p4847) target = $region84
        $region83: #{tpu_custom_call.1} parent=67 // pred_region
          %p4850 = scmp.lt.s32.totalorder %s29, 3
          %s4851 = scalar_select %p4850, %s29, 3
          %s4852 = smul.addr %s4851, 36
          %s4853 = smul.addr %s4852, 4
          %s4854 = scalar_lea.vmem %s10, %s4853
        $region84: #{tpu_custom_call.1} parent=67 // pred_fallthru
          _
      $region68: #{tpu_custom_call.1} parent=5 // pred_fallthru
        _
    $region6: #{tpu_custom_call.1} parent=1 // loop_footer
      %s27 = sadd.s32 1, %s23
    $region7: #{tpu_custom_call.1} parent=1 // loop_footer_branch
      %22 = sbr.rel target = $region3
    $region8: #{tpu_custom_call.1} parent=1 // loop_exit
      _
    %4855 = vsyncpa [#allocation3], 1
    %s4856 = scalar_lea.sflag [#allocation3], 1
    %4857 = vsyncpa %s4856, 1
    %4858 = vsyncpa [#allocation5], 1
    %s4859 = scalar_lea.sflag [#allocation5], 1
    %4860 = vsyncpa %s4859, 1

</llo_original>
